<compile_context>
chip_gen: v7x
topology: tpu7x:2x2x1
jax: 0.10.0
libtpu: 0.0.40
codegen_flags: <defaults>
</compile_context>

<pallas_src>
import functools

import jax
import jax.numpy as jnp
from jax import lax
from jax.experimental import pallas as pl
from jax.experimental.pallas import tpu as pltpu

# --- scaled-down sizes (original: bert=768, visual=768, layout=64, coords=4) ---
BERT = 128        # bert_size / RNN hidden size
VIS = 128         # addition_visual_size
LAY = 64          # addition_layout_size
COORDS = 4
IN_DIM = BERT + COORDS + 1    # RNN input size (widget emb + coords + visit count) = 133
IN_PAD = 136                  # IN_DIM zero-padded to a multiple of 8
HID = 100                     # dense_layer1 / dense_layer2 / out width
HID_PAD = 128                 # HID zero-padded to a lane-dense multiple of 128
VL_DIM = VIS + LAY            # merged visual+layout operand width = 192
VL_PAD = 256                  # padded to 2 full lane tiles

DEFAULT_BLOCK_B = 128         # batch tile (v5e exact MXU tile; 2 blocks -> 2 v7x TCs)
                              # use 256 on v6e when B >= 256 (single TC, 256-wide MXU)


def net_kernel(x_ref, vl_ref,
               w_ih_ref, w_hh_ref, b_rnn_ref,
               wl_h_ref, wl_vl_ref, b_lin_ref,
               w1_ref, b1_ref, w2_ref, b2_ref, w3_ref, b3_ref,
               o_ref, xp_ref):
    """One batch block.
    x_ref:  (T, Bb, IN_PAD) time-major widget sequences, bf16
    vl_ref: (Bb, VL_PAD)    concat(visual, layout) zero-padded, bf16
    o_ref:  (Bb, HID_PAD)   f32
    xp_ref: (T, Bb, BERT)   f32 VMEM scratch for the hoisted input projection.
    """
    T, Bb, _ = x_ref.shape
    f32, bf16 = jnp.float32, jnp.bfloat16
    half = Bb // 2

    # ---- h-independent part of MultiModal2Vec.lin (doesn't touch the RNN chain):
    #      [visual | layout | 0pad] @ wl_vl + b_lin, single K=256 matmul.
    fe_static = (jnp.dot(vl_ref[...], wl_vl_ref[...], preferred_element_type=f32)
                 + b_lin_ref[...])

    # ---- Hoisted input projection: xp[t] = x_t @ w_ih for all T steps, off the
    #      serial h-dependency chain.  Ref stores bound live ranges per step.
    w_ih = w_ih_ref[...]                                  # (IN_PAD, BERT) bf16
    for t in range(T):
        xp_ref[t] = jnp.dot(x_ref[t], w_ih, preferred_element_type=f32)

    # ---- nn.RNN recurrence (tanh, zero initial state), fully unrolled via
    #      fori_loop(unroll=True).  Two independent sub-batch chains interleaved
    #      so tanh (EUP) of one half overlaps h @ w_hh (MXU) of the other.
    def step(t, carry):
        h0, h1 = carry
        w_hh = w_hh_ref[...]                              # (BERT, BERT) bf16
        b_rnn = b_rnn_ref[...]                            # (1, BERT) f32, bcast in add
        xp_t = xp_ref[t]                                  # (Bb, BERT) f32
        pre0 = (jnp.dot(h0.astype(bf16), w_hh, preferred_element_type=f32)
                + xp_t[:half] + b_rnn)
        pre1 = (jnp.dot(h1.astype(bf16), w_hh, preferred_element_type=f32)
                + xp_t[half:] + b_rnn)
        return jnp.tanh(pre0), jnp.tanh(pre1)

    h_init = (jnp.zeros((half, BERT), f32), jnp.zeros((half, BERT), f32))
    h0, h1 = lax.fori_loop(0, T, step, h_init, unroll=True)
    h = jnp.concatenate([h0, h1], axis=0)                 # (Bb, BERT) f32

    # ---- MultiModal2Vec.lin (h contribution) + F.relu + dense stack.
    final_emb = (jnp.dot(h.astype(bf16), wl_h_ref[...], preferred_element_type=f32)
                 + fe_static)
    combined = jnp.maximum(final_emb, 0.0)                # F.relu
    a1 = jnp.maximum(
        jnp.dot(combined.astype(bf16), w1_ref[...], preferred_element_type=f32)
        + b1_ref[...], 0.0)
    a2 = jnp.maximum(
        jnp.dot(a1.astype(bf16), w2_ref[...], preferred_element_type=f32)
        + b2_ref[...], 0.0)
    o_ref[...] = (jnp.dot(a2.astype(bf16), w3_ref[...], preferred_element_type=f32)
                  + b3_ref[...])


def _pad_params(p):
    """Zero-pad params to MXU-friendly shapes; cast matmul weights to bf16.
    Also merges the visual/layout halves of the lin weight into one operand."""
    bf = jnp.bfloat16
    pad = lambda a, shape: jnp.pad(a, [(0, s - d) for s, d in zip(shape, a.shape)])
    wl_vl = jnp.concatenate([p["wl_v"], p["wl_l"]], axis=0)   # (VL_DIM, BERT)
    return {
        "w_ih": pad(p["w_ih"], (IN_PAD, BERT)).astype(bf),
        "w_hh": p["w_hh"].astype(bf),
        "b_rnn": p["b_rnn"],                                  # f32, = b_ih + b_hh
        "wl_h": p["wl_h"].astype(bf),
        "wl_vl": pad(wl_vl, (VL_PAD, BERT)).astype(bf),
        "b_lin": p["b_lin"],
        "w1": pad(p["w1"], (BERT, HID_PAD)).astype(bf),
        "b1": pad(p["b1"], (1, HID_PAD)),
        "w2": pad(p["w2"], (HID_PAD, HID_PAD)).astype(bf),
        "b2": pad(p["b2"], (1, HID_PAD)),
        "w3": pad(p["w3"], (HID_PAD, HID_PAD)).astype(bf),
        "b3": pad(p["b3"], (1, HID_PAD)),
    }


@functools.partial(jax.jit, static_argnames=("block_b",))
def net_forward(widget_feats, visual, layout, params, *, block_b=DEFAULT_BLOCK_B):
    """widget_feats: (B, T, IN_DIM), visual: (B, VIS), layout: (B, LAY) -> (B, HID)."""
    B, T, F = widget_feats.shape
    assert F == IN_DIM

    p = _pad_params(params)

    b_pad = pl.cdiv(B, block_b) * block_b
    # pad(133->136) + transpose(B,T -> T,B) + bf16 cast in one chained expression
    # so XLA fuses it into a single HBM pass over x.
    x = jnp.transpose(
        jnp.pad(widget_feats, ((0, b_pad - B), (0, 0), (0, IN_PAD - F))),
        (1, 0, 2)).astype(jnp.bfloat16)                       # (T, B_pad, IN_PAD)
    # Merge visual + layout into one lane-padded operand (one DMA stream,
    # one K=256 matmul in-kernel instead of two).
    vl = jnp.pad(jnp.concatenate([visual, layout], axis=-1),
                 ((0, b_pad - B), (0, VL_PAD - VL_DIM))).astype(jnp.bfloat16)

    def resident(arr):
        # Full-array block, constant index_map -> stays resident, no per-step DMA.
        return pl.BlockSpec(arr.shape, lambda b: (0, 0))

    in_specs = [
        pl.BlockSpec((T, block_b, IN_PAD), lambda b: (0, b, 0)),  # widget sequences
        pl.BlockSpec((block_b, VL_PAD), lambda b: (b, 0)),        # visual|layout
        resident(p["w_ih"]), resident(p["w_hh"]), resident(p["b_rnn"]),
        resident(p["wl_h"]), resident(p["wl_vl"]), resident(p["b_lin"]),
        resident(p["w1"]), resident(p["b1"]),
        resident(p["w2"]), resident(p["b2"]),
        resident(p["w3"]), resident(p["b3"]),
    ]

    out = pl.pallas_call(
        net_kernel,
        out_shape=jax.ShapeDtypeStruct((b_pad, HID_PAD), jnp.float32),
        grid_spec=pltpu.PrefetchScalarGridSpec(
            num_scalar_prefetch=0,
            grid=(b_pad // block_b,),
            in_specs=in_specs,
            out_specs=pl.BlockSpec((block_b, HID_PAD), lambda b: (b, 0)),
            scratch_shapes=[pltpu.VMEM((T, block_b, BERT), jnp.float32)],
        ),
        compiler_params=pltpu.CompilerParams(dimension_semantics=("parallel",)),
    )(x, vl,
      p["w_ih"], p["w_hh"], p["b_rnn"],
      p["wl_h"], p["wl_vl"], p["b_lin"],
      p["w1"], p["b1"], p["w2"], p["b2"], p["w3"], p["b3"])

    return out[:B, :HID]


def init_params(key):
    ks = jax.random.split(key, 13)
    n = lambda k, shape, s=0.1: (s * jax.random.normal(k, shape)).astype(jnp.float32)
    return {
        # nn.RNN(IN_DIM, BERT): weights pre-transposed to (in, out)
        "w_ih": n(ks[0], (IN_DIM, BERT)),
        "w_hh": n(ks[1], (BERT, BERT)),
        # b_rnn corresponds to (b_ih + b_hh) summed at parameter-conversion time.
        "b_rnn": n(ks[2], (1, BERT)),
        # MultiModal2Vec.lin: (BERT+VIS+LAY) -> BERT, split by input segment
        "wl_h": n(ks[3], (BERT, BERT)),
        "wl_v": n(ks[4], (VIS, BERT)),
        "wl_l": n(ks[5], (LAY, BERT)),
        "b_lin": n(ks[6], (1, BERT)),
        # dense_layer1 / dense_layer2 / out
        "w1": n(ks[7], (BERT, HID)), "b1": n(ks[8], (1, HID)),
        "w2": n(ks[9], (HID, HID)), "b2": n(ks[10], (1, HID)),
        "w3": n(ks[11], (HID, HID)), "b3": n(ks[12], (1, HID)),
    }


def ref_forward(widget_feats, visual, layout, p):
    """Vectorized pure-JAX reference mirroring the PyTorch forward, using the
    same bf16-operand / f32-accumulate matmul precision as the kernel."""
    bf, f32 = jnp.bfloat16, jnp.float32
    B, T, _ = widget_feats.shape
    w_ih = p["w_ih"].astype(bf)
    w_hh = p["w_hh"].astype(bf)

    h = jnp.zeros((B, BERT), f32)
    for t in range(T):
        x_t = widget_feats[:, t, :].astype(bf)
        pre = (jnp.dot(x_t, w_ih, preferred_element_type=f32)
               + jnp.dot(h.astype(bf), w_hh, preferred_element_type=f32)
               + p["b_rnn"])
        h = jnp.tanh(pre)

    fe = (jnp.dot(h.astype(bf), p["wl_h"].astype(bf), preferred_element_type=f32)
          + jnp.dot(visual.astype(bf), p["wl_v"].astype(bf), preferred_element_type=f32)
          + jnp.dot(layout.astype(bf), p["wl_l"].astype(bf), preferred_element_type=f32)
          + p["b_lin"])
    c = jnp.maximum(fe, 0.0)
    h1 = jnp.maximum(
        jnp.dot(c.astype(bf), p["w1"].astype(bf), preferred_element_type=f32) + p["b1"], 0.0)
    h2 = jnp.maximum(
        jnp.dot(h1.astype(bf), p["w2"].astype(bf), preferred_element_type=f32) + p["b2"], 0.0)
    return jnp.dot(h2.astype(bf), p["w3"].astype(bf), preferred_element_type=f32) + p["b3"]


if __name__ == "__main__":
    # 256 batch elements -> two batch blocks of 128 (>= 2 grid steps keeps both
    # v7x TensorCores busy); per-block working set ~1.6 MB, far below VMEM.
    B, T = 256, 8
    key = jax.random.PRNGKey(0)
    kp, k1, k2, k3, k4, k5 = jax.random.split(key, 6)

    params = init_params(kp)

    # Synthetic observation pieces (glue done in plain JAX): widget embeddings,
    # widget coords, visit counts, visual and layout features.
    widget_emb = jax.random.normal(k1, (B, T, BERT), jnp.float32)
    widget_coords = jax.random.uniform(k2, (B, T, COORDS), jnp.float32)
    visit_count = jax.random.uniform(k3, (B, T, 1), jnp.float32)
    visual_feature = jax.random.normal(k4, (B, VIS), jnp.float32)
    layout_feature = jax.random.normal(k5, (B, LAY), jnp.float32)

    # torch.cat((widget_emb, coords), -1) then cat visit_count.unsqueeze(-1)
    widget_feats = jnp.concatenate([widget_emb, widget_coords, visit_count], axis=-1)

    out = net_forward(widget_feats, visual_feature, layout_feature, params)
    out = jax.block_until_ready(out)

    ref = ref_forward(widget_feats, visual_feature, layout_feature, params)
    assert out.shape == (B, HID)
    assert jnp.allclose(out, ref, rtol=1e-3, atol=1e-3), "mismatch vs JAX reference"

    print("KERNEL_OK")
</pallas_src>

<mosaic_0001>
module attributes {stable_mosaic.version = 11 : i64} {
  func.func @net_kernel(%arg0: i32, %arg1: memref<8x128x136xbf16, #tpu.memory_space<vmem>>, %arg2: memref<128x256xbf16, #tpu.memory_space<vmem>>, %arg3: memref<136x128xbf16, #tpu.memory_space<vmem>>, %arg4: memref<128x128xbf16, #tpu.memory_space<vmem>>, %arg5: memref<1x128xf32, #tpu.memory_space<vmem>>, %arg6: memref<128x128xbf16, #tpu.memory_space<vmem>>, %arg7: memref<256x128xbf16, #tpu.memory_space<vmem>>, %arg8: memref<1x128xf32, #tpu.memory_space<vmem>>, %arg9: memref<128x128xbf16, #tpu.memory_space<vmem>>, %arg10: memref<1x128xf32, #tpu.memory_space<vmem>>, %arg11: memref<128x128xbf16, #tpu.memory_space<vmem>>, %arg12: memref<1x128xf32, #tpu.memory_space<vmem>>, %arg13: memref<128x128xbf16, #tpu.memory_space<vmem>>, %arg14: memref<1x128xf32, #tpu.memory_space<vmem>>, %arg15: memref<128x128xf32, #tpu.memory_space<vmem>>, %arg16: memref<8x128x128xf32, #tpu.memory_space<vmem>>) attributes {dimension_semantics = [#tpu.dimension_semantics<parallel>], iteration_bounds = array<i64: 2>, scalar_prefetch = 0 : i64, scratch_operands = 1 : i64, tpu.core_type = #tpu.core_type<tc>, window_params = [{transform_indices = @transform_0, window_bounds = array<i64: 8, 128, 136>}, {transform_indices = @transform_1, window_bounds = array<i64: 128, 256>}, {pipeline_mode = #tpu.pipeline_mode<synchronous>, transform_indices = @transform_2, window_bounds = array<i64: 136, 128>}, {pipeline_mode = #tpu.pipeline_mode<synchronous>, transform_indices = @transform_3, window_bounds = array<i64: 128, 128>}, {pipeline_mode = #tpu.pipeline_mode<synchronous>, transform_indices = @transform_4, window_bounds = array<i64: 1, 128>}, {pipeline_mode = #tpu.pipeline_mode<synchronous>, transform_indices = @transform_5, window_bounds = array<i64: 128, 128>}, {pipeline_mode = #tpu.pipeline_mode<synchronous>, transform_indices = @transform_6, window_bounds = array<i64: 256, 128>}, {pipeline_mode = #tpu.pipeline_mode<synchronous>, transform_indices = @transform_7, window_bounds = array<i64: 1, 128>}, {pipeline_mode = #tpu.pipeline_mode<synchronous>, transform_indices = @transform_8, window_bounds = array<i64: 128, 128>}, {pipeline_mode = #tpu.pipeline_mode<synchronous>, transform_indices = @transform_9, window_bounds = array<i64: 1, 128>}, {pipeline_mode = #tpu.pipeline_mode<synchronous>, transform_indices = @transform_10, window_bounds = array<i64: 128, 128>}, {pipeline_mode = #tpu.pipeline_mode<synchronous>, transform_indices = @transform_11, window_bounds = array<i64: 1, 128>}, {pipeline_mode = #tpu.pipeline_mode<synchronous>, transform_indices = @transform_12, window_bounds = array<i64: 128, 128>}, {pipeline_mode = #tpu.pipeline_mode<synchronous>, transform_indices = @transform_13, window_bounds = array<i64: 1, 128>}, {transform_indices = @transform_14, window_bounds = array<i64: 128, 128>}]} {
    %c0 = arith.constant 0 : index
    %c0_0 = arith.constant 0 : index
    %0 = vector.load %arg2[%c0, %c0_0] : memref<128x256xbf16, #tpu.memory_space<vmem>>, vector<128x256xbf16>
    %c0_1 = arith.constant 0 : index
    %c0_2 = arith.constant 0 : index
    %1 = vector.load %arg7[%c0_1, %c0_2] : memref<256x128xbf16, #tpu.memory_space<vmem>>, vector<256x128xbf16>
    %cst = arith.constant dense<0.000000e+00> : vector<128x128xf32>
    %2 = tpu.matmul %0, %1, %cst {dimension_numbers = #tpu.dot_dimension_numbers<[1], [0], [0], [1], [0, 0, 1, 1], [], []>} : vector<128x256xbf16>, vector<256x128xbf16>, vector<128x128xf32> -> vector<128x128xf32>
    %c0_3 = arith.constant 0 : index
    %c0_4 = arith.constant 0 : index
    %3 = vector.load %arg8[%c0_3, %c0_4] : memref<1x128xf32, #tpu.memory_space<vmem>>, vector<1x128xf32>
    %4 = vector.broadcast %3 : vector<1x128xf32> to vector<128x128xf32>
    %5 = arith.addf %2, %4 : vector<128x128xf32>
    %c0_5 = arith.constant 0 : index
    %c0_6 = arith.constant 0 : index
    %6 = vector.load %arg3[%c0_5, %c0_6] : memref<136x128xbf16, #tpu.memory_space<vmem>>, vector<136x128xbf16>
    %c0_7 = arith.constant 0 : index
    %c0_8 = arith.constant 0 : index
    %c0_9 = arith.constant 0 : index
    %7 = vector.load %arg1[%c0_7, %c0_8, %c0_9] : memref<8x128x136xbf16, #tpu.memory_space<vmem>>, vector<1x128x136xbf16>
    %8 = vector.shape_cast %7 : vector<1x128x136xbf16> to vector<128x136xbf16>
    %cst_10 = arith.constant dense<0.000000e+00> : vector<128x128xf32>
    %9 = tpu.matmul %8, %6, %cst_10 {dimension_numbers = #tpu.dot_dimension_numbers<[1], [0], [0], [1], [0, 0, 1, 1], [], []>} : vector<128x136xbf16>, vector<136x128xbf16>, vector<128x128xf32> -> vector<128x128xf32>
    %c0_11 = arith.constant 0 : index
    %c0_12 = arith.constant 0 : index
    %c0_13 = arith.constant 0 : index
    %10 = vector.load %arg16[%c0_11, %c0_12, %c0_13] : memref<8x128x128xf32, #tpu.memory_space<vmem>>, vector<1x128x128xf32>
    %11 = vector.shape_cast %10 : vector<1x128x128xf32> to vector<128x128xf32>
    %12 = vector.shape_cast %9 : vector<128x128xf32> to vector<1x128x128xf32>
    tpu.vector_store %arg16[%c0_11, %c0_12, %c0_13], %12 {strides = array<i32>} : memref<8x128x128xf32, #tpu.memory_space<vmem>>, vector<1x128x128xf32>,
    %c1 = arith.constant 1 : index
    %c0_14 = arith.constant 0 : index
    %c0_15 = arith.constant 0 : index
    %13 = vector.load %arg1[%c1, %c0_14, %c0_15] : memref<8x128x136xbf16, #tpu.memory_space<vmem>>, vector<1x128x136xbf16>
    %14 = vector.shape_cast %13 : vector<1x128x136xbf16> to vector<128x136xbf16>
    %cst_16 = arith.constant dense<0.000000e+00> : vector<128x128xf32>
    %15 = tpu.matmul %14, %6, %cst_16 {dimension_numbers = #tpu.dot_dimension_numbers<[1], [0], [0], [1], [0, 0, 1, 1], [], []>} : vector<128x136xbf16>, vector<136x128xbf16>, vector<128x128xf32> -> vector<128x128xf32>
    %c1_17 = arith.constant 1 : index
    %c0_18 = arith.constant 0 : index
    %c0_19 = arith.constant 0 : index
    %16 = vector.load %arg16[%c1_17, %c0_18, %c0_19] : memref<8x128x128xf32, #tpu.memory_space<vmem>>, vector<1x128x128xf32>
    %17 = vector.shape_cast %16 : vector<1x128x128xf32> to vector<128x128xf32>
    %18 = vector.shape_cast %15 : vector<128x128xf32> to vector<1x128x128xf32>
    tpu.vector_store %arg16[%c1_17, %c0_18, %c0_19], %18 {strides = array<i32>} : memref<8x128x128xf32, #tpu.memory_space<vmem>>, vector<1x128x128xf32>,
    %c2 = arith.constant 2 : index
    %c0_20 = arith.constant 0 : index
    %c0_21 = arith.constant 0 : index
    %19 = vector.load %arg1[%c2, %c0_20, %c0_21] : memref<8x128x136xbf16, #tpu.memory_space<vmem>>, vector<1x128x136xbf16>
    %20 = vector.shape_cast %19 : vector<1x128x136xbf16> to vector<128x136xbf16>
    %cst_22 = arith.constant dense<0.000000e+00> : vector<128x128xf32>
    %21 = tpu.matmul %20, %6, %cst_22 {dimension_numbers = #tpu.dot_dimension_numbers<[1], [0], [0], [1], [0, 0, 1, 1], [], []>} : vector<128x136xbf16>, vector<136x128xbf16>, vector<128x128xf32> -> vector<128x128xf32>
    %c2_23 = arith.constant 2 : index
    %c0_24 = arith.constant 0 : index
    %c0_25 = arith.constant 0 : index
    %22 = vector.load %arg16[%c2_23, %c0_24, %c0_25] : memref<8x128x128xf32, #tpu.memory_space<vmem>>, vector<1x128x128xf32>
    %23 = vector.shape_cast %22 : vector<1x128x128xf32> to vector<128x128xf32>
    %24 = vector.shape_cast %21 : vector<128x128xf32> to vector<1x128x128xf32>
    tpu.vector_store %arg16[%c2_23, %c0_24, %c0_25], %24 {strides = array<i32>} : memref<8x128x128xf32, #tpu.memory_space<vmem>>, vector<1x128x128xf32>,
    %c3 = arith.constant 3 : index
    %c0_26 = arith.constant 0 : index
    %c0_27 = arith.constant 0 : index
    %25 = vector.load %arg1[%c3, %c0_26, %c0_27] : memref<8x128x136xbf16, #tpu.memory_space<vmem>>, vector<1x128x136xbf16>
    %26 = vector.shape_cast %25 : vector<1x128x136xbf16> to vector<128x136xbf16>
    %cst_28 = arith.constant dense<0.000000e+00> : vector<128x128xf32>
    %27 = tpu.matmul %26, %6, %cst_28 {dimension_numbers = #tpu.dot_dimension_numbers<[1], [0], [0], [1], [0, 0, 1, 1], [], []>} : vector<128x136xbf16>, vector<136x128xbf16>, vector<128x128xf32> -> vector<128x128xf32>
    %c3_29 = arith.constant 3 : index
    %c0_30 = arith.constant 0 : index
    %c0_31 = arith.constant 0 : index
    %28 = vector.load %arg16[%c3_29, %c0_30, %c0_31] : memref<8x128x128xf32, #tpu.memory_space<vmem>>, vector<1x128x128xf32>
    %29 = vector.shape_cast %28 : vector<1x128x128xf32> to vector<128x128xf32>
    %30 = vector.shape_cast %27 : vector<128x128xf32> to vector<1x128x128xf32>
    tpu.vector_store %arg16[%c3_29, %c0_30, %c0_31], %30 {strides = array<i32>} : memref<8x128x128xf32, #tpu.memory_space<vmem>>, vector<1x128x128xf32>,
    %c4 = arith.constant 4 : index
    %c0_32 = arith.constant 0 : index
    %c0_33 = arith.constant 0 : index
    %31 = vector.load %arg1[%c4, %c0_32, %c0_33] : memref<8x128x136xbf16, #tpu.memory_space<vmem>>, vector<1x128x136xbf16>
    %32 = vector.shape_cast %31 : vector<1x128x136xbf16> to vector<128x136xbf16>
    %cst_34 = arith.constant dense<0.000000e+00> : vector<128x128xf32>
    %33 = tpu.matmul %32, %6, %cst_34 {dimension_numbers = #tpu.dot_dimension_numbers<[1], [0], [0], [1], [0, 0, 1, 1], [], []>} : vector<128x136xbf16>, vector<136x128xbf16>, vector<128x128xf32> -> vector<128x128xf32>
    %c4_35 = arith.constant 4 : index
    %c0_36 = arith.constant 0 : index
    %c0_37 = arith.constant 0 : index
    %34 = vector.load %arg16[%c4_35, %c0_36, %c0_37] : memref<8x128x128xf32, #tpu.memory_space<vmem>>, vector<1x128x128xf32>
    %35 = vector.shape_cast %34 : vector<1x128x128xf32> to vector<128x128xf32>
    %36 = vector.shape_cast %33 : vector<128x128xf32> to vector<1x128x128xf32>
    tpu.vector_store %arg16[%c4_35, %c0_36, %c0_37], %36 {strides = array<i32>} : memref<8x128x128xf32, #tpu.memory_space<vmem>>, vector<1x128x128xf32>,
    %c5 = arith.constant 5 : index
    %c0_38 = arith.constant 0 : index
    %c0_39 = arith.constant 0 : index
    %37 = vector.load %arg1[%c5, %c0_38, %c0_39] : memref<8x128x136xbf16, #tpu.memory_space<vmem>>, vector<1x128x136xbf16>
    %38 = vector.shape_cast %37 : vector<1x128x136xbf16> to vector<128x136xbf16>
    %cst_40 = arith.constant dense<0.000000e+00> : vector<128x128xf32>
    %39 = tpu.matmul %38, %6, %cst_40 {dimension_numbers = #tpu.dot_dimension_numbers<[1], [0], [0], [1], [0, 0, 1, 1], [], []>} : vector<128x136xbf16>, vector<136x128xbf16>, vector<128x128xf32> -> vector<128x128xf32>
    %c5_41 = arith.constant 5 : index
    %c0_42 = arith.constant 0 : index
    %c0_43 = arith.constant 0 : index
    %40 = vector.load %arg16[%c5_41, %c0_42, %c0_43] : memref<8x128x128xf32, #tpu.memory_space<vmem>>, vector<1x128x128xf32>
    %41 = vector.shape_cast %40 : vector<1x128x128xf32> to vector<128x128xf32>
    %42 = vector.shape_cast %39 : vector<128x128xf32> to vector<1x128x128xf32>
    tpu.vector_store %arg16[%c5_41, %c0_42, %c0_43], %42 {strides = array<i32>} : memref<8x128x128xf32, #tpu.memory_space<vmem>>, vector<1x128x128xf32>,
    %c6 = arith.constant 6 : index
    %c0_44 = arith.constant 0 : index
    %c0_45 = arith.constant 0 : index
    %43 = vector.load %arg1[%c6, %c0_44, %c0_45] : memref<8x128x136xbf16, #tpu.memory_space<vmem>>, vector<1x128x136xbf16>
    %44 = vector.shape_cast %43 : vector<1x128x136xbf16> to vector<128x136xbf16>
    %cst_46 = arith.constant dense<0.000000e+00> : vector<128x128xf32>
    %45 = tpu.matmul %44, %6, %cst_46 {dimension_numbers = #tpu.dot_dimension_numbers<[1], [0], [0], [1], [0, 0, 1, 1], [], []>} : vector<128x136xbf16>, vector<136x128xbf16>, vector<128x128xf32> -> vector<128x128xf32>
    %c6_47 = arith.constant 6 : index
    %c0_48 = arith.constant 0 : index
    %c0_49 = arith.constant 0 : index
    %46 = vector.load %arg16[%c6_47, %c0_48, %c0_49] : memref<8x128x128xf32, #tpu.memory_space<vmem>>, vector<1x128x128xf32>
    %47 = vector.shape_cast %46 : vector<1x128x128xf32> to vector<128x128xf32>
    %48 = vector.shape_cast %45 : vector<128x128xf32> to vector<1x128x128xf32>
    tpu.vector_store %arg16[%c6_47, %c0_48, %c0_49], %48 {strides = array<i32>} : memref<8x128x128xf32, #tpu.memory_space<vmem>>, vector<1x128x128xf32>,
    %c7 = arith.constant 7 : index
    %c0_50 = arith.constant 0 : index
    %c0_51 = arith.constant 0 : index
    %49 = vector.load %arg1[%c7, %c0_50, %c0_51] : memref<8x128x136xbf16, #tpu.memory_space<vmem>>, vector<1x128x136xbf16>
    %50 = vector.shape_cast %49 : vector<1x128x136xbf16> to vector<128x136xbf16>
    %cst_52 = arith.constant dense<0.000000e+00> : vector<128x128xf32>
    %51 = tpu.matmul %50, %6, %cst_52 {dimension_numbers = #tpu.dot_dimension_numbers<[1], [0], [0], [1], [0, 0, 1, 1], [], []>} : vector<128x136xbf16>, vector<136x128xbf16>, vector<128x128xf32> -> vector<128x128xf32>
    %c7_53 = arith.constant 7 : index
    %c0_54 = arith.constant 0 : index
    %c0_55 = arith.constant 0 : index
    %52 = vector.load %arg16[%c7_53, %c0_54, %c0_55] : memref<8x128x128xf32, #tpu.memory_space<vmem>>, vector<1x128x128xf32>
    %53 = vector.shape_cast %52 : vector<1x128x128xf32> to vector<128x128xf32>
    %54 = vector.shape_cast %51 : vector<128x128xf32> to vector<1x128x128xf32>
    tpu.vector_store %arg16[%c7_53, %c0_54, %c0_55], %54 {strides = array<i32>} : memref<8x128x128xf32, #tpu.memory_space<vmem>>, vector<1x128x128xf32>,
    %cst_56 = arith.constant 0.000000e+00 : f32
    %55 = vector.broadcast %cst_56 : f32 to vector<64x128xf32>
    %cst_57 = arith.constant 0.000000e+00 : f32
    %56 = vector.broadcast %cst_57 : f32 to vector<64x128xf32>
    %c0_i32 = arith.constant 0 : i32
    %c0_58 = arith.constant 0 : index
    %c0_59 = arith.constant 0 : index
    %57 = vector.load %arg4[%c0_58, %c0_59] : memref<128x128xbf16, #tpu.memory_space<vmem>>, vector<128x128xbf16>
    %c0_60 = arith.constant 0 : index
    %c0_61 = arith.constant 0 : index
    %58 = vector.load %arg5[%c0_60, %c0_61] : memref<1x128xf32, #tpu.memory_space<vmem>>, vector<1x128xf32>
    %59 = arith.index_cast %c0_i32 : i32 to index
    %c0_62 = arith.constant 0 : index
    %c0_63 = arith.constant 0 : index
    %60 = vector.load %arg16[%59, %c0_62, %c0_63] : memref<8x128x128xf32, #tpu.memory_space<vmem>>, vector<1x128x128xf32>
    %61 = vector.shape_cast %60 : vector<1x128x128xf32> to vector<128x128xf32>
    %62 = arith.truncf %55 : vector<64x128xf32> to vector<64x128xbf16>
    %cst_64 = arith.constant dense<0.000000e+00> : vector<64x128xf32>
    %63 = tpu.matmul %62, %57, %cst_64 {dimension_numbers = #tpu.dot_dimension_numbers<[1], [0], [0], [1], [0, 0, 1, 1], [], []>} : vector<64x128xbf16>, vector<128x128xbf16>, vector<64x128xf32> -> vector<64x128xf32>
    %64 = vector.extract_strided_slice %61 {offsets = [0, 0], sizes = [64, 128], strides = [1, 1]} : vector<128x128xf32> to vector<64x128xf32>
    %65 = arith.addf %63, %64 : vector<64x128xf32>
    %66 = vector.broadcast %58 : vector<1x128xf32> to vector<64x128xf32>
    %67 = arith.addf %65, %66 : vector<64x128xf32>
    %68 = arith.truncf %56 : vector<64x128xf32> to vector<64x128xbf16>
    %cst_65 = arith.constant dense<0.000000e+00> : vector<64x128xf32>
    %69 = tpu.matmul %68, %57, %cst_65 {dimension_numbers = #tpu.dot_dimension_numbers<[1], [0], [0], [1], [0, 0, 1, 1], [], []>} : vector<64x128xbf16>, vector<128x128xbf16>, vector<64x128xf32> -> vector<64x128xf32>
    %70 = vector.extract_strided_slice %61 {offsets = [64, 0], sizes = [64, 128], strides = [1, 1]} : vector<128x128xf32> to vector<64x128xf32>
    %71 = arith.addf %69, %70 : vector<64x128xf32>
    %72 = vector.broadcast %58 : vector<1x128xf32> to vector<64x128xf32>
    %73 = arith.addf %71, %72 : vector<64x128xf32>
    %74 = math.tanh %67 : vector<64x128xf32>
    %75 = math.tanh %73 : vector<64x128xf32>
    %c1_i32 = arith.constant 1 : i32
    %c0_66 = arith.constant 0 : index
    %c0_67 = arith.constant 0 : index
    %76 = vector.load %arg4[%c0_66, %c0_67] : memref<128x128xbf16, #tpu.memory_space<vmem>>, vector<128x128xbf16>
    %c0_68 = arith.constant 0 : index
    %c0_69 = arith.constant 0 : index
    %77 = vector.load %arg5[%c0_68, %c0_69] : memref<1x128xf32, #tpu.memory_space<vmem>>, vector<1x128xf32>
    %78 = arith.index_cast %c1_i32 : i32 to index
    %c0_70 = arith.constant 0 : index
    %c0_71 = arith.constant 0 : index
    %79 = vector.load %arg16[%78, %c0_70, %c0_71] : memref<8x128x128xf32, #tpu.memory_space<vmem>>, vector<1x128x128xf32>
    %80 = vector.shape_cast %79 : vector<1x128x128xf32> to vector<128x128xf32>
    %81 = arith.truncf %74 : vector<64x128xf32> to vector<64x128xbf16>
    %cst_72 = arith.constant dense<0.000000e+00> : vector<64x128xf32>
    %82 = tpu.matmul %81, %76, %cst_72 {dimension_numbers = #tpu.dot_dimension_numbers<[1], [0], [0], [1], [0, 0, 1, 1], [], []>} : vector<64x128xbf16>, vector<128x128xbf16>, vector<64x128xf32> -> vector<64x128xf32>
    %83 = vector.extract_strided_slice %80 {offsets = [0, 0], sizes = [64, 128], strides = [1, 1]} : vector<128x128xf32> to vector<64x128xf32>
    %84 = arith.addf %82, %83 : vector<64x128xf32>
    %85 = vector.broadcast %77 : vector<1x128xf32> to vector<64x128xf32>
    %86 = arith.addf %84, %85 : vector<64x128xf32>
    %87 = arith.truncf %75 : vector<64x128xf32> to vector<64x128xbf16>
    %cst_73 = arith.constant dense<0.000000e+00> : vector<64x128xf32>
    %88 = tpu.matmul %87, %76, %cst_73 {dimension_numbers = #tpu.dot_dimension_numbers<[1], [0], [0], [1], [0, 0, 1, 1], [], []>} : vector<64x128xbf16>, vector<128x128xbf16>, vector<64x128xf32> -> vector<64x128xf32>
    %89 = vector.extract_strided_slice %80 {offsets = [64, 0], sizes = [64, 128], strides = [1, 1]} : vector<128x128xf32> to vector<64x128xf32>
    %90 = arith.addf %88, %89 : vector<64x128xf32>
    %91 = vector.broadcast %77 : vector<1x128xf32> to vector<64x128xf32>
    %92 = arith.addf %90, %91 : vector<64x128xf32>
    %93 = math.tanh %86 : vector<64x128xf32>
    %94 = math.tanh %92 : vector<64x128xf32>
    %c2_i32 = arith.constant 2 : i32
    %c0_74 = arith.constant 0 : index
    %c0_75 = arith.constant 0 : index
    %95 = vector.load %arg4[%c0_74, %c0_75] : memref<128x128xbf16, #tpu.memory_space<vmem>>, vector<128x128xbf16>
    %c0_76 = arith.constant 0 : index
    %c0_77 = arith.constant 0 : index
    %96 = vector.load %arg5[%c0_76, %c0_77] : memref<1x128xf32, #tpu.memory_space<vmem>>, vector<1x128xf32>
    %97 = arith.index_cast %c2_i32 : i32 to index
    %c0_78 = arith.constant 0 : index
    %c0_79 = arith.constant 0 : index
    %98 = vector.load %arg16[%97, %c0_78, %c0_79] : memref<8x128x128xf32, #tpu.memory_space<vmem>>, vector<1x128x128xf32>
    %99 = vector.shape_cast %98 : vector<1x128x128xf32> to vector<128x128xf32>
    %100 = arith.truncf %93 : vector<64x128xf32> to vector<64x128xbf16>
    %cst_80 = arith.constant dense<0.000000e+00> : vector<64x128xf32>
    %101 = tpu.matmul %100, %95, %cst_80 {dimension_numbers = #tpu.dot_dimension_numbers<[1], [0], [0], [1], [0, 0, 1, 1], [], []>} : vector<64x128xbf16>, vector<128x128xbf16>, vector<64x128xf32> -> vector<64x128xf32>
    %102 = vector.extract_strided_slice %99 {offsets = [0, 0], sizes = [64, 128], strides = [1, 1]} : vector<128x128xf32> to vector<64x128xf32>
    %103 = arith.addf %101, %102 : vector<64x128xf32>
    %104 = vector.broadcast %96 : vector<1x128xf32> to vector<64x128xf32>
    %105 = arith.addf %103, %104 : vector<64x128xf32>
    %106 = arith.truncf %94 : vector<64x128xf32> to vector<64x128xbf16>
    %cst_81 = arith.constant dense<0.000000e+00> : vector<64x128xf32>
    %107 = tpu.matmul %106, %95, %cst_81 {dimension_numbers = #tpu.dot_dimension_numbers<[1], [0], [0], [1], [0, 0, 1, 1], [], []>} : vector<64x128xbf16>, vector<128x128xbf16>, vector<64x128xf32> -> vector<64x128xf32>
    %108 = vector.extract_strided_slice %99 {offsets = [64, 0], sizes = [64, 128], strides = [1, 1]} : vector<128x128xf32> to vector<64x128xf32>
    %109 = arith.addf %107, %108 : vector<64x128xf32>
    %110 = vector.broadcast %96 : vector<1x128xf32> to vector<64x128xf32>
    %111 = arith.addf %109, %110 : vector<64x128xf32>
    %112 = math.tanh %105 : vector<64x128xf32>
    %113 = math.tanh %111 : vector<64x128xf32>
    %c3_i32 = arith.constant 3 : i32
    %c0_82 = arith.constant 0 : index
    %c0_83 = arith.constant 0 : index
    %114 = vector.load %arg4[%c0_82, %c0_83] : memref<128x128xbf16, #tpu.memory_space<vmem>>, vector<128x128xbf16>
    %c0_84 = arith.constant 0 : index
    %c0_85 = arith.constant 0 : index
    %115 = vector.load %arg5[%c0_84, %c0_85] : memref<1x128xf32, #tpu.memory_space<vmem>>, vector<1x128xf32>
    %116 = arith.index_cast %c3_i32 : i32 to index
    %c0_86 = arith.constant 0 : index
    %c0_87 = arith.constant 0 : index
    %117 = vector.load %arg16[%116, %c0_86, %c0_87] : memref<8x128x128xf32, #tpu.memory_space<vmem>>, vector<1x128x128xf32>
    %118 = vector.shape_cast %117 : vector<1x128x128xf32> to vector<128x128xf32>
    %119 = arith.truncf %112 : vector<64x128xf32> to vector<64x128xbf16>
    %cst_88 = arith.constant dense<0.000000e+00> : vector<64x128xf32>
    %120 = tpu.matmul %119, %114, %cst_88 {dimension_numbers = #tpu.dot_dimension_numbers<[1], [0], [0], [1], [0, 0, 1, 1], [], []>} : vector<64x128xbf16>, vector<128x128xbf16>, vector<64x128xf32> -> vector<64x128xf32>
    %121 = vector.extract_strided_slice %118 {offsets = [0, 0], sizes = [64, 128], strides = [1, 1]} : vector<128x128xf32> to vector<64x128xf32>
    %122 = arith.addf %120, %121 : vector<64x128xf32>
    %123 = vector.broadcast %115 : vector<1x128xf32> to vector<64x128xf32>
    %124 = arith.addf %122, %123 : vector<64x128xf32>
    %125 = arith.truncf %113 : vector<64x128xf32> to vector<64x128xbf16>
    %cst_89 = arith.constant dense<0.000000e+00> : vector<64x128xf32>
    %126 = tpu.matmul %125, %114, %cst_89 {dimension_numbers = #tpu.dot_dimension_numbers<[1], [0], [0], [1], [0, 0, 1, 1], [], []>} : vector<64x128xbf16>, vector<128x128xbf16>, vector<64x128xf32> -> vector<64x128xf32>
    %127 = vector.extract_strided_slice %118 {offsets = [64, 0], sizes = [64, 128], strides = [1, 1]} : vector<128x128xf32> to vector<64x128xf32>
    %128 = arith.addf %126, %127 : vector<64x128xf32>
    %129 = vector.broadcast %115 : vector<1x128xf32> to vector<64x128xf32>
    %130 = arith.addf %128, %129 : vector<64x128xf32>
    %131 = math.tanh %124 : vector<64x128xf32>
    %132 = math.tanh %130 : vector<64x128xf32>
    %c4_i32 = arith.constant 4 : i32
    %c0_90 = arith.constant 0 : index
    %c0_91 = arith.constant 0 : index
    %133 = vector.load %arg4[%c0_90, %c0_91] : memref<128x128xbf16, #tpu.memory_space<vmem>>, vector<128x128xbf16>
    %c0_92 = arith.constant 0 : index
    %c0_93 = arith.constant 0 : index
    %134 = vector.load %arg5[%c0_92, %c0_93] : memref<1x128xf32, #tpu.memory_space<vmem>>, vector<1x128xf32>
    %135 = arith.index_cast %c4_i32 : i32 to index
    %c0_94 = arith.constant 0 : index
    %c0_95 = arith.constant 0 : index
    %136 = vector.load %arg16[%135, %c0_94, %c0_95] : memref<8x128x128xf32, #tpu.memory_space<vmem>>, vector<1x128x128xf32>
    %137 = vector.shape_cast %136 : vector<1x128x128xf32> to vector<128x128xf32>
    %138 = arith.truncf %131 : vector<64x128xf32> to vector<64x128xbf16>
    %cst_96 = arith.constant dense<0.000000e+00> : vector<64x128xf32>
    %139 = tpu.matmul %138, %133, %cst_96 {dimension_numbers = #tpu.dot_dimension_numbers<[1], [0], [0], [1], [0, 0, 1, 1], [], []>} : vector<64x128xbf16>, vector<128x128xbf16>, vector<64x128xf32> -> vector<64x128xf32>
    %140 = vector.extract_strided_slice %137 {offsets = [0, 0], sizes = [64, 128], strides = [1, 1]} : vector<128x128xf32> to vector<64x128xf32>
    %141 = arith.addf %139, %140 : vector<64x128xf32>
    %142 = vector.broadcast %134 : vector<1x128xf32> to vector<64x128xf32>
    %143 = arith.addf %141, %142 : vector<64x128xf32>
    %144 = arith.truncf %132 : vector<64x128xf32> to vector<64x128xbf16>
    %cst_97 = arith.constant dense<0.000000e+00> : vector<64x128xf32>
    %145 = tpu.matmul %144, %133, %cst_97 {dimension_numbers = #tpu.dot_dimension_numbers<[1], [0], [0], [1], [0, 0, 1, 1], [], []>} : vector<64x128xbf16>, vector<128x128xbf16>, vector<64x128xf32> -> vector<64x128xf32>
    %146 = vector.extract_strided_slice %137 {offsets = [64, 0], sizes = [64, 128], strides = [1, 1]} : vector<128x128xf32> to vector<64x128xf32>
    %147 = arith.addf %145, %146 : vector<64x128xf32>
    %148 = vector.broadcast %134 : vector<1x128xf32> to vector<64x128xf32>
    %149 = arith.addf %147, %148 : vector<64x128xf32>
    %150 = math.tanh %143 : vector<64x128xf32>
    %151 = math.tanh %149 : vector<64x128xf32>
    %c5_i32 = arith.constant 5 : i32
    %c0_98 = arith.constant 0 : index
    %c0_99 = arith.constant 0 : index
    %152 = vector.load %arg4[%c0_98, %c0_99] : memref<128x128xbf16, #tpu.memory_space<vmem>>, vector<128x128xbf16>
    %c0_100 = arith.constant 0 : index
    %c0_101 = arith.constant 0 : index
    %153 = vector.load %arg5[%c0_100, %c0_101] : memref<1x128xf32, #tpu.memory_space<vmem>>, vector<1x128xf32>
    %154 = arith.index_cast %c5_i32 : i32 to index
    %c0_102 = arith.constant 0 : index
    %c0_103 = arith.constant 0 : index
    %155 = vector.load %arg16[%154, %c0_102, %c0_103] : memref<8x128x128xf32, #tpu.memory_space<vmem>>, vector<1x128x128xf32>
    %156 = vector.shape_cast %155 : vector<1x128x128xf32> to vector<128x128xf32>
    %157 = arith.truncf %150 : vector<64x128xf32> to vector<64x128xbf16>
    %cst_104 = arith.constant dense<0.000000e+00> : vector<64x128xf32>
    %158 = tpu.matmul %157, %152, %cst_104 {dimension_numbers = #tpu.dot_dimension_numbers<[1], [0], [0], [1], [0, 0, 1, 1], [], []>} : vector<64x128xbf16>, vector<128x128xbf16>, vector<64x128xf32> -> vector<64x128xf32>
    %159 = vector.extract_strided_slice %156 {offsets = [0, 0], sizes = [64, 128], strides = [1, 1]} : vector<128x128xf32> to vector<64x128xf32>
    %160 = arith.addf %158, %159 : vector<64x128xf32>
    %161 = vector.broadcast %153 : vector<1x128xf32> to vector<64x128xf32>
    %162 = arith.addf %160, %161 : vector<64x128xf32>
    %163 = arith.truncf %151 : vector<64x128xf32> to vector<64x128xbf16>
    %cst_105 = arith.constant dense<0.000000e+00> : vector<64x128xf32>
    %164 = tpu.matmul %163, %152, %cst_105 {dimension_numbers = #tpu.dot_dimension_numbers<[1], [0], [0], [1], [0, 0, 1, 1], [], []>} : vector<64x128xbf16>, vector<128x128xbf16>, vector<64x128xf32> -> vector<64x128xf32>
    %165 = vector.extract_strided_slice %156 {offsets = [64, 0], sizes = [64, 128], strides = [1, 1]} : vector<128x128xf32> to vector<64x128xf32>
    %166 = arith.addf %164, %165 : vector<64x128xf32>
    %167 = vector.broadcast %153 : vector<1x128xf32> to vector<64x128xf32>
    %168 = arith.addf %166, %167 : vector<64x128xf32>
    %169 = math.tanh %162 : vector<64x128xf32>
    %170 = math.tanh %168 : vector<64x128xf32>
    %c6_i32 = arith.constant 6 : i32
    %c0_106 = arith.constant 0 : index
    %c0_107 = arith.constant 0 : index
    %171 = vector.load %arg4[%c0_106, %c0_107] : memref<128x128xbf16, #tpu.memory_space<vmem>>, vector<128x128xbf16>
    %c0_108 = arith.constant 0 : index
    %c0_109 = arith.constant 0 : index
    %172 = vector.load %arg5[%c0_108, %c0_109] : memref<1x128xf32, #tpu.memory_space<vmem>>, vector<1x128xf32>
    %173 = arith.index_cast %c6_i32 : i32 to index
    %c0_110 = arith.constant 0 : index
    %c0_111 = arith.constant 0 : index
    %174 = vector.load %arg16[%173, %c0_110, %c0_111] : memref<8x128x128xf32, #tpu.memory_space<vmem>>, vector<1x128x128xf32>
    %175 = vector.shape_cast %174 : vector<1x128x128xf32> to vector<128x128xf32>
    %176 = arith.truncf %169 : vector<64x128xf32> to vector<64x128xbf16>
    %cst_112 = arith.constant dense<0.000000e+00> : vector<64x128xf32>
    %177 = tpu.matmul %176, %171, %cst_112 {dimension_numbers = #tpu.dot_dimension_numbers<[1], [0], [0], [1], [0, 0, 1, 1], [], []>} : vector<64x128xbf16>, vector<128x128xbf16>, vector<64x128xf32> -> vector<64x128xf32>
    %178 = vector.extract_strided_slice %175 {offsets = [0, 0], sizes = [64, 128], strides = [1, 1]} : vector<128x128xf32> to vector<64x128xf32>
    %179 = arith.addf %177, %178 : vector<64x128xf32>
    %180 = vector.broadcast %172 : vector<1x128xf32> to vector<64x128xf32>
    %181 = arith.addf %179, %180 : vector<64x128xf32>
    %182 = arith.truncf %170 : vector<64x128xf32> to vector<64x128xbf16>
    %cst_113 = arith.constant dense<0.000000e+00> : vector<64x128xf32>
    %183 = tpu.matmul %182, %171, %cst_113 {dimension_numbers = #tpu.dot_dimension_numbers<[1], [0], [0], [1], [0, 0, 1, 1], [], []>} : vector<64x128xbf16>, vector<128x128xbf16>, vector<64x128xf32> -> vector<64x128xf32>
    %184 = vector.extract_strided_slice %175 {offsets = [64, 0], sizes = [64, 128], strides = [1, 1]} : vector<128x128xf32> to vector<64x128xf32>
    %185 = arith.addf %183, %184 : vector<64x128xf32>
    %186 = vector.broadcast %172 : vector<1x128xf32> to vector<64x128xf32>
    %187 = arith.addf %185, %186 : vector<64x128xf32>
    %188 = math.tanh %181 : vector<64x128xf32>
    %189 = math.tanh %187 : vector<64x128xf32>
    %c7_i32 = arith.constant 7 : i32
    %c0_114 = arith.constant 0 : index
    %c0_115 = arith.constant 0 : index
    %190 = vector.load %arg4[%c0_114, %c0_115] : memref<128x128xbf16, #tpu.memory_space<vmem>>, vector<128x128xbf16>
    %c0_116 = arith.constant 0 : index
    %c0_117 = arith.constant 0 : index
    %191 = vector.load %arg5[%c0_116, %c0_117] : memref<1x128xf32, #tpu.memory_space<vmem>>, vector<1x128xf32>
    %192 = arith.index_cast %c7_i32 : i32 to index
    %c0_118 = arith.constant 0 : index
    %c0_119 = arith.constant 0 : index
    %193 = vector.load %arg16[%192, %c0_118, %c0_119] : memref<8x128x128xf32, #tpu.memory_space<vmem>>, vector<1x128x128xf32>
    %194 = vector.shape_cast %193 : vector<1x128x128xf32> to vector<128x128xf32>
    %195 = arith.truncf %188 : vector<64x128xf32> to vector<64x128xbf16>
    %cst_120 = arith.constant dense<0.000000e+00> : vector<64x128xf32>
    %196 = tpu.matmul %195, %190, %cst_120 {dimension_numbers = #tpu.dot_dimension_numbers<[1], [0], [0], [1], [0, 0, 1, 1], [], []>} : vector<64x128xbf16>, vector<128x128xbf16>, vector<64x128xf32> -> vector<64x128xf32>
    %197 = vector.extract_strided_slice %194 {offsets = [0, 0], sizes = [64, 128], strides = [1, 1]} : vector<128x128xf32> to vector<64x128xf32>
    %198 = arith.addf %196, %197 : vector<64x128xf32>
    %199 = vector.broadcast %191 : vector<1x128xf32> to vector<64x128xf32>
    %200 = arith.addf %198, %199 : vector<64x128xf32>
    %201 = arith.truncf %189 : vector<64x128xf32> to vector<64x128xbf16>
    %cst_121 = arith.constant dense<0.000000e+00> : vector<64x128xf32>
    %202 = tpu.matmul %201, %190, %cst_121 {dimension_numbers = #tpu.dot_dimension_numbers<[1], [0], [0], [1], [0, 0, 1, 1], [], []>} : vector<64x128xbf16>, vector<128x128xbf16>, vector<64x128xf32> -> vector<64x128xf32>
    %203 = vector.extract_strided_slice %194 {offsets = [64, 0], sizes = [64, 128], strides = [1, 1]} : vector<128x128xf32> to vector<64x128xf32>
    %204 = arith.addf %202, %203 : vector<64x128xf32>
    %205 = vector.broadcast %191 : vector<1x128xf32> to vector<64x128xf32>
    %206 = arith.addf %204, %205 : vector<64x128xf32>
    %207 = math.tanh %200 : vector<64x128xf32>
    %208 = math.tanh %206 : vector<64x128xf32>
    %c8_i32 = arith.constant 8 : i32
    %209 = tpu.concatenate %207, %208 in 0 : vector<64x128xf32>, vector<64x128xf32> -> vector<128x128xf32>
    %210 = arith.truncf %209 : vector<128x128xf32> to vector<128x128xbf16>
    %c0_122 = arith.constant 0 : index
    %c0_123 = arith.constant 0 : index
    %211 = vector.load %arg6[%c0_122, %c0_123] : memref<128x128xbf16, #tpu.memory_space<vmem>>, vector<128x128xbf16>
    %cst_124 = arith.constant dense<0.000000e+00> : vector<128x128xf32>
    %212 = tpu.matmul %210, %211, %cst_124 {dimension_numbers = #tpu.dot_dimension_numbers<[1], [0], [0], [1], [0, 0, 1, 1], [], []>} : vector<128x128xbf16>, vector<128x128xbf16>, vector<128x128xf32> -> vector<128x128xf32>
    %213 = arith.addf %212, %5 : vector<128x128xf32>
    %cst_125 = arith.constant 0.000000e+00 : f32
    %214 = vector.broadcast %cst_125 : f32 to vector<128x128xf32>
    %215 = arith.maximumf %213, %214 : vector<128x128xf32>
    %216 = arith.truncf %215 : vector<128x128xf32> to vector<128x128xbf16>
    %c0_126 = arith.constant 0 : index
    %c0_127 = arith.constant 0 : index
    %217 = vector.load %arg9[%c0_126, %c0_127] : memref<128x128xbf16, #tpu.memory_space<vmem>>, vector<128x128xbf16>
    %cst_128 = arith.constant dense<0.000000e+00> : vector<128x128xf32>
    %218 = tpu.matmul %216, %217, %cst_128 {dimension_numbers = #tpu.dot_dimension_numbers<[1], [0], [0], [1], [0, 0, 1, 1], [], []>} : vector<128x128xbf16>, vector<128x128xbf16>, vector<128x128xf32> -> vector<128x128xf32>
    %c0_129 = arith.constant 0 : index
    %c0_130 = arith.constant 0 : index
    %219 = vector.load %arg10[%c0_129, %c0_130] : memref<1x128xf32, #tpu.memory_space<vmem>>, vector<1x128xf32>
    %220 = vector.broadcast %219 : vector<1x128xf32> to vector<128x128xf32>
    %221 = arith.addf %218, %220 : vector<128x128xf32>
    %cst_131 = arith.constant 0.000000e+00 : f32
    %222 = vector.broadcast %cst_131 : f32 to vector<128x128xf32>
    %223 = arith.maximumf %221, %222 : vector<128x128xf32>
    %224 = arith.truncf %223 : vector<128x128xf32> to vector<128x128xbf16>
    %c0_132 = arith.constant 0 : index
    %c0_133 = arith.constant 0 : index
    %225 = vector.load %arg11[%c0_132, %c0_133] : memref<128x128xbf16, #tpu.memory_space<vmem>>, vector<128x128xbf16>
    %cst_134 = arith.constant dense<0.000000e+00> : vector<128x128xf32>
    %226 = tpu.matmul %224, %225, %cst_134 {dimension_numbers = #tpu.dot_dimension_numbers<[1], [0], [0], [1], [0, 0, 1, 1], [], []>} : vector<128x128xbf16>, vector<128x128xbf16>, vector<128x128xf32> -> vector<128x128xf32>
    %c0_135 = arith.constant 0 : index
    %c0_136 = arith.constant 0 : index
    %227 = vector.load %arg12[%c0_135, %c0_136] : memref<1x128xf32, #tpu.memory_space<vmem>>, vector<1x128xf32>
    %228 = vector.broadcast %227 : vector<1x128xf32> to vector<128x128xf32>
    %229 = arith.addf %226, %228 : vector<128x128xf32>
    %cst_137 = arith.constant 0.000000e+00 : f32
    %230 = vector.broadcast %cst_137 : f32 to vector<128x128xf32>
    %231 = arith.maximumf %229, %230 : vector<128x128xf32>
    %232 = arith.truncf %231 : vector<128x128xf32> to vector<128x128xbf16>
    %c0_138 = arith.constant 0 : index
    %c0_139 = arith.constant 0 : index
    %233 = vector.load %arg13[%c0_138, %c0_139] : memref<128x128xbf16, #tpu.memory_space<vmem>>, vector<128x128xbf16>
    %cst_140 = arith.constant dense<0.000000e+00> : vector<128x128xf32>
    %234 = tpu.matmul %232, %233, %cst_140 {dimension_numbers = #tpu.dot_dimension_numbers<[1], [0], [0], [1], [0, 0, 1, 1], [], []>} : vector<128x128xbf16>, vector<128x128xbf16>, vector<128x128xf32> -> vector<128x128xf32>
    %c0_141 = arith.constant 0 : index
    %c0_142 = arith.constant 0 : index
    %235 = vector.load %arg14[%c0_141, %c0_142] : memref<1x128xf32, #tpu.memory_space<vmem>>, vector<1x128xf32>
    %236 = vector.broadcast %235 : vector<1x128xf32> to vector<128x128xf32>
    %237 = arith.addf %234, %236 : vector<128x128xf32>
    %c0_143 = arith.constant 0 : index
    %c0_144 = arith.constant 0 : index
    %238 = vector.load %arg15[%c0_143, %c0_144] : memref<128x128xf32, #tpu.memory_space<vmem>>, vector<128x128xf32>
    tpu.vector_store %arg15[%c0_143, %c0_144], %237 {strides = array<i32>} : memref<128x128xf32, #tpu.memory_space<vmem>>, vector<128x128xf32>,
    return
  }
  func.func @transform_0(%arg0: i32) -> (i32, i32, i32) {
    %c0_i32 = arith.constant 0 : i32
    %c0_i32_0 = arith.constant 0 : i32
    %c0_i32_1 = arith.constant 0 : i32
    return %c0_i32, %arg0, %c0_i32_0 : i32, i32, i32
  }
  func.func @transform_1(%arg0: i32) -> (i32, i32) {
    %c0_i32 = arith.constant 0 : i32
    %c0_i32_0 = arith.constant 0 : i32
    return %arg0, %c0_i32 : i32, i32
  }
  func.func @transform_2(%arg0: i32) -> (i32, i32) {
    %c0_i32 = arith.constant 0 : i32
    %c0_i32_0 = arith.constant 0 : i32
    %c0_i32_1 = arith.constant 0 : i32
    return %c0_i32, %c0_i32_0 : i32, i32
  }
  func.func @transform_3(%arg0: i32) -> (i32, i32) {
    %c0_i32 = arith.constant 0 : i32
    %c0_i32_0 = arith.constant 0 : i32
    %c0_i32_1 = arith.constant 0 : i32
    return %c0_i32, %c0_i32_0 : i32, i32
  }
  func.func @transform_4(%arg0: i32) -> (i32, i32) {
    %c0_i32 = arith.constant 0 : i32
    %c0_i32_0 = arith.constant 0 : i32
    %c0_i32_1 = arith.constant 0 : i32
    return %c0_i32, %c0_i32_0 : i32, i32
  }
  func.func @transform_5(%arg0: i32) -> (i32, i32) {
    %c0_i32 = arith.constant 0 : i32
    %c0_i32_0 = arith.constant 0 : i32
    %c0_i32_1 = arith.constant 0 : i32
    return %c0_i32, %c0_i32_0 : i32, i32
  }
  func.func @transform_6(%arg0: i32) -> (i32, i32) {
    %c0_i32 = arith.constant 0 : i32
    %c0_i32_0 = arith.constant 0 : i32
    %c0_i32_1 = arith.constant 0 : i32
    return %c0_i32, %c0_i32_0 : i32, i32
  }
  func.func @transform_7(%arg0: i32) -> (i32, i32) {
    %c0_i32 = arith.constant 0 : i32
    %c0_i32_0 = arith.constant 0 : i32
    %c0_i32_1 = arith.constant 0 : i32
    return %c0_i32, %c0_i32_0 : i32, i32
  }
  func.func @transform_8(%arg0: i32) -> (i32, i32) {
    %c0_i32 = arith.constant 0 : i32
    %c0_i32_0 = arith.constant 0 : i32
    %c0_i32_1 = arith.constant 0 : i32
    return %c0_i32, %c0_i32_0 : i32, i32
  }
  func.func @transform_9(%arg0: i32) -> (i32, i32) {
    %c0_i32 = arith.constant 0 : i32
    %c0_i32_0 = arith.constant 0 : i32
    %c0_i32_1 = arith.constant 0 : i32
    return %c0_i32, %c0_i32_0 : i32, i32
  }
  func.func @transform_10(%arg0: i32) -> (i32, i32) {
    %c0_i32 = arith.constant 0 : i32
    %c0_i32_0 = arith.constant 0 : i32
    %c0_i32_1 = arith.constant 0 : i32
    return %c0_i32, %c0_i32_0 : i32, i32
  }
  func.func @transform_11(%arg0: i32) -> (i32, i32) {
    %c0_i32 = arith.constant 0 : i32
    %c0_i32_0 = arith.constant 0 : i32
    %c0_i32_1 = arith.constant 0 : i32
    return %c0_i32, %c0_i32_0 : i32, i32
  }
  func.func @transform_12(%arg0: i32) -> (i32, i32) {
    %c0_i32 = arith.constant 0 : i32
    %c0_i32_0 = arith.constant 0 : i32
    %c0_i32_1 = arith.constant 0 : i32
    return %c0_i32, %c0_i32_0 : i32, i32
  }
  func.func @transform_13(%arg0: i32) -> (i32, i32) {
    %c0_i32 = arith.constant 0 : i32
    %c0_i32_0 = arith.constant 0 : i32
    %c0_i32_1 = arith.constant 0 : i32
    return %c0_i32, %c0_i32_0 : i32, i32
  }
  func.func @transform_14(%arg0: i32) -> (i32, i32) {
    %c0_i32 = arith.constant 0 : i32
    %c0_i32_0 = arith.constant 0 : i32
    return %arg0, %c0_i32 : i32, i32
  }
}

</mosaic_0001>

<llo_original>
// kernel: net_forward.1
$region0: #{net_forward.1}
  #allocation0 [shape = 'u32[]', space=smem, size = 0x4, offset = 0x4, fixed_abs, tag = 'smem constant byte address 0x4 - core index']
  #allocation1 [shape = 'u32[144,128]{1,0:T(1,128)}', space=vmem, size = 0x12000, scoped, tag = 'internal scratch']
  #allocation2 [shape = 'f32[8,128,128]{2,1,0:T(8,128)}', space=vmem, size = 0x80000, scoped, tag = 'scratch operand']
  %s0 = inlined_call_operand.vmem [shape: bf16[8,256,136], index: 0, kind: input, shape index: {}]
  %s1 = inlined_call_operand.vmem [shape: bf16[256,256], index: 1, kind: input, shape index: {}]
  %s2 = inlined_call_operand.vmem [shape: bf16[136,128], index: 2, kind: input, shape index: {}]
  %s3 = inlined_call_operand.vmem [shape: bf16[128,128], index: 3, kind: input, shape index: {}]
  %s4 = inlined_call_operand.vmem [shape: f32[1,128], index: 4, kind: input, shape index: {}]
  %s5 = inlined_call_operand.vmem [shape: bf16[128,128], index: 5, kind: input, shape index: {}]
  %s6 = inlined_call_operand.vmem [shape: bf16[256,128], index: 6, kind: input, shape index: {}]
  %s7 = inlined_call_operand.vmem [shape: f32[1,128], index: 7, kind: input, shape index: {}]
  %s8 = inlined_call_operand.vmem [shape: bf16[128,128], index: 8, kind: input, shape index: {}]
  %s9 = inlined_call_operand.vmem [shape: f32[1,128], index: 9, kind: input, shape index: {}]
  %s10 = inlined_call_operand.vmem [shape: bf16[128,128], index: 10, kind: input, shape index: {}]
  %s11 = inlined_call_operand.vmem [shape: f32[1,128], index: 11, kind: input, shape index: {}]
  %s12 = inlined_call_operand.vmem [shape: bf16[128,128], index: 12, kind: input, shape index: {}]
  %s13 = inlined_call_operand.vmem [shape: f32[1,128], index: 13, kind: input, shape index: {}]
  %s14 = inlined_call_operand.vmem [shape: f32[256,128], index: 14, kind: output, shape index: {}]
  %s15 = sld [smem:[#allocation0]]
  $region127: #{net_forward.1} parent=0
    _
  %s17 = ssub.s32 1, %s15
  %s18 = scalar_select 0, %s17, %s15
  $region1: #{net_forward.1} parent=0
    #allocation3 [shape = 'u8[1048576]{0}', space=vmem, size = 0x100000, scoped, tag = 'input window, operand 0']
    loop: start=0, step=1, limit=4
    $region2: #{net_forward.1} parent=1 // loop_pre_header
      _
    $region3: #{net_forward.1} parent=1 // loop_header
      %s20 = sphi 0, %s24
      %p21 = scmp.ge.s32.totalorder %s20, 4
      %s30 = sphi 0, %s32
      %s33 = sphi 0, %s30
      %s34 = sphi 0, %s33
      %s50 = sphi 0, %s34
      %s56 = sphi 0, %s58
      %s59 = sphi 0, %s56
      %s60 = sphi 0, %s59
      %s76 = sphi 0, %s60
      %s80 = sphi 0, %s80
      %s82 = sphi 0, %s80
      %s83 = sphi 0, %s82
      %s97 = sphi 0, %s83
      %s101 = sphi 0, %s101
      %s103 = sphi 0, %s101
      %s104 = sphi 0, %s103
      %s118 = sphi 0, %s104
      %s122 = sphi 0, %s122
      %s124 = sphi 0, %s122
      %s125 = sphi 0, %s124
      %s139 = sphi 0, %s125
      %s143 = sphi 0, %s143
      %s145 = sphi 0, %s143
      %s146 = sphi 0, %s145
      %s160 = sphi 0, %s146
      %s164 = sphi 0, %s164
      %s166 = sphi 0, %s164
      %s167 = sphi 0, %s166
      %s181 = sphi 0, %s167
      %s185 = sphi 0, %s185
      %s187 = sphi 0, %s185
      %s188 = sphi 0, %s187
      %s202 = sphi 0, %s188
      %s206 = sphi 0, %s206
      %s208 = sphi 0, %s206
      %s209 = sphi 0, %s208
      %s223 = sphi 0, %s209
      %s227 = sphi 0, %s227
      %s229 = sphi 0, %s227
      %s230 = sphi 0, %s229
      %s244 = sphi 0, %s230
      %s248 = sphi 0, %s248
      %s250 = sphi 0, %s248
      %s251 = sphi 0, %s250
      %s265 = sphi 0, %s251
      %s269 = sphi 0, %s269
      %s271 = sphi 0, %s269
      %s272 = sphi 0, %s271
      %s286 = sphi 0, %s272
      %s290 = sphi 0, %s290
      %s292 = sphi 0, %s290
      %s293 = sphi 0, %s292
      %s307 = sphi 0, %s293
      %s311 = sphi 0, %s311
      %s313 = sphi 0, %s311
      %s314 = sphi 0, %s313
      %s328 = sphi 0, %s314
      %s334 = sphi 0, %s336
      %s337 = sphi 0, %s334
      %s338 = sphi 0, %s337
      %s354 = sphi 0, %s338
    $region4: #{net_forward.1} parent=1 // loop_header_branch
      %23 = sbr.rel (%p21) target = $region8
    $region5: #{net_forward.1} parent=1 // loop_body
      %s25 = ssub.s32 %s20, 1
      %s26 = ssub.s32 %s20, 2
      %s27 = sadd.s32 %s20, 1
      %s28 = ssub.s32 %s20, %s27
      %p29 = scmp.eq.s32.totalorder %s28, 0
      %s31 = sadd.s32 %s30, 1
      %s32 = scalar_select %p29, %s30, %s31
      %p35 = pneg %p29
      %p36 = scmp.eq.s32.totalorder %s20, 1
      %p37 = por %p35, %p36
      %p38 = scmp.ne.s32.totalorder %s30, %s33
      %p39 = scmp.eq.s32.totalorder %s20, 0
      %p40 = por %p38, %p39
      %p41 = scmp.ne.s32.totalorder %s30, %s33
      %p42 = scmp.eq.s32.totalorder %s25, 1
      %p43 = por %p41, %p42
      %p44 = scmp.ne.s32.totalorder %s33, %s34
      %p45 = scmp.eq.s32.totalorder %s25, 0
      %p46 = por %p44, %p45
      %p47 = scmp.ne.s32.totalorder %s33, %s34
      %p48 = scmp.eq.s32.totalorder %s26, 1
      %p49 = por %p47, %p48
      %p51 = scmp.ne.s32.totalorder %s34, %s50
      %p52 = scmp.eq.s32.totalorder %s26, 0
      %p53 = por %p51, %p52
      %s54 = ssub.s32 %s20, %s27
      %p55 = scmp.eq.s32.totalorder %s54, 0
      %s57 = sadd.s32 %s56, 1
      %s58 = scalar_select %p55, %s56, %s57
      %p61 = pneg %p55
      %p62 = scmp.eq.s32.totalorder %s20, 1
      %p63 = por %p61, %p62
      %p64 = scmp.ne.s32.totalorder %s56, %s59
      %p65 = scmp.eq.s32.totalorder %s20, 0
      %p66 = por %p64, %p65
      %p67 = scmp.ne.s32.totalorder %s56, %s59
      %p68 = scmp.eq.s32.totalorder %s25, 1
      %p69 = por %p67, %p68
      %p70 = scmp.ne.s32.totalorder %s59, %s60
      %p71 = scmp.eq.s32.totalorder %s25, 0
      %p72 = por %p70, %p71
      %p73 = scmp.ne.s32.totalorder %s59, %s60
      %p74 = scmp.eq.s32.totalorder %s26, 1
      %p75 = por %p73, %p74
      %p77 = scmp.ne.s32.totalorder %s60, %s76
      %p78 = scmp.eq.s32.totalorder %s26, 0
      %p79 = por %p77, %p78
      %s81 = sadd.s32 %s80, 1
      %p84 = scmp.eq.s32.totalorder %s20, 1
      %p85 = scmp.ne.s32.totalorder %s80, %s82
      %p86 = scmp.eq.s32.totalorder %s20, 0
      %p87 = por %p85, %p86
      %p88 = scmp.ne.s32.totalorder %s80, %s82
      %p89 = scmp.eq.s32.totalorder %s25, 1
      %p90 = por %p88, %p89
      %p91 = scmp.ne.s32.totalorder %s82, %s83
      %p92 = scmp.eq.s32.totalorder %s25, 0
      %p93 = por %p91, %p92
      %p94 = scmp.ne.s32.totalorder %s82, %s83
      %p95 = scmp.eq.s32.totalorder %s26, 1
      %p96 = por %p94, %p95
      %p98 = scmp.ne.s32.totalorder %s83, %s97
      %p99 = scmp.eq.s32.totalorder %s26, 0
      %p100 = por %p98, %p99
      %s102 = sadd.s32 %s101, 1
      %p105 = scmp.eq.s32.totalorder %s20, 1
      %p106 = scmp.ne.s32.totalorder %s101, %s103
      %p107 = scmp.eq.s32.totalorder %s20, 0
      %p108 = por %p106, %p107
      %p109 = scmp.ne.s32.totalorder %s101, %s103
      %p110 = scmp.eq.s32.totalorder %s25, 1
      %p111 = por %p109, %p110
      %p112 = scmp.ne.s32.totalorder %s103, %s104
      %p113 = scmp.eq.s32.totalorder %s25, 0
      %p114 = por %p112, %p113
      %p115 = scmp.ne.s32.totalorder %s103, %s104
      %p116 = scmp.eq.s32.totalorder %s26, 1
      %p117 = por %p115, %p116
      %p119 = scmp.ne.s32.totalorder %s104, %s118
      %p120 = scmp.eq.s32.totalorder %s26, 0
      %p121 = por %p119, %p120
      %s123 = sadd.s32 %s122, 1
      %p126 = scmp.eq.s32.totalorder %s20, 1
      %p127 = scmp.ne.s32.totalorder %s122, %s124
      %p128 = scmp.eq.s32.totalorder %s20, 0
      %p129 = por %p127, %p128
      %p130 = scmp.ne.s32.totalorder %s122, %s124
      %p131 = scmp.eq.s32.totalorder %s25, 1
      %p132 = por %p130, %p131
      %p133 = scmp.ne.s32.totalorder %s124, %s125
      %p134 = scmp.eq.s32.totalorder %s25, 0
      %p135 = por %p133, %p134
      %p136 = scmp.ne.s32.totalorder %s124, %s125
      %p137 = scmp.eq.s32.totalorder %s26, 1
      %p138 = por %p136, %p137
      %p140 = scmp.ne.s32.totalorder %s125, %s139
      %p141 = scmp.eq.s32.totalorder %s26, 0
      %p142 = por %p140, %p141
      %s144 = sadd.s32 %s143, 1
      %p147 = scmp.eq.s32.totalorder %s20, 1
      %p148 = scmp.ne.s32.totalorder %s143, %s145
      %p149 = scmp.eq.s32.totalorder %s20, 0
      %p150 = por %p148, %p149
      %p151 = scmp.ne.s32.totalorder %s143, %s145
      %p152 = scmp.eq.s32.totalorder %s25, 1
      %p153 = por %p151, %p152
      %p154 = scmp.ne.s32.totalorder %s145, %s146
      %p155 = scmp.eq.s32.totalorder %s25, 0
      %p156 = por %p154, %p155
      %p157 = scmp.ne.s32.totalorder %s145, %s146
      %p158 = scmp.eq.s32.totalorder %s26, 1
      %p159 = por %p157, %p158
      %p161 = scmp.ne.s32.totalorder %s146, %s160
      %p162 = scmp.eq.s32.totalorder %s26, 0
      %p163 = por %p161, %p162
      %s165 = sadd.s32 %s164, 1
      %p168 = scmp.eq.s32.totalorder %s20, 1
      %p169 = scmp.ne.s32.totalorder %s164, %s166
      %p170 = scmp.eq.s32.totalorder %s20, 0
      %p171 = por %p169, %p170
      %p172 = scmp.ne.s32.totalorder %s164, %s166
      %p173 = scmp.eq.s32.totalorder %s25, 1
      %p174 = por %p172, %p173
      %p175 = scmp.ne.s32.totalorder %s166, %s167
      %p176 = scmp.eq.s32.totalorder %s25, 0
      %p177 = por %p175, %p176
      %p178 = scmp.ne.s32.totalorder %s166, %s167
      %p179 = scmp.eq.s32.totalorder %s26, 1
      %p180 = por %p178, %p179
      %p182 = scmp.ne.s32.totalorder %s167, %s181
      %p183 = scmp.eq.s32.totalorder %s26, 0
      %p184 = por %p182, %p183
      %s186 = sadd.s32 %s185, 1
      %p189 = scmp.eq.s32.totalorder %s20, 1
      %p190 = scmp.ne.s32.totalorder %s185, %s187
      %p191 = scmp.eq.s32.totalorder %s20, 0
      %p192 = por %p190, %p191
      %p193 = scmp.ne.s32.totalorder %s185, %s187
      %p194 = scmp.eq.s32.totalorder %s25, 1
      %p195 = por %p193, %p194
      %p196 = scmp.ne.s32.totalorder %s187, %s188
      %p197 = scmp.eq.s32.totalorder %s25, 0
      %p198 = por %p196, %p197
      %p199 = scmp.ne.s32.totalorder %s187, %s188
      %p200 = scmp.eq.s32.totalorder %s26, 1
      %p201 = por %p199, %p200
      %p203 = scmp.ne.s32.totalorder %s188, %s202
      %p204 = scmp.eq.s32.totalorder %s26, 0
      %p205 = por %p203, %p204
      %s207 = sadd.s32 %s206, 1
      %p210 = scmp.eq.s32.totalorder %s20, 1
      %p211 = scmp.ne.s32.totalorder %s206, %s208
      %p212 = scmp.eq.s32.totalorder %s20, 0
      %p213 = por %p211, %p212
      %p214 = scmp.ne.s32.totalorder %s206, %s208
      %p215 = scmp.eq.s32.totalorder %s25, 1
      %p216 = por %p214, %p215
      %p217 = scmp.ne.s32.totalorder %s208, %s209
      %p218 = scmp.eq.s32.totalorder %s25, 0
      %p219 = por %p217, %p218
      %p220 = scmp.ne.s32.totalorder %s208, %s209
      %p221 = scmp.eq.s32.totalorder %s26, 1
      %p222 = por %p220, %p221
      %p224 = scmp.ne.s32.totalorder %s209, %s223
      %p225 = scmp.eq.s32.totalorder %s26, 0
      %p226 = por %p224, %p225
      %s228 = sadd.s32 %s227, 1
      %p231 = scmp.eq.s32.totalorder %s20, 1
      %p232 = scmp.ne.s32.totalorder %s227, %s229
      %p233 = scmp.eq.s32.totalorder %s20, 0
      %p234 = por %p232, %p233
      %p235 = scmp.ne.s32.totalorder %s227, %s229
      %p236 = scmp.eq.s32.totalorder %s25, 1
      %p237 = por %p235, %p236
      %p238 = scmp.ne.s32.totalorder %s229, %s230
      %p239 = scmp.eq.s32.totalorder %s25, 0
      %p240 = por %p238, %p239
      %p241 = scmp.ne.s32.totalorder %s229, %s230
      %p242 = scmp.eq.s32.totalorder %s26, 1
      %p243 = por %p241, %p242
      %p245 = scmp.ne.s32.totalorder %s230, %s244
      %p246 = scmp.eq.s32.totalorder %s26, 0
      %p247 = por %p245, %p246
      %s249 = sadd.s32 %s248, 1
      %p252 = scmp.eq.s32.totalorder %s20, 1
      %p253 = scmp.ne.s32.totalorder %s248, %s250
      %p254 = scmp.eq.s32.totalorder %s20, 0
      %p255 = por %p253, %p254
      %p256 = scmp.ne.s32.totalorder %s248, %s250
      %p257 = scmp.eq.s32.totalorder %s25, 1
      %p258 = por %p256, %p257
      %p259 = scmp.ne.s32.totalorder %s250, %s251
      %p260 = scmp.eq.s32.totalorder %s25, 0
      %p261 = por %p259, %p260
      %p262 = scmp.ne.s32.totalorder %s250, %s251
      %p263 = scmp.eq.s32.totalorder %s26, 1
      %p264 = por %p262, %p263
      %p266 = scmp.ne.s32.totalorder %s251, %s265
      %p267 = scmp.eq.s32.totalorder %s26, 0
      %p268 = por %p266, %p267
      %s270 = sadd.s32 %s269, 1
      %p273 = scmp.eq.s32.totalorder %s20, 1
      %p274 = scmp.ne.s32.totalorder %s269, %s271
      %p275 = scmp.eq.s32.totalorder %s20, 0
      %p276 = por %p274, %p275
      %p277 = scmp.ne.s32.totalorder %s269, %s271
      %p278 = scmp.eq.s32.totalorder %s25, 1
      %p279 = por %p277, %p278
      %p280 = scmp.ne.s32.totalorder %s271, %s272
      %p281 = scmp.eq.s32.totalorder %s25, 0
      %p282 = por %p280, %p281
      %p283 = scmp.ne.s32.totalorder %s271, %s272
      %p284 = scmp.eq.s32.totalorder %s26, 1
      %p285 = por %p283, %p284
      %p287 = scmp.ne.s32.totalorder %s272, %s286
      %p288 = scmp.eq.s32.totalorder %s26, 0
      %p289 = por %p287, %p288
      %s291 = sadd.s32 %s290, 1
      %p294 = scmp.eq.s32.totalorder %s20, 1
      %p295 = scmp.ne.s32.totalorder %s290, %s292
      %p296 = scmp.eq.s32.totalorder %s20, 0
      %p297 = por %p295, %p296
      %p298 = scmp.ne.s32.totalorder %s290, %s292
      %p299 = scmp.eq.s32.totalorder %s25, 1
      %p300 = por %p298, %p299
      %p301 = scmp.ne.s32.totalorder %s292, %s293
      %p302 = scmp.eq.s32.totalorder %s25, 0
      %p303 = por %p301, %p302
      %p304 = scmp.ne.s32.totalorder %s292, %s293
      %p305 = scmp.eq.s32.totalorder %s26, 1
      %p306 = por %p304, %p305
      %p308 = scmp.ne.s32.totalorder %s293, %s307
      %p309 = scmp.eq.s32.totalorder %s26, 0
      %p310 = por %p308, %p309
      %s312 = sadd.s32 %s311, 1
      %p315 = scmp.eq.s32.totalorder %s20, 1
      %p316 = scmp.ne.s32.totalorder %s311, %s313
      %p317 = scmp.eq.s32.totalorder %s20, 0
      %p318 = por %p316, %p317
      %p319 = scmp.ne.s32.totalorder %s311, %s313
      %p320 = scmp.eq.s32.totalorder %s25, 1
      %p321 = por %p319, %p320
      %p322 = scmp.ne.s32.totalorder %s313, %s314
      %p323 = scmp.eq.s32.totalorder %s25, 0
      %p324 = por %p322, %p323
      %p325 = scmp.ne.s32.totalorder %s313, %s314
      %p326 = scmp.eq.s32.totalorder %s26, 1
      %p327 = por %p325, %p326
      %p329 = scmp.ne.s32.totalorder %s314, %s328
      %p330 = scmp.eq.s32.totalorder %s26, 0
      %p331 = por %p329, %p330
      %s332 = ssub.s32 %s20, %s27
      %p333 = scmp.eq.s32.totalorder %s332, 0
      %s335 = sadd.s32 %s334, 1
      %s336 = scalar_select %p333, %s334, %s335
      %p339 = pneg %p333
      %p340 = scmp.eq.s32.totalorder %s20, 1
      %p341 = por %p339, %p340
      %p342 = scmp.ne.s32.totalorder %s334, %s337
      %p343 = scmp.eq.s32.totalorder %s20, 0
      %p344 = por %p342, %p343
      %p345 = scmp.ne.s32.totalorder %s334, %s337
      %p346 = scmp.eq.s32.totalorder %s25, 1
      %p347 = por %p345, %p346
      %p348 = scmp.ne.s32.totalorder %s337, %s338
      %p349 = scmp.eq.s32.totalorder %s25, 0
      %p350 = por %p348, %p349
      %p351 = scmp.ne.s32.totalorder %s337, %s338
      %p352 = scmp.eq.s32.totalorder %s26, 1
      %p353 = por %p351, %p352
      %p355 = scmp.ne.s32.totalorder %s338, %s354
      %p356 = scmp.eq.s32.totalorder %s26, 0
      %p357 = por %p355, %p356
      %p358 = scmp.le.s32.totalorder 1, %s20
      %p359 = scmp.lt.s32.totalorder %s20, 3
      %p360 = pnand %p358, %p359
      %p361 = pneg %p360
      // Predicated region
      $region9: #{net_forward.1} parent=5 // pred_check
        _
      $region10: #{net_forward.1} parent=5 // pred_check_branch
        %363 = sbr.rel (%p360) target = $region12
      $region11: #{net_forward.1} parent=5 // pred_region
        %s364 = ssub.s32 %s20, 1
        // Predicated region
        $region13: #{net_forward.1} parent=11 // pred_check
          %p365 = pneg %p93
        $region14: #{net_forward.1} parent=11 // pred_check_branch
          %367 = sbr.rel (%p365) target = $region16
        $region15: #{net_forward.1} parent=11 // pred_region
          _
        $region16: #{net_forward.1} parent=11 // pred_fallthru
          _
        // Predicated region
        $region17: #{net_forward.1} parent=11 // pred_check
          %p368 = pneg %p114
        $region18: #{net_forward.1} parent=11 // pred_check_branch
          %370 = sbr.rel (%p368) target = $region20
        $region19: #{net_forward.1} parent=11 // pred_region
          _
        $region20: #{net_forward.1} parent=11 // pred_fallthru
          _
        // Predicated region
        $region21: #{net_forward.1} parent=11 // pred_check
          %p371 = pneg %p135
        $region22: #{net_forward.1} parent=11 // pred_check_branch
          %373 = sbr.rel (%p371) target = $region24
        $region23: #{net_forward.1} parent=11 // pred_region
          _
        $region24: #{net_forward.1} parent=11 // pred_fallthru
          _
        // Predicated region
        $region25: #{net_forward.1} parent=11 // pred_check
          %p374 = pneg %p156
        $region26: #{net_forward.1} parent=11 // pred_check_branch
          %376 = sbr.rel (%p374) target = $region28
        $region27: #{net_forward.1} parent=11 // pred_region
          _
        $region28: #{net_forward.1} parent=11 // pred_fallthru
          _
        // Predicated region
        $region29: #{net_forward.1} parent=11 // pred_check
          %p377 = pneg %p177
        $region30: #{net_forward.1} parent=11 // pred_check_branch
          %379 = sbr.rel (%p377) target = $region32
        $region31: #{net_forward.1} parent=11 // pred_region
          _
        $region32: #{net_forward.1} parent=11 // pred_fallthru
          _
        // Predicated region
        $region33: #{net_forward.1} parent=11 // pred_check
          %p380 = pneg %p198
        $region34: #{net_forward.1} parent=11 // pred_check_branch
          %382 = sbr.rel (%p380) target = $region36
        $region35: #{net_forward.1} parent=11 // pred_region
          _
        $region36: #{net_forward.1} parent=11 // pred_fallthru
          _
        // Predicated region
        $region37: #{net_forward.1} parent=11 // pred_check
          %p383 = pneg %p219
        $region38: #{net_forward.1} parent=11 // pred_check_branch
          %385 = sbr.rel (%p383) target = $region40
        $region39: #{net_forward.1} parent=11 // pred_region
          _
        $region40: #{net_forward.1} parent=11 // pred_fallthru
          _
        // Predicated region
        $region41: #{net_forward.1} parent=11 // pred_check
          %p386 = pneg %p240
        $region42: #{net_forward.1} parent=11 // pred_check_branch
          %388 = sbr.rel (%p386) target = $region44
        $region43: #{net_forward.1} parent=11 // pred_region
          _
        $region44: #{net_forward.1} parent=11 // pred_fallthru
          _
        // Predicated region
        $region45: #{net_forward.1} parent=11 // pred_check
          %p389 = pneg %p261
        $region46: #{net_forward.1} parent=11 // pred_check_branch
          %391 = sbr.rel (%p389) target = $region48
        $region47: #{net_forward.1} parent=11 // pred_region
          _
        $region48: #{net_forward.1} parent=11 // pred_fallthru
          _
        // Predicated region
        $region49: #{net_forward.1} parent=11 // pred_check
          %p392 = pneg %p282
        $region50: #{net_forward.1} parent=11 // pred_check_branch
          %394 = sbr.rel (%p392) target = $region52
        $region51: #{net_forward.1} parent=11 // pred_region
          _
        $region52: #{net_forward.1} parent=11 // pred_fallthru
          _
        // Predicated region
        $region53: #{net_forward.1} parent=11 // pred_check
          %p395 = pneg %p303
        $region54: #{net_forward.1} parent=11 // pred_check_branch
          %397 = sbr.rel (%p395) target = $region56
        $region55: #{net_forward.1} parent=11 // pred_region
          _
        $region56: #{net_forward.1} parent=11 // pred_fallthru
          _
        // Predicated region
        $region57: #{net_forward.1} parent=11 // pred_check
          %p398 = pneg %p324
        $region58: #{net_forward.1} parent=11 // pred_check_branch
          %400 = sbr.rel (%p398) target = $region60
        $region59: #{net_forward.1} parent=11 // pred_region
          _
        $region60: #{net_forward.1} parent=11 // pred_fallthru
          _
      $region12: #{net_forward.1} parent=5 // pred_fallthru
        _
      %p401 = scmp.lt.s32.totalorder %s20, 2
      // Predicated region
      $region61: #{net_forward.1} parent=5 // pred_check
        %p402 = pneg %p401
      $region62: #{net_forward.1} parent=5 // pred_check_branch
        %404 = sbr.rel (%p402) target = $region64
      $region63: #{net_forward.1} parent=5 // pred_region
        // Predicated region
        $region65: #{net_forward.1} parent=63 // pred_check
          %p405 = pneg %p40
        $region66: #{net_forward.1} parent=63 // pred_check_branch
          %407 = sbr.rel (%p405) target = $region68
        $region67: #{net_forward.1} parent=63 // pred_region
          %s408 = sand.u32 %s30, 1
          %s409 = sand.u32 %s30, 1
          %s410 = smul.addr %s409, 1024
          %s411 = scalar_lea.vmem [#allocation3], %s410
          %s412 = smul.u32 16, %s20
          %s413 = smul.addr %s412, 2
          %s414 = smul.addr %s413, 4
          %s415 = scalar_lea.vmem %s0, %s414
          // Predicated region
          $region69: #{net_forward.1} parent=67 // pred_check
            _
          $region70: #{net_forward.1} parent=67 // pred_check_branch
            %417 = sbr.rel (0) target = $region72
          $region71: #{net_forward.1} parent=67 // pred_region
            // Predicated region
            $region73: #{net_forward.1} parent=71 // pred_check
              _
            $region74: #{net_forward.1} parent=71 // pred_check_branch
              %419 = sbr.rel (0) target = $region76
            $region75: #{net_forward.1} parent=71 // pred_region
              // Predicated region
              $region88: #{net_forward.1} parent=75 // pred_check
                _
              $region89: #{net_forward.1} parent=75 // pred_check_branch
                %688 = sbr.rel (0) target = $region91
              $region90: #{net_forward.1} parent=75 // pred_region
                loop: start=0, step=1, limit=1
                $region92: #{net_forward.1} parent=90 // loop_pre_header
                  _
                $region93: #{net_forward.1} parent=90 // loop_header
                  %s690 = sphi 0, %s694
                  %p691 = scmp.ge.s32.totalorder %s690, 1
                  %s695 = sphi %s415, %s415
                  %s696 = sphi %s411, %s411
                $region94: #{net_forward.1} parent=90 // loop_header_branch
                  %693 = sbr.rel (%p691) target = $region98
                $region95: #{net_forward.1} parent=90 // loop_body
                  %v697 = vld [vmem:[%s695] sm:$0xff]
                  %698 = vst [vmem:[%s696] sm:$0xff] %v697
                  %v699 = vld [vmem:[%s695 + $0x8] sm:$0xff]
                  %700 = vst [vmem:[%s696 + $0x8] sm:$0xff] %v699
                  %v701 = vld [vmem:[%s695 + $0x10] sm:$0xff]
                  %702 = vst [vmem:[%s696 + $0x10] sm:$0xff] %v701
                  %v703 = vld [vmem:[%s695 + $0x18] sm:$0xff]
                  %704 = vst [vmem:[%s696 + $0x18] sm:$0xff] %v703
                  %v705 = vld [vmem:[%s695 + $0x20] sm:$0xff]
                  %706 = vst [vmem:[%s696 + $0x20] sm:$0xff] %v705
                  %v707 = vld [vmem:[%s695 + $0x28] sm:$0xff]
                  %708 = vst [vmem:[%s696 + $0x28] sm:$0xff] %v707
                  %v709 = vld [vmem:[%s695 + $0x30] sm:$0xff]
                  %710 = vst [vmem:[%s696 + $0x30] sm:$0xff] %v709
                  %v711 = vld [vmem:[%s695 + $0x38] sm:$0xff]
                  %712 = vst [vmem:[%s696 + $0x38] sm:$0xff] %v711
                  %v713 = vld [vmem:[%s695 + $0x40] sm:$0xff]
                  %714 = vst [vmem:[%s696 + $0x40] sm:$0xff] %v713
                  %v715 = vld [vmem:[%s695 + $0x48] sm:$0xff]
                  %716 = vst [vmem:[%s696 + $0x48] sm:$0xff] %v715
                  %v717 = vld [vmem:[%s695 + $0x50] sm:$0xff]
                  %718 = vst [vmem:[%s696 + $0x50] sm:$0xff] %v717
                  %v719 = vld [vmem:[%s695 + $0x58] sm:$0xff]
                  %720 = vst [vmem:[%s696 + $0x58] sm:$0xff] %v719
                  %v721 = vld [vmem:[%s695 + $0x60] sm:$0xff]
                  %722 = vst [vmem:[%s696 + $0x60] sm:$0xff] %v721
                  %v723 = vld [vmem:[%s695 + $0x68] sm:$0xff]
                  %724 = vst [vmem:[%s696 + $0x68] sm:$0xff] %v723
                  %v725 = vld [vmem:[%s695 + $0x70] sm:$0xff]
                  %726 = vst [vmem:[%s696 + $0x70] sm:$0xff] %v725
                  %v727 = vld [vmem:[%s695 + $0x78] sm:$0xff]
                  %728 = vst [vmem:[%s696 + $0x78] sm:$0xff] %v727
                  %v729 = vld [vmem:[%s695 + $0x100] sm:$0xff]
                  %730 = vst [vmem:[%s696 + $0x80] sm:$0xff] %v729
                  %v731 = vld [vmem:[%s695 + $0x108] sm:$0xff]
                  %732 = vst [vmem:[%s696 + $0x88] sm:$0xff] %v731
                  %v733 = vld [vmem:[%s695 + $0x110] sm:$0xff]
                  %734 = vst [vmem:[%s696 + $0x90] sm:$0xff] %v733
                  %v735 = vld [vmem:[%s695 + $0x118] sm:$0xff]
                  %736 = vst [vmem:[%s696 + $0x98] sm:$0xff] %v735
                  %v737 = vld [vmem:[%s695 + $0x120] sm:$0xff]
                  %738 = vst [vmem:[%s696 + $0xa0] sm:$0xff] %v737
                  %v739 = vld [vmem:[%s695 + $0x128] sm:$0xff]
                  %740 = vst [vmem:[%s696 + $0xa8] sm:$0xff] %v739
                  %v741 = vld [vmem:[%s695 + $0x130] sm:$0xff]
                  %742 = vst [vmem:[%s696 + $0xb0] sm:$0xff] %v741
                  %v743 = vld [vmem:[%s695 + $0x138] sm:$0xff]
                  %744 = vst [vmem:[%s696 + $0xb8] sm:$0xff] %v743
                  %v745 = vld [vmem:[%s695 + $0x140] sm:$0xff]
                  %746 = vst [vmem:[%s696 + $0xc0] sm:$0xff] %v745
                  %v747 = vld [vmem:[%s695 + $0x148] sm:$0xff]
                  %748 = vst [vmem:[%s696 + $0xc8] sm:$0xff] %v747
                  %v749 = vld [vmem:[%s695 + $0x150] sm:$0xff]
                  %750 = vst [vmem:[%s696 + $0xd0] sm:$0xff] %v749
                  %v751 = vld [vmem:[%s695 + $0x158] sm:$0xff]
                  %752 = vst [vmem:[%s696 + $0xd8] sm:$0xff] %v751
                  %v753 = vld [vmem:[%s695 + $0x160] sm:$0xff]
                  %754 = vst [vmem:[%s696 + $0xe0] sm:$0xff] %v753
                  %v755 = vld [vmem:[%s695 + $0x168] sm:$0xff]
                  %756 = vst [vmem:[%s696 + $0xe8] sm:$0xff] %v755
                  %v757 = vld [vmem:[%s695 + $0x170] sm:$0xff]
                  %758 = vst [vmem:[%s696 + $0xf0] sm:$0xff] %v757
                  %v759 = vld [vmem:[%s695 + $0x178] sm:$0xff]
                  %760 = vst [vmem:[%s696 + $0xf8] sm:$0xff] %v759
                  %v761 = vld [vmem:[%s695 + $0x200] sm:$0xff]
                  %762 = vst [vmem:[%s696 + $0x100] sm:$0xff] %v761
                  %v763 = vld [vmem:[%s695 + $0x208] sm:$0xff]
                  %764 = vst [vmem:[%s696 + $0x108] sm:$0xff] %v763
                  %v765 = vld [vmem:[%s695 + $0x210] sm:$0xff]
                  %766 = vst [vmem:[%s696 + $0x110] sm:$0xff] %v765
                  %v767 = vld [vmem:[%s695 + $0x218] sm:$0xff]
                  %768 = vst [vmem:[%s696 + $0x118] sm:$0xff] %v767
                  %v769 = vld [vmem:[%s695 + $0x220] sm:$0xff]
                  %770 = vst [vmem:[%s696 + $0x120] sm:$0xff] %v769
                  %v771 = vld [vmem:[%s695 + $0x228] sm:$0xff]
                  %772 = vst [vmem:[%s696 + $0x128] sm:$0xff] %v771
                  %v773 = vld [vmem:[%s695 + $0x230] sm:$0xff]
                  %774 = vst [vmem:[%s696 + $0x130] sm:$0xff] %v773
                  %v775 = vld [vmem:[%s695 + $0x238] sm:$0xff]
                  %776 = vst [vmem:[%s696 + $0x138] sm:$0xff] %v775
                  %v777 = vld [vmem:[%s695 + $0x240] sm:$0xff]
                  %778 = vst [vmem:[%s696 + $0x140] sm:$0xff] %v777
                  %v779 = vld [vmem:[%s695 + $0x248] sm:$0xff]
                  %780 = vst [vmem:[%s696 + $0x148] sm:$0xff] %v779
                  %v781 = vld [vmem:[%s695 + $0x250] sm:$0xff]
                  %782 = vst [vmem:[%s696 + $0x150] sm:$0xff] %v781
                  %v783 = vld [vmem:[%s695 + $0x258] sm:$0xff]
                  %784 = vst [vmem:[%s696 + $0x158] sm:$0xff] %v783
                  %v785 = vld [vmem:[%s695 + $0x260] sm:$0xff]
                  %786 = vst [vmem:[%s696 + $0x160] sm:$0xff] %v785
                  %v787 = vld [vmem:[%s695 + $0x268] sm:$0xff]
                  %788 = vst [vmem:[%s696 + $0x168] sm:$0xff] %v787
                  %v789 = vld [vmem:[%s695 + $0x270] sm:$0xff]
                  %790 = vst [vmem:[%s696 + $0x170] sm:$0xff] %v789
                  %v791 = vld [vmem:[%s695 + $0x278] sm:$0xff]
                  %792 = vst [vmem:[%s696 + $0x178] sm:$0xff] %v791
                  %v793 = vld [vmem:[%s695 + $0x300] sm:$0xff]
                  %794 = vst [vmem:[%s696 + $0x180] sm:$0xff] %v793
                  %v795 = vld [vmem:[%s695 + $0x308] sm:$0xff]
                  %796 = vst [vmem:[%s696 + $0x188] sm:$0xff] %v795
                  %v797 = vld [vmem:[%s695 + $0x310] sm:$0xff]
                  %798 = vst [vmem:[%s696 + $0x190] sm:$0xff] %v797
                  %v799 = vld [vmem:[%s695 + $0x318] sm:$0xff]
                  %800 = vst [vmem:[%s696 + $0x198] sm:$0xff] %v799
                  %v801 = vld [vmem:[%s695 + $0x320] sm:$0xff]
                  %802 = vst [vmem:[%s696 + $0x1a0] sm:$0xff] %v801
                  %v803 = vld [vmem:[%s695 + $0x328] sm:$0xff]
                  %804 = vst [vmem:[%s696 + $0x1a8] sm:$0xff] %v803
                  %v805 = vld [vmem:[%s695 + $0x330] sm:$0xff]
                  %806 = vst [vmem:[%s696 + $0x1b0] sm:$0xff] %v805
                  %v807 = vld [vmem:[%s695 + $0x338] sm:$0xff]
                  %808 = vst [vmem:[%s696 + $0x1b8] sm:$0xff] %v807
                  %v809 = vld [vmem:[%s695 + $0x340] sm:$0xff]
                  %810 = vst [vmem:[%s696 + $0x1c0] sm:$0xff] %v809
                  %v811 = vld [vmem:[%s695 + $0x348] sm:$0xff]
                  %812 = vst [vmem:[%s696 + $0x1c8] sm:$0xff] %v811
                  %v813 = vld [vmem:[%s695 + $0x350] sm:$0xff]
                  %814 = vst [vmem:[%s696 + $0x1d0] sm:$0xff] %v813
                  %v815 = vld [vmem:[%s695 + $0x358] sm:$0xff]
                  %816 = vst [vmem:[%s696 + $0x1d8] sm:$0xff] %v815
                  %v817 = vld [vmem:[%s695 + $0x360] sm:$0xff]
                  %818 = vst [vmem:[%s696 + $0x1e0] sm:$0xff] %v817
                  %v819 = vld [vmem:[%s695 + $0x368] sm:$0xff]
                  %820 = vst [vmem:[%s696 + $0x1e8] sm:$0xff] %v819
                  %v821 = vld [vmem:[%s695 + $0x370] sm:$0xff]
                  %822 = vst [vmem:[%s696 + $0x1f0] sm:$0xff] %v821
                  %v823 = vld [vmem:[%s695 + $0x378] sm:$0xff]
                  %824 = vst [vmem:[%s696 + $0x1f8] sm:$0xff] %v823
                  %v825 = vld [vmem:[%s695 + $0x400] sm:$0xff]
                  %826 = vst [vmem:[%s696 + $0x200] sm:$0xff] %v825
                  %v827 = vld [vmem:[%s695 + $0x408] sm:$0xff]
                  %828 = vst [vmem:[%s696 + $0x208] sm:$0xff] %v827
                  %v829 = vld [vmem:[%s695 + $0x410] sm:$0xff]
                  %830 = vst [vmem:[%s696 + $0x210] sm:$0xff] %v829
                  %v831 = vld [vmem:[%s695 + $0x418] sm:$0xff]
                  %832 = vst [vmem:[%s696 + $0x218] sm:$0xff] %v831
                  %v833 = vld [vmem:[%s695 + $0x420] sm:$0xff]
                  %834 = vst [vmem:[%s696 + $0x220] sm:$0xff] %v833
                  %v835 = vld [vmem:[%s695 + $0x428] sm:$0xff]
                  %836 = vst [vmem:[%s696 + $0x228] sm:$0xff] %v835
                  %v837 = vld [vmem:[%s695 + $0x430] sm:$0xff]
                  %838 = vst [vmem:[%s696 + $0x230] sm:$0xff] %v837
                  %v839 = vld [vmem:[%s695 + $0x438] sm:$0xff]
                  %840 = vst [vmem:[%s696 + $0x238] sm:$0xff] %v839
                  %v841 = vld [vmem:[%s695 + $0x440] sm:$0xff]
                  %842 = vst [vmem:[%s696 + $0x240] sm:$0xff] %v841
                  %v843 = vld [vmem:[%s695 + $0x448] sm:$0xff]
                  %844 = vst [vmem:[%s696 + $0x248] sm:$0xff] %v843
                  %v845 = vld [vmem:[%s695 + $0x450] sm:$0xff]
                  %846 = vst [vmem:[%s696 + $0x250] sm:$0xff] %v845
                  %v847 = vld [vmem:[%s695 + $0x458] sm:$0xff]
                  %848 = vst [vmem:[%s696 + $0x258] sm:$0xff] %v847
                  %v849 = vld [vmem:[%s695 + $0x460] sm:$0xff]
                  %850 = vst [vmem:[%s696 + $0x260] sm:$0xff] %v849
                  %v851 = vld [vmem:[%s695 + $0x468] sm:$0xff]
                  %852 = vst [vmem:[%s696 + $0x268] sm:$0xff] %v851
                  %v853 = vld [vmem:[%s695 + $0x470] sm:$0xff]
                  %854 = vst [vmem:[%s696 + $0x270] sm:$0xff] %v853
                  %v855 = vld [vmem:[%s695 + $0x478] sm:$0xff]
                  %856 = vst [vmem:[%s696 + $0x278] sm:$0xff] %v855
                  %v857 = vld [vmem:[%s695 + $0x500] sm:$0xff]
                  %858 = vst [vmem:[%s696 + $0x280] sm:$0xff] %v857
                  %v859 = vld [vmem:[%s695 + $0x508] sm:$0xff]
                  %860 = vst [vmem:[%s696 + $0x288] sm:$0xff] %v859
                  %v861 = vld [vmem:[%s695 + $0x510] sm:$0xff]
                  %862 = vst [vmem:[%s696 + $0x290] sm:$0xff] %v861
                  %v863 = vld [vmem:[%s695 + $0x518] sm:$0xff]
                  %864 = vst [vmem:[%s696 + $0x298] sm:$0xff] %v863
                  %v865 = vld [vmem:[%s695 + $0x520] sm:$0xff]
                  %866 = vst [vmem:[%s696 + $0x2a0] sm:$0xff] %v865
                  %v867 = vld [vmem:[%s695 + $0x528] sm:$0xff]
                  %868 = vst [vmem:[%s696 + $0x2a8] sm:$0xff] %v867
                  %v869 = vld [vmem:[%s695 + $0x530] sm:$0xff]
                  %870 = vst [vmem:[%s696 + $0x2b0] sm:$0xff] %v869
                  %v871 = vld [vmem:[%s695 + $0x538] sm:$0xff]
                  %872 = vst [vmem:[%s696 + $0x2b8] sm:$0xff] %v871
                  %v873 = vld [vmem:[%s695 + $0x540] sm:$0xff]
                  %874 = vst [vmem:[%s696 + $0x2c0] sm:$0xff] %v873
                  %v875 = vld [vmem:[%s695 + $0x548] sm:$0xff]
                  %876 = vst [vmem:[%s696 + $0x2c8] sm:$0xff] %v875
                  %v877 = vld [vmem:[%s695 + $0x550] sm:$0xff]
                  %878 = vst [vmem:[%s696 + $0x2d0] sm:$0xff] %v877
                  %v879 = vld [vmem:[%s695 + $0x558] sm:$0xff]
                  %880 = vst [vmem:[%s696 + $0x2d8] sm:$0xff] %v879
                  %v881 = vld [vmem:[%s695 + $0x560] sm:$0xff]
                  %882 = vst [vmem:[%s696 + $0x2e0] sm:$0xff] %v881
                  %v883 = vld [vmem:[%s695 + $0x568] sm:$0xff]
                  %884 = vst [vmem:[%s696 + $0x2e8] sm:$0xff] %v883
                  %v885 = vld [vmem:[%s695 + $0x570] sm:$0xff]
                  %886 = vst [vmem:[%s696 + $0x2f0] sm:$0xff] %v885
                  %v887 = vld [vmem:[%s695 + $0x578] sm:$0xff]
                  %888 = vst [vmem:[%s696 + $0x2f8] sm:$0xff] %v887
                  %v889 = vld [vmem:[%s695 + $0x600] sm:$0xff]
                  %890 = vst [vmem:[%s696 + $0x300] sm:$0xff] %v889
                  %v891 = vld [vmem:[%s695 + $0x608] sm:$0xff]
                  %892 = vst [vmem:[%s696 + $0x308] sm:$0xff] %v891
                  %v893 = vld [vmem:[%s695 + $0x610] sm:$0xff]
                  %894 = vst [vmem:[%s696 + $0x310] sm:$0xff] %v893
                  %v895 = vld [vmem:[%s695 + $0x618] sm:$0xff]
                  %896 = vst [vmem:[%s696 + $0x318] sm:$0xff] %v895
                  %v897 = vld [vmem:[%s695 + $0x620] sm:$0xff]
                  %898 = vst [vmem:[%s696 + $0x320] sm:$0xff] %v897
                  %v899 = vld [vmem:[%s695 + $0x628] sm:$0xff]
                  %900 = vst [vmem:[%s696 + $0x328] sm:$0xff] %v899
                  %v901 = vld [vmem:[%s695 + $0x630] sm:$0xff]
                  %902 = vst [vmem:[%s696 + $0x330] sm:$0xff] %v901
                  %v903 = vld [vmem:[%s695 + $0x638] sm:$0xff]
                  %904 = vst [vmem:[%s696 + $0x338] sm:$0xff] %v903
                  %v905 = vld [vmem:[%s695 + $0x640] sm:$0xff]
                  %906 = vst [vmem:[%s696 + $0x340] sm:$0xff] %v905
                  %v907 = vld [vmem:[%s695 + $0x648] sm:$0xff]
                  %908 = vst [vmem:[%s696 + $0x348] sm:$0xff] %v907
                  %v909 = vld [vmem:[%s695 + $0x650] sm:$0xff]
                  %910 = vst [vmem:[%s696 + $0x350] sm:$0xff] %v909
                  %v911 = vld [vmem:[%s695 + $0x658] sm:$0xff]
                  %912 = vst [vmem:[%s696 + $0x358] sm:$0xff] %v911
                  %v913 = vld [vmem:[%s695 + $0x660] sm:$0xff]
                  %914 = vst [vmem:[%s696 + $0x360] sm:$0xff] %v913
                  %v915 = vld [vmem:[%s695 + $0x668] sm:$0xff]
                  %916 = vst [vmem:[%s696 + $0x368] sm:$0xff] %v915
                  %v917 = vld [vmem:[%s695 + $0x670] sm:$0xff]
                  %918 = vst [vmem:[%s696 + $0x370] sm:$0xff] %v917
                  %v919 = vld [vmem:[%s695 + $0x678] sm:$0xff]
                  %920 = vst [vmem:[%s696 + $0x378] sm:$0xff] %v919
                  %v921 = vld [vmem:[%s695 + $0x700] sm:$0xff]
                  %922 = vst [vmem:[%s696 + $0x380] sm:$0xff] %v921
                  %v923 = vld [vmem:[%s695 + $0x708] sm:$0xff]
                  %924 = vst [vmem:[%s696 + $0x388] sm:$0xff] %v923
                  %v925 = vld [vmem:[%s695 + $0x710] sm:$0xff]
                  %926 = vst [vmem:[%s696 + $0x390] sm:$0xff] %v925
                  %v927 = vld [vmem:[%s695 + $0x718] sm:$0xff]
                  %928 = vst [vmem:[%s696 + $0x398] sm:$0xff] %v927
                  %v929 = vld [vmem:[%s695 + $0x720] sm:$0xff]
                  %930 = vst [vmem:[%s696 + $0x3a0] sm:$0xff] %v929
                  %v931 = vld [vmem:[%s695 + $0x728] sm:$0xff]
                  %932 = vst [vmem:[%s696 + $0x3a8] sm:$0xff] %v931
                  %v933 = vld [vmem:[%s695 + $0x730] sm:$0xff]
                  %934 = vst [vmem:[%s696 + $0x3b0] sm:$0xff] %v933
                  %v935 = vld [vmem:[%s695 + $0x738] sm:$0xff]
                  %936 = vst [vmem:[%s696 + $0x3b8] sm:$0xff] %v935
                  %v937 = vld [vmem:[%s695 + $0x740] sm:$0xff]
                  %938 = vst [vmem:[%s696 + $0x3c0] sm:$0xff] %v937
                  %v939 = vld [vmem:[%s695 + $0x748] sm:$0xff]
                  %940 = vst [vmem:[%s696 + $0x3c8] sm:$0xff] %v939
                  %v941 = vld [vmem:[%s695 + $0x750] sm:$0xff]
                  %942 = vst [vmem:[%s696 + $0x3d0] sm:$0xff] %v941
                  %v943 = vld [vmem:[%s695 + $0x758] sm:$0xff]
                  %944 = vst [vmem:[%s696 + $0x3d8] sm:$0xff] %v943
                  %v945 = vld [vmem:[%s695 + $0x760] sm:$0xff]
                  %946 = vst [vmem:[%s696 + $0x3e0] sm:$0xff] %v945
                  %v947 = vld [vmem:[%s695 + $0x768] sm:$0xff]
                  %948 = vst [vmem:[%s696 + $0x3e8] sm:$0xff] %v947
                  %v949 = vld [vmem:[%s695 + $0x770] sm:$0xff]
                  %950 = vst [vmem:[%s696 + $0x3f0] sm:$0xff] %v949
                  %v951 = vld [vmem:[%s695 + $0x778] sm:$0xff]
                  %952 = vst [vmem:[%s696 + $0x3f8] sm:$0xff] %v951
                $region96: #{net_forward.1} parent=90 // loop_footer
                  %s694 = sadd.s32 1, %s690
                $region97: #{net_forward.1} parent=90 // loop_footer_branch
                  %689 = sbr.rel target = $region93
                $region98: #{net_forward.1} parent=90 // loop_exit
                  _
              $region91: #{net_forward.1} parent=75 // pred_fallthru
                _
              // Predicated region
              $region99: #{net_forward.1} parent=75 // pred_check
                _
              $region100: #{net_forward.1} parent=75 // pred_check_branch
                %954 = sbr.rel target = $region102
              $region101: #{net_forward.1} parent=75 // pred_region
                _
              $region102: #{net_forward.1} parent=75 // pred_fallthru
                _
            $region76: #{net_forward.1} parent=71 // pred_fallthru
              _
            // Predicated region
            $region77: #{net_forward.1} parent=71 // pred_check
              _
            $region78: #{net_forward.1} parent=71 // pred_check_branch
              %421 = sbr.rel target = $region80
            $region79: #{net_forward.1} parent=71 // pred_region
              loop: start=0, step=1, limit=1
              $region81: #{net_forward.1} parent=79 // loop_pre_header
                _
              $region82: #{net_forward.1} parent=79 // loop_header
                %s424 = sphi 0, %s428
                %p425 = scmp.ge.s32.totalorder %s424, 1
                %s429 = sphi %s415, %s415
                %s430 = sphi %s411, %s411
              $region83: #{net_forward.1} parent=79 // loop_header_branch
                %427 = sbr.rel (%p425) target = $region87
              $region84: #{net_forward.1} parent=79 // loop_body
                %v431 = vld [vmem:[%s429] sm:$0xff]
                %432 = vst [vmem:[%s430] sm:$0xff] %v431
                %v433 = vld [vmem:[%s429 + $0x8] sm:$0xff]
                %434 = vst [vmem:[%s430 + $0x8] sm:$0xff] %v433
                %v435 = vld [vmem:[%s429 + $0x10] sm:$0xff]
                %436 = vst [vmem:[%s430 + $0x10] sm:$0xff] %v435
                %v437 = vld [vmem:[%s429 + $0x18] sm:$0xff]
                %438 = vst [vmem:[%s430 + $0x18] sm:$0xff] %v437
                %v439 = vld [vmem:[%s429 + $0x20] sm:$0xff]
                %440 = vst [vmem:[%s430 + $0x20] sm:$0xff] %v439
                %v441 = vld [vmem:[%s429 + $0x28] sm:$0xff]
                %442 = vst [vmem:[%s430 + $0x28] sm:$0xff] %v441
                %v443 = vld [vmem:[%s429 + $0x30] sm:$0xff]
                %444 = vst [vmem:[%s430 + $0x30] sm:$0xff] %v443
                %v445 = vld [vmem:[%s429 + $0x38] sm:$0xff]
                %446 = vst [vmem:[%s430 + $0x38] sm:$0xff] %v445
                %v447 = vld [vmem:[%s429 + $0x40] sm:$0xff]
                %448 = vst [vmem:[%s430 + $0x40] sm:$0xff] %v447
                %v449 = vld [vmem:[%s429 + $0x48] sm:$0xff]
                %450 = vst [vmem:[%s430 + $0x48] sm:$0xff] %v449
                %v451 = vld [vmem:[%s429 + $0x50] sm:$0xff]
                %452 = vst [vmem:[%s430 + $0x50] sm:$0xff] %v451
                %v453 = vld [vmem:[%s429 + $0x58] sm:$0xff]
                %454 = vst [vmem:[%s430 + $0x58] sm:$0xff] %v453
                %v455 = vld [vmem:[%s429 + $0x60] sm:$0xff]
                %456 = vst [vmem:[%s430 + $0x60] sm:$0xff] %v455
                %v457 = vld [vmem:[%s429 + $0x68] sm:$0xff]
                %458 = vst [vmem:[%s430 + $0x68] sm:$0xff] %v457
                %v459 = vld [vmem:[%s429 + $0x70] sm:$0xff]
                %460 = vst [vmem:[%s430 + $0x70] sm:$0xff] %v459
                %v461 = vld [vmem:[%s429 + $0x78] sm:$0xff]
                %462 = vst [vmem:[%s430 + $0x78] sm:$0xff] %v461
                %v463 = vld [vmem:[%s429 + $0x100] sm:$0xff]
                %464 = vst [vmem:[%s430 + $0x80] sm:$0xff] %v463
                %v465 = vld [vmem:[%s429 + $0x108] sm:$0xff]
                %466 = vst [vmem:[%s430 + $0x88] sm:$0xff] %v465
                %v467 = vld [vmem:[%s429 + $0x110] sm:$0xff]
                %468 = vst [vmem:[%s430 + $0x90] sm:$0xff] %v467
                %v469 = vld [vmem:[%s429 + $0x118] sm:$0xff]
                %470 = vst [vmem:[%s430 + $0x98] sm:$0xff] %v469
                %v471 = vld [vmem:[%s429 + $0x120] sm:$0xff]
                %472 = vst [vmem:[%s430 + $0xa0] sm:$0xff] %v471
                %v473 = vld [vmem:[%s429 + $0x128] sm:$0xff]
                %474 = vst [vmem:[%s430 + $0xa8] sm:$0xff] %v473
                %v475 = vld [vmem:[%s429 + $0x130] sm:$0xff]
                %476 = vst [vmem:[%s430 + $0xb0] sm:$0xff] %v475
                %v477 = vld [vmem:[%s429 + $0x138] sm:$0xff]
                %478 = vst [vmem:[%s430 + $0xb8] sm:$0xff] %v477
                %v479 = vld [vmem:[%s429 + $0x140] sm:$0xff]
                %480 = vst [vmem:[%s430 + $0xc0] sm:$0xff] %v479
                %v481 = vld [vmem:[%s429 + $0x148] sm:$0xff]
                %482 = vst [vmem:[%s430 + $0xc8] sm:$0xff] %v481
                %v483 = vld [vmem:[%s429 + $0x150] sm:$0xff]
                %484 = vst [vmem:[%s430 + $0xd0] sm:$0xff] %v483
                %v485 = vld [vmem:[%s429 + $0x158] sm:$0xff]
                %486 = vst [vmem:[%s430 + $0xd8] sm:$0xff] %v485
                %v487 = vld [vmem:[%s429 + $0x160] sm:$0xff]
                %488 = vst [vmem:[%s430 + $0xe0] sm:$0xff] %v487
                %v489 = vld [vmem:[%s429 + $0x168] sm:$0xff]
                %490 = vst [vmem:[%s430 + $0xe8] sm:$0xff] %v489
                %v491 = vld [vmem:[%s429 + $0x170] sm:$0xff]
                %492 = vst [vmem:[%s430 + $0xf0] sm:$0xff] %v491
                %v493 = vld [vmem:[%s429 + $0x178] sm:$0xff]
                %494 = vst [vmem:[%s430 + $0xf8] sm:$0xff] %v493
                %v495 = vld [vmem:[%s429 + $0x200] sm:$0xff]
                %496 = vst [vmem:[%s430 + $0x100] sm:$0xff] %v495
                %v497 = vld [vmem:[%s429 + $0x208] sm:$0xff]
                %498 = vst [vmem:[%s430 + $0x108] sm:$0xff] %v497
                %v499 = vld [vmem:[%s429 + $0x210] sm:$0xff]
                %500 = vst [vmem:[%s430 + $0x110] sm:$0xff] %v499
                %v501 = vld [vmem:[%s429 + $0x218] sm:$0xff]
                %502 = vst [vmem:[%s430 + $0x118] sm:$0xff] %v501
                %v503 = vld [vmem:[%s429 + $0x220] sm:$0xff]
                %504 = vst [vmem:[%s430 + $0x120] sm:$0xff] %v503
                %v505 = vld [vmem:[%s429 + $0x228] sm:$0xff]
                %506 = vst [vmem:[%s430 + $0x128] sm:$0xff] %v505
                %v507 = vld [vmem:[%s429 + $0x230] sm:$0xff]
                %508 = vst [vmem:[%s430 + $0x130] sm:$0xff] %v507
                %v509 = vld [vmem:[%s429 + $0x238] sm:$0xff]
                %510 = vst [vmem:[%s430 + $0x138] sm:$0xff] %v509
                %v511 = vld [vmem:[%s429 + $0x240] sm:$0xff]
                %512 = vst [vmem:[%s430 + $0x140] sm:$0xff] %v511
                %v513 = vld [vmem:[%s429 + $0x248] sm:$0xff]
                %514 = vst [vmem:[%s430 + $0x148] sm:$0xff] %v513
                %v515 = vld [vmem:[%s429 + $0x250] sm:$0xff]
                %516 = vst [vmem:[%s430 + $0x150] sm:$0xff] %v515
                %v517 = vld [vmem:[%s429 + $0x258] sm:$0xff]
                %518 = vst [vmem:[%s430 + $0x158] sm:$0xff] %v517
                %v519 = vld [vmem:[%s429 + $0x260] sm:$0xff]
                %520 = vst [vmem:[%s430 + $0x160] sm:$0xff] %v519
                %v521 = vld [vmem:[%s429 + $0x268] sm:$0xff]
                %522 = vst [vmem:[%s430 + $0x168] sm:$0xff] %v521
                %v523 = vld [vmem:[%s429 + $0x270] sm:$0xff]
                %524 = vst [vmem:[%s430 + $0x170] sm:$0xff] %v523
                %v525 = vld [vmem:[%s429 + $0x278] sm:$0xff]
                %526 = vst [vmem:[%s430 + $0x178] sm:$0xff] %v525
                %v527 = vld [vmem:[%s429 + $0x300] sm:$0xff]
                %528 = vst [vmem:[%s430 + $0x180] sm:$0xff] %v527
                %v529 = vld [vmem:[%s429 + $0x308] sm:$0xff]
                %530 = vst [vmem:[%s430 + $0x188] sm:$0xff] %v529
                %v531 = vld [vmem:[%s429 + $0x310] sm:$0xff]
                %532 = vst [vmem:[%s430 + $0x190] sm:$0xff] %v531
                %v533 = vld [vmem:[%s429 + $0x318] sm:$0xff]
                %534 = vst [vmem:[%s430 + $0x198] sm:$0xff] %v533
                %v535 = vld [vmem:[%s429 + $0x320] sm:$0xff]
                %536 = vst [vmem:[%s430 + $0x1a0] sm:$0xff] %v535
                %v537 = vld [vmem:[%s429 + $0x328] sm:$0xff]
                %538 = vst [vmem:[%s430 + $0x1a8] sm:$0xff] %v537
                %v539 = vld [vmem:[%s429 + $0x330] sm:$0xff]
                %540 = vst [vmem:[%s430 + $0x1b0] sm:$0xff] %v539
                %v541 = vld [vmem:[%s429 + $0x338] sm:$0xff]
                %542 = vst [vmem:[%s430 + $0x1b8] sm:$0xff] %v541
                %v543 = vld [vmem:[%s429 + $0x340] sm:$0xff]
                %544 = vst [vmem:[%s430 + $0x1c0] sm:$0xff] %v543
                %v545 = vld [vmem:[%s429 + $0x348] sm:$0xff]
                %546 = vst [vmem:[%s430 + $0x1c8] sm:$0xff] %v545
                %v547 = vld [vmem:[%s429 + $0x350] sm:$0xff]
                %548 = vst [vmem:[%s430 + $0x1d0] sm:$0xff] %v547
                %v549 = vld [vmem:[%s429 + $0x358] sm:$0xff]
                %550 = vst [vmem:[%s430 + $0x1d8] sm:$0xff] %v549
                %v551 = vld [vmem:[%s429 + $0x360] sm:$0xff]
                %552 = vst [vmem:[%s430 + $0x1e0] sm:$0xff] %v551
                %v553 = vld [vmem:[%s429 + $0x368] sm:$0xff]
                %554 = vst [vmem:[%s430 + $0x1e8] sm:$0xff] %v553
                %v555 = vld [vmem:[%s429 + $0x370] sm:$0xff]
                %556 = vst [vmem:[%s430 + $0x1f0] sm:$0xff] %v555
                %v557 = vld [vmem:[%s429 + $0x378] sm:$0xff]
                %558 = vst [vmem:[%s430 + $0x1f8] sm:$0xff] %v557
                %v559 = vld [vmem:[%s429 + $0x400] sm:$0xff]
                %560 = vst [vmem:[%s430 + $0x200] sm:$0xff] %v559
                %v561 = vld [vmem:[%s429 + $0x408] sm:$0xff]
                %562 = vst [vmem:[%s430 + $0x208] sm:$0xff] %v561
                %v563 = vld [vmem:[%s429 + $0x410] sm:$0xff]
                %564 = vst [vmem:[%s430 + $0x210] sm:$0xff] %v563
                %v565 = vld [vmem:[%s429 + $0x418] sm:$0xff]
                %566 = vst [vmem:[%s430 + $0x218] sm:$0xff] %v565
                %v567 = vld [vmem:[%s429 + $0x420] sm:$0xff]
                %568 = vst [vmem:[%s430 + $0x220] sm:$0xff] %v567
                %v569 = vld [vmem:[%s429 + $0x428] sm:$0xff]
                %570 = vst [vmem:[%s430 + $0x228] sm:$0xff] %v569
                %v571 = vld [vmem:[%s429 + $0x430] sm:$0xff]
                %572 = vst [vmem:[%s430 + $0x230] sm:$0xff] %v571
                %v573 = vld [vmem:[%s429 + $0x438] sm:$0xff]
                %574 = vst [vmem:[%s430 + $0x238] sm:$0xff] %v573
                %v575 = vld [vmem:[%s429 + $0x440] sm:$0xff]
                %576 = vst [vmem:[%s430 + $0x240] sm:$0xff] %v575
                %v577 = vld [vmem:[%s429 + $0x448] sm:$0xff]
                %578 = vst [vmem:[%s430 + $0x248] sm:$0xff] %v577
                %v579 = vld [vmem:[%s429 + $0x450] sm:$0xff]
                %580 = vst [vmem:[%s430 + $0x250] sm:$0xff] %v579
                %v581 = vld [vmem:[%s429 + $0x458] sm:$0xff]
                %582 = vst [vmem:[%s430 + $0x258] sm:$0xff] %v581
                %v583 = vld [vmem:[%s429 + $0x460] sm:$0xff]
                %584 = vst [vmem:[%s430 + $0x260] sm:$0xff] %v583
                %v585 = vld [vmem:[%s429 + $0x468] sm:$0xff]
                %586 = vst [vmem:[%s430 + $0x268] sm:$0xff] %v585
                %v587 = vld [vmem:[%s429 + $0x470] sm:$0xff]
                %588 = vst [vmem:[%s430 + $0x270] sm:$0xff] %v587
                %v589 = vld [vmem:[%s429 + $0x478] sm:$0xff]
                %590 = vst [vmem:[%s430 + $0x278] sm:$0xff] %v589
                %v591 = vld [vmem:[%s429 + $0x500] sm:$0xff]
                %592 = vst [vmem:[%s430 + $0x280] sm:$0xff] %v591
                %v593 = vld [vmem:[%s429 + $0x508] sm:$0xff]
                %594 = vst [vmem:[%s430 + $0x288] sm:$0xff] %v593
                %v595 = vld [vmem:[%s429 + $0x510] sm:$0xff]
                %596 = vst [vmem:[%s430 + $0x290] sm:$0xff] %v595
                %v597 = vld [vmem:[%s429 + $0x518] sm:$0xff]
                %598 = vst [vmem:[%s430 + $0x298] sm:$0xff] %v597
                %v599 = vld [vmem:[%s429 + $0x520] sm:$0xff]
                %600 = vst [vmem:[%s430 + $0x2a0] sm:$0xff] %v599
                %v601 = vld [vmem:[%s429 + $0x528] sm:$0xff]
                %602 = vst [vmem:[%s430 + $0x2a8] sm:$0xff] %v601
                %v603 = vld [vmem:[%s429 + $0x530] sm:$0xff]
                %604 = vst [vmem:[%s430 + $0x2b0] sm:$0xff] %v603
                %v605 = vld [vmem:[%s429 + $0x538] sm:$0xff]
                %606 = vst [vmem:[%s430 + $0x2b8] sm:$0xff] %v605
                %v607 = vld [vmem:[%s429 + $0x540] sm:$0xff]
                %608 = vst [vmem:[%s430 + $0x2c0] sm:$0xff] %v607
                %v609 = vld [vmem:[%s429 + $0x548] sm:$0xff]
                %610 = vst [vmem:[%s430 + $0x2c8] sm:$0xff] %v609
                %v611 = vld [vmem:[%s429 + $0x550] sm:$0xff]
                %612 = vst [vmem:[%s430 + $0x2d0] sm:$0xff] %v611
                %v613 = vld [vmem:[%s429 + $0x558] sm:$0xff]
                %614 = vst [vmem:[%s430 + $0x2d8] sm:$0xff] %v613
                %v615 = vld [vmem:[%s429 + $0x560] sm:$0xff]
                %616 = vst [vmem:[%s430 + $0x2e0] sm:$0xff] %v615
                %v617 = vld [vmem:[%s429 + $0x568] sm:$0xff]
                %618 = vst [vmem:[%s430 + $0x2e8] sm:$0xff] %v617
                %v619 = vld [vmem:[%s429 + $0x570] sm:$0xff]
                %620 = vst [vmem:[%s430 + $0x2f0] sm:$0xff] %v619
                %v621 = vld [vmem:[%s429 + $0x578] sm:$0xff]
                %622 = vst [vmem:[%s430 + $0x2f8] sm:$0xff] %v621
                %v623 = vld [vmem:[%s429 + $0x600] sm:$0xff]
                %624 = vst [vmem:[%s430 + $0x300] sm:$0xff] %v623
                %v625 = vld [vmem:[%s429 + $0x608] sm:$0xff]
                %626 = vst [vmem:[%s430 + $0x308] sm:$0xff] %v625
                %v627 = vld [vmem:[%s429 + $0x610] sm:$0xff]
                %628 = vst [vmem:[%s430 + $0x310] sm:$0xff] %v627
                %v629 = vld [vmem:[%s429 + $0x618] sm:$0xff]
                %630 = vst [vmem:[%s430 + $0x318] sm:$0xff] %v629
                %v631 = vld [vmem:[%s429 + $0x620] sm:$0xff]
                %632 = vst [vmem:[%s430 + $0x320] sm:$0xff] %v631
                %v633 = vld [vmem:[%s429 + $0x628] sm:$0xff]
                %634 = vst [vmem:[%s430 + $0x328] sm:$0xff] %v633
                %v635 = vld [vmem:[%s429 + $0x630] sm:$0xff]
                %636 = vst [vmem:[%s430 + $0x330] sm:$0xff] %v635
                %v637 = vld [vmem:[%s429 + $0x638] sm:$0xff]
                %638 = vst [vmem:[%s430 + $0x338] sm:$0xff] %v637
                %v639 = vld [vmem:[%s429 + $0x640] sm:$0xff]
                %640 = vst [vmem:[%s430 + $0x340] sm:$0xff] %v639
                %v641 = vld [vmem:[%s429 + $0x648] sm:$0xff]
                %642 = vst [vmem:[%s430 + $0x348] sm:$0xff] %v641
                %v643 = vld [vmem:[%s429 + $0x650] sm:$0xff]
                %644 = vst [vmem:[%s430 + $0x350] sm:$0xff] %v643
                %v645 = vld [vmem:[%s429 + $0x658] sm:$0xff]
                %646 = vst [vmem:[%s430 + $0x358] sm:$0xff] %v645
                %v647 = vld [vmem:[%s429 + $0x660] sm:$0xff]
                %648 = vst [vmem:[%s430 + $0x360] sm:$0xff] %v647
                %v649 = vld [vmem:[%s429 + $0x668] sm:$0xff]
                %650 = vst [vmem:[%s430 + $0x368] sm:$0xff] %v649
                %v651 = vld [vmem:[%s429 + $0x670] sm:$0xff]
                %652 = vst [vmem:[%s430 + $0x370] sm:$0xff] %v651
                %v653 = vld [vmem:[%s429 + $0x678] sm:$0xff]
                %654 = vst [vmem:[%s430 + $0x378] sm:$0xff] %v653
                %v655 = vld [vmem:[%s429 + $0x700] sm:$0xff]
                %656 = vst [vmem:[%s430 + $0x380] sm:$0xff] %v655
                %v657 = vld [vmem:[%s429 + $0x708] sm:$0xff]
                %658 = vst [vmem:[%s430 + $0x388] sm:$0xff] %v657
                %v659 = vld [vmem:[%s429 + $0x710] sm:$0xff]
                %660 = vst [vmem:[%s430 + $0x390] sm:$0xff] %v659
                %v661 = vld [vmem:[%s429 + $0x718] sm:$0xff]
                %662 = vst [vmem:[%s430 + $0x398] sm:$0xff] %v661
                %v663 = vld [vmem:[%s429 + $0x720] sm:$0xff]
                %664 = vst [vmem:[%s430 + $0x3a0] sm:$0xff] %v663
                %v665 = vld [vmem:[%s429 + $0x728] sm:$0xff]
                %666 = vst [vmem:[%s430 + $0x3a8] sm:$0xff] %v665
                %v667 = vld [vmem:[%s429 + $0x730] sm:$0xff]
                %668 = vst [vmem:[%s430 + $0x3b0] sm:$0xff] %v667
                %v669 = vld [vmem:[%s429 + $0x738] sm:$0xff]
                %670 = vst [vmem:[%s430 + $0x3b8] sm:$0xff] %v669
                %v671 = vld [vmem:[%s429 + $0x740] sm:$0xff]
                %672 = vst [vmem:[%s430 + $0x3c0] sm:$0xff] %v671
                %v673 = vld [vmem:[%s429 + $0x748] sm:$0xff]
                %674 = vst [vmem:[%s430 + $0x3c8] sm:$0xff] %v673
                %v675 = vld [vmem:[%s429 + $0x750] sm:$0xff]
                %676 = vst [vmem:[%s430 + $0x3d0] sm:$0xff] %v675
                %v677 = vld [vmem:[%s429 + $0x758] sm:$0xff]
                %678 = vst [vmem:[%s430 + $0x3d8] sm:$0xff] %v677
                %v679 = vld [vmem:[%s429 + $0x760] sm:$0xff]
                %680 = vst [vmem:[%s430 + $0x3e0] sm:$0xff] %v679
                %v681 = vld [vmem:[%s429 + $0x768] sm:$0xff]
                %682 = vst [vmem:[%s430 + $0x3e8] sm:$0xff] %v681
                %v683 = vld [vmem:[%s429 + $0x770] sm:$0xff]
                %684 = vst [vmem:[%s430 + $0x3f0] sm:$0xff] %v683
                %v685 = vld [vmem:[%s429 + $0x778] sm:$0xff]
                %686 = vst [vmem:[%s430 + $0x3f8] sm:$0xff] %v685
              $region85: #{net_forward.1} parent=79 // loop_footer
                %s428 = sadd.s32 1, %s424
              $region86: #{net_forward.1} parent=79 // loop_footer_branch
                %423 = sbr.rel target = $region82
              $region87: #{net_forward.1} parent=79 // loop_exit
                _
            $region80: #{net_forward.1} parent=71 // pred_fallthru
              _
          $region72: #{net_forward.1} parent=67 // pred_fallthru
            _
          %955 = vnop
        $region68: #{net_forward.1} parent=63 // pred_fallthru
          _
        // Predicated region
        $region103: #{net_forward.1} parent=63 // pred_check
          %p956 = pneg %p66
        $region104: #{net_forward.1} parent=63 // pred_check_branch
          %958 = sbr.rel (%p956) target = $region106
        $region105: #{net_forward.1} parent=63 // pred_region
          %s959 = smul.u32 16, %s20
          %p960 = scmp.lt.s32.totalorder %s959, 31
          %s961 = scalar_select %p960, %s959, 31
          %s962 = smul.addr %s961, 2
          %s963 = smul.addr %s962, 4
          %s964 = scalar_lea.vmem %s1, %s963
          %s965 = smul.u32 16, %s20
        $region106: #{net_forward.1} parent=63 // pred_fallthru
          _
      $region64: #{net_forward.1} parent=5 // pred_fallthru
        _
      %p966 = scmp.le.s32.totalorder 1, %s20
      %p967 = scmp.lt.s32.totalorder %s20, 3
      %p968 = pnand %p966, %p967
      %p969 = pneg %p968
      // Predicated region
      $region107: #{net_forward.1} parent=5 // pred_check
        _
      $region108: #{net_forward.1} parent=5 // pred_check_branch
        %971 = sbr.rel (%p968) target = $region110
      $region109: #{net_forward.1} parent=5 // pred_region
        %s972 = ssub.s32 %s20, 1
        %s973 = sand.u32 %s33, 1
        %s974 = sand.u32 %s33, 1
        %s975 = smul.addr %s974, 1024
        %s976 = scalar_lea.vmem [#allocation3], %s975
        // Predicated region
        $region111: #{net_forward.1} parent=109 // pred_check
          %p977 = pneg %p46
        $region112: #{net_forward.1} parent=109 // pred_check_branch
          %979 = sbr.rel (%p977) target = $region114
        $region113: #{net_forward.1} parent=109 // pred_region
          _
        $region114: #{net_forward.1} parent=109 // pred_fallthru
          _
        %s980 = sand.u32 %s33, 1
        %s981 = sand.u32 %s33, 1
        %s982 = smul.addr %s981, 1024
        %s983 = scalar_lea.vmem [#allocation3], %s982
        %p984 = pneg %p46
        %p985 = pneg %p43
        %s986 = smul.u32 16, %s25
        %p987 = scmp.lt.s32.totalorder %s986, 31
        %s988 = scalar_select %p987, %s986, 31
        %s989 = smul.addr %s988, 2
        %s990 = smul.addr %s989, 4
        %s991 = scalar_lea.vmem %s1, %s990
        %p992 = pneg %p72
        %p993 = pneg %p69
        %p994 = pneg %p93
        %p995 = pneg %p90
        %p996 = pneg %p114
        %p997 = pneg %p111
        %p998 = pneg %p135
        %p999 = pneg %p132
        %p1000 = pneg %p156
        %p1001 = pneg %p153
        %p1002 = pneg %p177
        %p1003 = pneg %p174
        %p1004 = pneg %p198
        %p1005 = pneg %p195
        %p1006 = pneg %p219
        %p1007 = pneg %p216
        %p1008 = pneg %p240
        %p1009 = pneg %p237
        %p1010 = pneg %p261
        %p1011 = pneg %p258
        %p1012 = pneg %p282
        %p1013 = pneg %p279
        %p1014 = pneg %p303
        %p1015 = pneg %p300
        %p1016 = pneg %p324
        %p1017 = pneg %p321
        %p1018 = pneg %p350
        %p1019 = pneg %p347
        %s1020 = smul.u32 16, %s25
        %p1021 = scmp.lt.s32.totalorder %s1020, 31
        %s1022 = scalar_select %p1021, %s1020, 31
        %s1023 = smul.addr %s1022, 8
        %s1024 = scalar_lea.vmem %s14, %s1023
        %s1025 = smul.u32 16, %s25
        %s1026 = smul.u32 16, %s25
        %p1027 = scmp.lt.s32.totalorder %s1026, 31
        %s1028 = scalar_select %p1027, %s1026, 31
        %s1029 = smul.addr %s1028, 2
        %s1030 = smul.addr %s1029, 4
        %s1031 = scalar_lea.vmem %s1, %s1030
        %s1032 = smul.u32 16, %s25
        %s1033 = smul.u32 16, %s25
        %p1034 = scmp.lt.s32.totalorder %s1033, 31
        %s1035 = scalar_select %p1034, %s1033, 31
        %s1036 = smul.addr %s1035, 8
        %s1037 = scalar_lea.vmem %s14, %s1036
        %s1038 = smul.u32 16, %s25
        %v1040 = vld [vmem:[%s1031] sm:$0xff]
        %v1041 = vld [vmem:[%s1031 + $0x8] sm:$0xff]
        %v1042 = vld [vmem:[%s1031 + $0x10] sm:$0xff]
        %v1043 = vld [vmem:[%s1031 + $0x18] sm:$0xff]
        %v1044 = vld [vmem:[%s1031 + $0x20] sm:$0xff]
        %v1045 = vld [vmem:[%s1031 + $0x28] sm:$0xff]
        %v1046 = vld [vmem:[%s1031 + $0x30] sm:$0xff]
        %v1047 = vld [vmem:[%s1031 + $0x38] sm:$0xff]
        %v1048 = vld [vmem:[%s1031 + $0x40] sm:$0xff]
        %v1049 = vld [vmem:[%s1031 + $0x48] sm:$0xff]
        %v1050 = vld [vmem:[%s1031 + $0x50] sm:$0xff]
        %v1051 = vld [vmem:[%s1031 + $0x58] sm:$0xff]
        %v1052 = vld [vmem:[%s1031 + $0x60] sm:$0xff]
        %v1053 = vld [vmem:[%s1031 + $0x68] sm:$0xff]
        %v1054 = vld [vmem:[%s1031 + $0x70] sm:$0xff]
        %v1055 = vld [vmem:[%s1031 + $0x78] sm:$0xff]
        %v1056 = vld [vmem:[%s6] sm:$0xf]
        %v1057 = vld [vmem:[%s6 + $0x4] sm:$0xf]
        %v1058 = vld [vmem:[%s6 + $0x8] sm:$0xf]
        %v1059 = vld [vmem:[%s6 + $0xc] sm:$0xf]
        %v1060 = vld [vmem:[%s6 + $0x10] sm:$0xf]
        %v1061 = vld [vmem:[%s6 + $0x14] sm:$0xf]
        %v1062 = vld [vmem:[%s6 + $0x18] sm:$0xf]
        %v1063 = vld [vmem:[%s6 + $0x1c] sm:$0xf]
        %v1064 = vld [vmem:[%s6 + $0x20] sm:$0xf]
        %v1065 = vld [vmem:[%s6 + $0x24] sm:$0xf]
        %v1066 = vld [vmem:[%s6 + $0x28] sm:$0xf]
        %v1067 = vld [vmem:[%s6 + $0x2c] sm:$0xf]
        %v1068 = vld [vmem:[%s6 + $0x30] sm:$0xf]
        %v1069 = vld [vmem:[%s6 + $0x34] sm:$0xf]
        %v1070 = vld [vmem:[%s6 + $0x38] sm:$0xf]
        %v1071 = vld [vmem:[%s6 + $0x3c] sm:$0xf]
        %v1072 = vld [vmem:[%s6 + $0x40] sm:$0xf]
        %v1073 = vld [vmem:[%s6 + $0x44] sm:$0xf]
        %v1074 = vld [vmem:[%s6 + $0x48] sm:$0xf]
        %v1075 = vld [vmem:[%s6 + $0x4c] sm:$0xf]
        %v1076 = vld [vmem:[%s6 + $0x50] sm:$0xf]
        %v1077 = vld [vmem:[%s6 + $0x54] sm:$0xf]
        %v1078 = vld [vmem:[%s6 + $0x58] sm:$0xf]
        %v1079 = vld [vmem:[%s6 + $0x5c] sm:$0xf]
        %v1080 = vld [vmem:[%s6 + $0x60] sm:$0xf]
        %v1081 = vld [vmem:[%s6 + $0x64] sm:$0xf]
        %v1082 = vld [vmem:[%s6 + $0x68] sm:$0xf]
        %v1083 = vld [vmem:[%s6 + $0x6c] sm:$0xf]
        %v1084 = vld [vmem:[%s6 + $0x70] sm:$0xf]
        %v1085 = vld [vmem:[%s6 + $0x74] sm:$0xf]
        %v1086 = vld [vmem:[%s6 + $0x78] sm:$0xf]
        %v1087 = vld [vmem:[%s6 + $0x7c] sm:$0xf]
        %v1088 = vld [vmem:[%s7] sm:$0x1]
        %v1090 = vlaneseq
        %v1091 = vshrl.u32 %v1090, 7
        %v1092 = vsub.s32 0, %v1091
        %v1093 = vrot.slane %v1088, %v1092
        %v1111 = vunpack.c.l.b16 %v1040
        %v1112 = vunpack.c.h.b16 %v1040
        %v1113 = vunpack.c.l.b16 %v1041
        %v1114 = vunpack.c.h.b16 %v1041
        %v1115 = vunpack.c.l.b16 %v1042
        %v1116 = vunpack.c.h.b16 %v1042
        %v1117 = vunpack.c.l.b16 %v1043
        %v1118 = vunpack.c.h.b16 %v1043
        %v1119 = vunpack.c.l.b16 %v1044
        %v1120 = vunpack.c.h.b16 %v1044
        %v1121 = vunpack.c.l.b16 %v1045
        %v1122 = vunpack.c.h.b16 %v1045
        %v1123 = vunpack.c.l.b16 %v1046
        %v1124 = vunpack.c.h.b16 %v1046
        %v1125 = vunpack.c.l.b16 %v1047
        %v1126 = vunpack.c.h.b16 %v1047
        %v1127 = vunpack.c.l.b16 %v1048
        %v1128 = vunpack.c.h.b16 %v1048
        %v1129 = vunpack.c.l.b16 %v1049
        %v1130 = vunpack.c.h.b16 %v1049
        %v1131 = vunpack.c.l.b16 %v1050
        %v1132 = vunpack.c.h.b16 %v1050
        %v1133 = vunpack.c.l.b16 %v1051
        %v1134 = vunpack.c.h.b16 %v1051
        %v1135 = vunpack.c.l.b16 %v1052
        %v1136 = vunpack.c.h.b16 %v1052
        %v1137 = vunpack.c.l.b16 %v1053
        %v1138 = vunpack.c.h.b16 %v1053
        %v1139 = vunpack.c.l.b16 %v1054
        %v1140 = vunpack.c.h.b16 %v1054
        %v1141 = vunpack.c.l.b16 %v1055
        %v1142 = vunpack.c.h.b16 %v1055
        %v1143 = vpack.c.b16 %v1113, %v1111
        %v1144 = vpack.c.b16 %v1114, %v1112
        %v1145 = vpack.c.b16 %v1117, %v1115
        %v1146 = vpack.c.b16 %v1118, %v1116
        %v1147 = vpack.c.b16 %v1121, %v1119
        %v1148 = vpack.c.b16 %v1122, %v1120
        %v1149 = vpack.c.b16 %v1125, %v1123
        %v1150 = vpack.c.b16 %v1126, %v1124
        %v1151 = vpack.c.b16 %v1129, %v1127
        %v1152 = vpack.c.b16 %v1130, %v1128
        %v1153 = vpack.c.b16 %v1133, %v1131
        %v1154 = vpack.c.b16 %v1134, %v1132
        %v1155 = vpack.c.b16 %v1137, %v1135
        %v1156 = vpack.c.b16 %v1138, %v1136
        %v1157 = vpack.c.b16 %v1141, %v1139
        %v1158 = vpack.c.b16 %v1142, %v1140
        %v1207 = vunpack.c.l.b16 %v1056
        %v1208 = vunpack.c.l.b16 %v1057
        %v1209 = vunpack.c.l.b16 %v1058
        %v1210 = vunpack.c.l.b16 %v1059
        %v1211 = vunpack.c.l.b16 %v1060
        %v1212 = vunpack.c.l.b16 %v1061
        %v1213 = vunpack.c.l.b16 %v1062
        %v1214 = vunpack.c.l.b16 %v1063
        %v1215 = vunpack.c.l.b16 %v1064
        %v1216 = vunpack.c.l.b16 %v1065
        %v1217 = vunpack.c.l.b16 %v1066
        %v1218 = vunpack.c.l.b16 %v1067
        %v1219 = vunpack.c.l.b16 %v1068
        %v1220 = vunpack.c.l.b16 %v1069
        %v1221 = vunpack.c.l.b16 %v1070
        %v1222 = vunpack.c.l.b16 %v1071
        %v1223 = vunpack.c.l.b16 %v1072
        %v1224 = vunpack.c.l.b16 %v1073
        %v1225 = vunpack.c.l.b16 %v1074
        %v1226 = vunpack.c.l.b16 %v1075
        %v1227 = vunpack.c.l.b16 %v1076
        %v1228 = vunpack.c.l.b16 %v1077
        %v1229 = vunpack.c.l.b16 %v1078
        %v1230 = vunpack.c.l.b16 %v1079
        %v1231 = vunpack.c.l.b16 %v1080
        %v1232 = vunpack.c.l.b16 %v1081
        %v1233 = vunpack.c.l.b16 %v1082
        %v1234 = vunpack.c.l.b16 %v1083
        %v1235 = vunpack.c.l.b16 %v1084
        %v1236 = vunpack.c.l.b16 %v1085
        %v1237 = vunpack.c.l.b16 %v1086
        %v1238 = vunpack.c.l.b16 %v1087
        %v1239 = vpack.c.b16 %v1208, %v1207
        %v1240 = vpack.c.b16 %v1210, %v1209
        %v1241 = vpack.c.b16 %v1212, %v1211
        %v1242 = vpack.c.b16 %v1214, %v1213
        %v1243 = vpack.c.b16 %v1216, %v1215
        %v1244 = vpack.c.b16 %v1218, %v1217
        %v1245 = vpack.c.b16 %v1220, %v1219
        %v1246 = vpack.c.b16 %v1222, %v1221
        %v1247 = vpack.c.b16 %v1224, %v1223
        %v1248 = vpack.c.b16 %v1226, %v1225
        %v1249 = vpack.c.b16 %v1228, %v1227
        %v1250 = vpack.c.b16 %v1230, %v1229
        %v1251 = vpack.c.b16 %v1232, %v1231
        %v1252 = vpack.c.b16 %v1234, %v1233
        %v1253 = vpack.c.b16 %v1236, %v1235
        %v1254 = vpack.c.b16 %v1238, %v1237
        %1271 = vmatprep.subr.bf16.mxu0 0
        %1272 = vmatpush1.bf16.msra.mxu0 %v1239
        %1273 = vmatprep.subr.bf16.mxu0 0
        %1274 = vmatpush1.bf16.msra.mxu0 %v1240
        %1275 = vmatprep.subr.bf16.mxu0 0
        %1276 = vmatpush1.bf16.msra.mxu0 %v1241
        %1277 = vmatprep.subr.bf16.mxu0 0
        %1278 = vmatpush1.bf16.msra.mxu0 %v1242
        %1279 = vmatprep.subr.bf16.mxu0 0
        %1280 = vmatpush1.bf16.msra.mxu0 %v1243
        %1281 = vmatprep.subr.bf16.mxu0 0
        %1282 = vmatpush1.bf16.msra.mxu0 %v1244
        %1283 = vmatprep.subr.bf16.mxu0 0
        %1284 = vmatpush1.bf16.msra.mxu0 %v1245
        %1285 = vmatprep.subr.bf16.mxu0 0
        %1286 = vmatpush1.bf16.msra.mxu0 %v1246
        %1287 = vmatprep.subr.bf16.mxu0 0
        %1288 = vmatpush1.bf16.msra.mxu0 %v1247
        %1289 = vmatprep.subr.bf16.mxu0 0
        %1290 = vmatpush1.bf16.msra.mxu0 %v1248
        %1291 = vmatprep.subr.bf16.mxu0 0
        %1292 = vmatpush1.bf16.msra.mxu0 %v1249
        %1293 = vmatprep.subr.bf16.mxu0 0
        %1294 = vmatpush1.bf16.msra.mxu0 %v1250
        %1295 = vmatprep.subr.bf16.mxu0 0
        %1296 = vmatpush1.bf16.msra.mxu0 %v1251
        %1297 = vmatprep.subr.bf16.mxu0 0
        %1298 = vmatpush1.bf16.msra.mxu0 %v1252
        %1299 = vmatprep.subr.bf16.mxu0 0
        %1300 = vmatpush1.bf16.msra.mxu0 %v1253
        %1301 = vmatprep.subr.bf16.mxu0 0
        %1302 = vmatpush1.bf16.msra.mxu0 %v1254
        %1303 = vmatprep.mubr.bf16.mxu0 %v1144
        %1304 = vmatmul.mubr.bf16.gmra.mrb[0].mxu0 %v1143
        %v1305 = vpop.f32.mrb[0].mxu0
        %v1306 = vadd.f32 %v1093, %v1305
        %v1307 = vpop.f32.mrb[0].mxu0
        %v1308 = vpop.f32.mrb[0].mxu0
        %v1309 = vadd.f32 %v1093, %v1308
        %v1310 = vpop.f32.mrb[0].mxu0
        %1311 = vmatprep.mubr.bf16.mxu0 %v1146
        %1312 = vmatmul.mubr.bf16.gmra.mrb[0].mxu0 %v1145
        %v1313 = vpop.f32.mrb[0].mxu0
        %v1314 = vadd.f32 %v1093, %v1313
        %v1315 = vpop.f32.mrb[0].mxu0
        %v1316 = vpop.f32.mrb[0].mxu0
        %v1317 = vadd.f32 %v1093, %v1316
        %v1318 = vpop.f32.mrb[0].mxu0
        %1319 = vmatprep.mubr.bf16.mxu0 %v1148
        %1320 = vmatmul.mubr.bf16.gmra.mrb[0].mxu0 %v1147
        %v1321 = vpop.f32.mrb[0].mxu0
        %v1322 = vadd.f32 %v1093, %v1321
        %v1323 = vpop.f32.mrb[0].mxu0
        %v1324 = vpop.f32.mrb[0].mxu0
        %v1325 = vadd.f32 %v1093, %v1324
        %v1326 = vpop.f32.mrb[0].mxu0
        %1327 = vmatprep.mubr.bf16.mxu0 %v1150
        %1328 = vmatmul.mubr.bf16.gmra.mrb[0].mxu0 %v1149
        %v1329 = vpop.f32.mrb[0].mxu0
        %v1330 = vadd.f32 %v1093, %v1329
        %v1331 = vpop.f32.mrb[0].mxu0
        %v1332 = vpop.f32.mrb[0].mxu0
        %v1333 = vadd.f32 %v1093, %v1332
        %v1334 = vpop.f32.mrb[0].mxu0
        %1335 = vmatprep.mubr.bf16.mxu0 %v1152
        %1336 = vmatmul.mubr.bf16.gmra.mrb[0].mxu0 %v1151
        %v1337 = vpop.f32.mrb[0].mxu0
        %v1338 = vadd.f32 %v1093, %v1337
        %v1339 = vpop.f32.mrb[0].mxu0
        %v1340 = vpop.f32.mrb[0].mxu0
        %v1341 = vadd.f32 %v1093, %v1340
        %v1342 = vpop.f32.mrb[0].mxu0
        %1343 = vmatprep.mubr.bf16.mxu0 %v1154
        %1344 = vmatmul.mubr.bf16.gmra.mrb[0].mxu0 %v1153
        %v1345 = vpop.f32.mrb[0].mxu0
        %v1346 = vadd.f32 %v1093, %v1345
        %v1347 = vpop.f32.mrb[0].mxu0
        %v1348 = vpop.f32.mrb[0].mxu0
        %v1349 = vadd.f32 %v1093, %v1348
        %v1350 = vpop.f32.mrb[0].mxu0
        %1351 = vmatprep.mubr.bf16.mxu0 %v1156
        %1352 = vmatmul.mubr.bf16.gmra.mrb[0].mxu0 %v1155
        %v1353 = vpop.f32.mrb[0].mxu0
        %v1354 = vadd.f32 %v1093, %v1353
        %v1355 = vpop.f32.mrb[0].mxu0
        %v1356 = vpop.f32.mrb[0].mxu0
        %v1357 = vadd.f32 %v1093, %v1356
        %v1358 = vpop.f32.mrb[0].mxu0
        %1359 = vmatprep.mubr.bf16.mxu0 %v1158
        %1360 = vmatmul.mubr.bf16.gmra.mrb[0].mxu0 %v1157
        %v1361 = vpop.f32.mrb[0].mxu0
        %v1362 = vadd.f32 %v1093, %v1361
        %v1363 = vpop.f32.mrb[0].mxu0
        %v1364 = vpop.f32.mrb[0].mxu0
        %v1365 = vadd.f32 %v1093, %v1364
        %v1366 = vpop.f32.mrb[0].mxu0
        %1367 = vdwg.mxu0
        %v1368 = vld [vmem:[%s2] sm:$0xf]
        %v1369 = vld [vmem:[%s2 + $0x4] sm:$0xf]
        %v1370 = vld [vmem:[%s2 + $0x8] sm:$0xf]
        %v1371 = vld [vmem:[%s2 + $0xc] sm:$0xf]
        %v1372 = vld [vmem:[%s2 + $0x10] sm:$0xf]
        %v1373 = vld [vmem:[%s2 + $0x14] sm:$0xf]
        %v1374 = vld [vmem:[%s2 + $0x18] sm:$0xf]
        %v1375 = vld [vmem:[%s2 + $0x1c] sm:$0xf]
        %v1376 = vld [vmem:[%s2 + $0x20] sm:$0xf]
        %v1377 = vld [vmem:[%s2 + $0x24] sm:$0xf]
        %v1378 = vld [vmem:[%s2 + $0x28] sm:$0xf]
        %v1379 = vld [vmem:[%s2 + $0x2c] sm:$0xf]
        %v1380 = vld [vmem:[%s2 + $0x30] sm:$0xf]
        %v1381 = vld [vmem:[%s2 + $0x34] sm:$0xf]
        %v1382 = vld [vmem:[%s2 + $0x38] sm:$0xf]
        %v1383 = vld [vmem:[%s2 + $0x3c] sm:$0xf]
        %v1384 = vld [vmem:[%s2 + $0x40] sm:$0xf]
        %v1385 = vld [vmem:[%s976] sm:$0xff]
        %v1386 = vld [vmem:[%s976 + $0x8] sm:$0xff]
        %v1387 = vld [vmem:[%s976 + $0x10] sm:$0xff]
        %v1388 = vld [vmem:[%s976 + $0x18] sm:$0xff]
        %v1389 = vld [vmem:[%s976 + $0x20] sm:$0xff]
        %v1390 = vld [vmem:[%s976 + $0x28] sm:$0xff]
        %v1391 = vld [vmem:[%s976 + $0x30] sm:$0xff]
        %v1392 = vld [vmem:[%s976 + $0x38] sm:$0xff]
        %v1393 = vld [vmem:[%s976 + $0x40] sm:$0xff]
        %v1394 = vld [vmem:[%s976 + $0x48] sm:$0xff]
        %v1395 = vld [vmem:[%s976 + $0x50] sm:$0xff]
        %v1396 = vld [vmem:[%s976 + $0x58] sm:$0xff]
        %v1397 = vld [vmem:[%s976 + $0x60] sm:$0xff]
        %v1398 = vld [vmem:[%s976 + $0x68] sm:$0xff]
        %v1399 = vld [vmem:[%s976 + $0x70] sm:$0xff]
        %v1400 = vld [vmem:[%s976 + $0x78] sm:$0xff]
        %v1417 = vunpack.c.l.b16 %v1385
        %v1418 = vunpack.c.h.b16 %v1385
        %v1419 = vunpack.c.l.b16 %v1386
        %v1420 = vunpack.c.h.b16 %v1386
        %v1421 = vunpack.c.l.b16 %v1387
        %v1422 = vunpack.c.h.b16 %v1387
        %v1423 = vunpack.c.l.b16 %v1388
        %v1424 = vunpack.c.h.b16 %v1388
        %v1425 = vunpack.c.l.b16 %v1389
        %v1426 = vunpack.c.h.b16 %v1389
        %v1427 = vunpack.c.l.b16 %v1390
        %v1428 = vunpack.c.h.b16 %v1390
        %v1429 = vunpack.c.l.b16 %v1391
        %v1430 = vunpack.c.h.b16 %v1391
        %v1431 = vunpack.c.l.b16 %v1392
        %v1432 = vunpack.c.h.b16 %v1392
        %v1433 = vunpack.c.l.b16 %v1393
        %v1434 = vunpack.c.h.b16 %v1393
        %v1435 = vunpack.c.l.b16 %v1394
        %v1436 = vunpack.c.h.b16 %v1394
        %v1437 = vunpack.c.l.b16 %v1395
        %v1438 = vunpack.c.h.b16 %v1395
        %v1439 = vunpack.c.l.b16 %v1396
        %v1440 = vunpack.c.h.b16 %v1396
        %v1441 = vunpack.c.l.b16 %v1397
        %v1442 = vunpack.c.h.b16 %v1397
        %v1443 = vunpack.c.l.b16 %v1398
        %v1444 = vunpack.c.h.b16 %v1398
        %v1445 = vunpack.c.l.b16 %v1399
        %v1446 = vunpack.c.h.b16 %v1399
        %v1447 = vunpack.c.l.b16 %v1400
        %v1448 = vunpack.c.h.b16 %v1400
        %v1449 = vpack.c.b16 %v1419, %v1417
        %v1450 = vpack.c.b16 %v1420, %v1418
        %v1451 = vpack.c.b16 %v1423, %v1421
        %v1452 = vpack.c.b16 %v1424, %v1422
        %v1453 = vpack.c.b16 %v1427, %v1425
        %v1454 = vpack.c.b16 %v1428, %v1426
        %v1455 = vpack.c.b16 %v1431, %v1429
        %v1456 = vpack.c.b16 %v1432, %v1430
        %v1457 = vpack.c.b16 %v1435, %v1433
        %v1458 = vpack.c.b16 %v1436, %v1434
        %v1459 = vpack.c.b16 %v1439, %v1437
        %v1460 = vpack.c.b16 %v1440, %v1438
        %v1461 = vpack.c.b16 %v1443, %v1441
        %v1462 = vpack.c.b16 %v1444, %v1442
        %v1463 = vpack.c.b16 %v1447, %v1445
        %v1464 = vpack.c.b16 %v1448, %v1446
        %v1490 = vunpack.c.l.b16 %v1368
        %v1491 = vunpack.c.l.b16 %v1369
        %v1492 = vunpack.c.l.b16 %v1370
        %v1493 = vunpack.c.l.b16 %v1371
        %v1494 = vunpack.c.l.b16 %v1372
        %v1495 = vunpack.c.l.b16 %v1373
        %v1496 = vunpack.c.l.b16 %v1374
        %v1497 = vunpack.c.l.b16 %v1375
        %v1498 = vunpack.c.l.b16 %v1376
        %v1499 = vunpack.c.l.b16 %v1377
        %v1500 = vunpack.c.l.b16 %v1378
        %v1501 = vunpack.c.l.b16 %v1379
        %v1502 = vunpack.c.l.b16 %v1380
        %v1503 = vunpack.c.l.b16 %v1381
        %v1504 = vunpack.c.l.b16 %v1382
        %v1505 = vunpack.c.l.b16 %v1383
        %v1506 = vunpack.c.l.b16 %v1384
        %v1507 = vpack.c.b16 %v1491, %v1490
        %v1508 = vpack.c.b16 %v1493, %v1492
        %v1509 = vpack.c.b16 %v1495, %v1494
        %v1510 = vpack.c.b16 %v1497, %v1496
        %v1511 = vpack.c.b16 %v1499, %v1498
        %v1512 = vpack.c.b16 %v1501, %v1500
        %v1513 = vpack.c.b16 %v1503, %v1502
        %v1514 = vpack.c.b16 %v1505, %v1504
        %v1515 = vpack.c.b16 %v1506, %v1506
        %vm1524 = vcmask 64512
        %v1526 = vsel %vm1524, %v1450, 0
        %v1529 = vsel %vm1524, %v1452, 0
        %v1532 = vsel %vm1524, %v1454, 0
        %v1535 = vsel %vm1524, %v1456, 0
        %v1538 = vsel %vm1524, %v1458, 0
        %v1541 = vsel %vm1524, %v1460, 0
        %v1544 = vsel %vm1524, %v1462, 0
        %v1547 = vsel %vm1524, %v1464, 0
        %vm1549 = vcmask 1043456
        %v1551 = vsel %vm1549, %v1515, 0
        %1553 = vmatprep.subr.bf16.mxu0 0
        %1554 = vmatpush1.bf16.msra.mxu0 %v1507
        %1555 = vmatprep.subr.bf16.mxu0 0
        %1556 = vmatpush1.bf16.msra.mxu0 %v1508
        %1557 = vmatprep.subr.bf16.mxu0 0
        %1558 = vmatpush1.bf16.msra.mxu0 %v1509
        %1559 = vmatprep.subr.bf16.mxu0 0
        %1560 = vmatpush1.bf16.msra.mxu0 %v1510
        %1561 = vmatprep.subr.bf16.mxu0 0
        %1562 = vmatpush1.bf16.msra.mxu0 %v1511
        %1563 = vmatprep.subr.bf16.mxu0 0
        %1564 = vmatpush1.bf16.msra.mxu0 %v1512
        %1565 = vmatprep.subr.bf16.mxu0 0
        %1566 = vmatpush1.bf16.msra.mxu0 %v1513
        %1567 = vmatprep.subr.bf16.mxu0 0
        %1568 = vmatpush1.bf16.msra.mxu0 %v1514
        %1569 = vmatprep.subr.bf16.mxu0 0
        %1570 = vmatpush1.bf16.msra.mxu0 %v1551
        %1571 = vmatprep.subr.bf16.mxu0 0
        %1572 = vmatpush1.bf16.msra.mxu0 0
        %1573 = vmatprep.subr.bf16.mxu0 0
        %1574 = vmatpush1.bf16.msra.mxu0 0
        %1575 = vmatprep.subr.bf16.mxu0 0
        %1576 = vmatpush1.bf16.msra.mxu0 0
        %1577 = vmatprep.subr.bf16.mxu0 0
        %1578 = vmatpush1.bf16.msra.mxu0 0
        %1579 = vmatprep.subr.bf16.mxu0 0
        %1580 = vmatpush1.bf16.msra.mxu0 0
        %1581 = vmatprep.subr.bf16.mxu0 0
        %1582 = vmatpush1.bf16.msra.mxu0 0
        %1583 = vmatprep.subr.bf16.mxu0 0
        %1584 = vmatpush1.bf16.msra.mxu0 0
        %1585 = vmatprep.mubr.bf16.mxu0 %v1526
        %1586 = vmatmul.mubr.bf16.gmra.mrb[0].mxu0 %v1449
        %v1587 = vpop.f32.mrb[0].mxu0
        %v1588 = vadd.f32 0.0, %v1587
        %v1589 = vpop.f32.mrb[0].mxu0
        %v1590 = vpop.f32.mrb[0].mxu0
        %v1591 = vadd.f32 0.0, %v1590
        %v1592 = vpop.f32.mrb[0].mxu0
        %1593 = vmatprep.mubr.bf16.mxu0 %v1529
        %1594 = vmatmul.mubr.bf16.gmra.mrb[0].mxu0 %v1451
        %v1595 = vpop.f32.mrb[0].mxu0
        %v1596 = vadd.f32 0.0, %v1595
        %v1597 = vpop.f32.mrb[0].mxu0
        %v1598 = vpop.f32.mrb[0].mxu0
        %v1599 = vadd.f32 0.0, %v1598
        %v1600 = vpop.f32.mrb[0].mxu0
        %1601 = vmatprep.mubr.bf16.mxu0 %v1532
        %1602 = vmatmul.mubr.bf16.gmra.mrb[0].mxu0 %v1453
        %v1603 = vpop.f32.mrb[0].mxu0
        %v1604 = vadd.f32 0.0, %v1603
        %v1605 = vpop.f32.mrb[0].mxu0
        %v1606 = vpop.f32.mrb[0].mxu0
        %v1607 = vadd.f32 0.0, %v1606
        %v1608 = vpop.f32.mrb[0].mxu0
        %1609 = vmatprep.mubr.bf16.mxu0 %v1535
        %1610 = vmatmul.mubr.bf16.gmra.mrb[0].mxu0 %v1455
        %v1611 = vpop.f32.mrb[0].mxu0
        %v1612 = vadd.f32 0.0, %v1611
        %v1613 = vpop.f32.mrb[0].mxu0
        %v1614 = vpop.f32.mrb[0].mxu0
        %v1615 = vadd.f32 0.0, %v1614
        %v1616 = vpop.f32.mrb[0].mxu0
        %1617 = vmatprep.mubr.bf16.mxu0 %v1538
        %1618 = vmatmul.mubr.bf16.gmra.mrb[0].mxu0 %v1457
        %v1619 = vpop.f32.mrb[0].mxu0
        %v1620 = vadd.f32 0.0, %v1619
        %v1621 = vpop.f32.mrb[0].mxu0
        %v1622 = vpop.f32.mrb[0].mxu0
        %v1623 = vadd.f32 0.0, %v1622
        %v1624 = vpop.f32.mrb[0].mxu0
        %1625 = vmatprep.mubr.bf16.mxu0 %v1541
        %1626 = vmatmul.mubr.bf16.gmra.mrb[0].mxu0 %v1459
        %v1627 = vpop.f32.mrb[0].mxu0
        %v1628 = vadd.f32 0.0, %v1627
        %v1629 = vpop.f32.mrb[0].mxu0
        %v1630 = vpop.f32.mrb[0].mxu0
        %v1631 = vadd.f32 0.0, %v1630
        %v1632 = vpop.f32.mrb[0].mxu0
        %1633 = vmatprep.mubr.bf16.mxu0 %v1544
        %1634 = vmatmul.mubr.bf16.gmra.mrb[0].mxu0 %v1461
        %v1635 = vpop.f32.mrb[0].mxu0
        %v1636 = vadd.f32 0.0, %v1635
        %v1637 = vpop.f32.mrb[0].mxu0
        %v1638 = vpop.f32.mrb[0].mxu0
        %v1639 = vadd.f32 0.0, %v1638
        %v1640 = vpop.f32.mrb[0].mxu0
        %1641 = vmatprep.mubr.bf16.mxu0 %v1547
        %1642 = vmatmul.mubr.bf16.gmra.mrb[0].mxu0 %v1463
        %v1643 = vpop.f32.mrb[0].mxu0
        %v1644 = vadd.f32 0.0, %v1643
        %v1645 = vpop.f32.mrb[0].mxu0
        %v1646 = vpop.f32.mrb[0].mxu0
        %v1647 = vadd.f32 0.0, %v1646
        %v1648 = vpop.f32.mrb[0].mxu0
        %1649 = vdwg.mxu0
        %1650 = vst [vmem:[#allocation2] sm:$0xff] %v1588
        %1651 = vst [vmem:[#allocation2 + $0x8] sm:$0xff] %v1591
        %1652 = vst [vmem:[#allocation2 + $0x10] sm:$0xff] %v1596
        %1653 = vst [vmem:[#allocation2 + $0x18] sm:$0xff] %v1599
        %1654 = vst [vmem:[#allocation2 + $0x20] sm:$0xff] %v1604
        %1655 = vst [vmem:[#allocation2 + $0x28] sm:$0xff] %v1607
        %1656 = vst [vmem:[#allocation2 + $0x30] sm:$0xff] %v1612
        %1657 = vst [vmem:[#allocation2 + $0x38] sm:$0xff] %v1615
        %1658 = vst [vmem:[#allocation2 + $0x40] sm:$0xff] %v1620
        %1659 = vst [vmem:[#allocation2 + $0x48] sm:$0xff] %v1623
        %1660 = vst [vmem:[#allocation2 + $0x50] sm:$0xff] %v1628
        %1661 = vst [vmem:[#allocation2 + $0x58] sm:$0xff] %v1631
        %1662 = vst [vmem:[#allocation2 + $0x60] sm:$0xff] %v1636
        %1663 = vst [vmem:[#allocation2 + $0x68] sm:$0xff] %v1639
        %1664 = vst [vmem:[#allocation2 + $0x70] sm:$0xff] %v1644
        %1665 = vst [vmem:[#allocation2 + $0x78] sm:$0xff] %v1647
        %s1666 = scalar_lea.vmem %s976, 128 [#allocation3]
        %v1667 = vld [vmem:[%s1666] sm:$0xff]
        %v1668 = vld [vmem:[%s1666 + $0x8] sm:$0xff]
        %v1669 = vld [vmem:[%s1666 + $0x10] sm:$0xff]
        %v1670 = vld [vmem:[%s1666 + $0x18] sm:$0xff]
        %v1671 = vld [vmem:[%s1666 + $0x20] sm:$0xff]
        %v1672 = vld [vmem:[%s1666 + $0x28] sm:$0xff]
        %v1673 = vld [vmem:[%s1666 + $0x30] sm:$0xff]
        %v1674 = vld [vmem:[%s1666 + $0x38] sm:$0xff]
        %v1675 = vld [vmem:[%s1666 + $0x40] sm:$0xff]
        %v1676 = vld [vmem:[%s1666 + $0x48] sm:$0xff]
        %v1677 = vld [vmem:[%s1666 + $0x50] sm:$0xff]
        %v1678 = vld [vmem:[%s1666 + $0x58] sm:$0xff]
        %v1679 = vld [vmem:[%s1666 + $0x60] sm:$0xff]
        %v1680 = vld [vmem:[%s1666 + $0x68] sm:$0xff]
        %v1681 = vld [vmem:[%s1666 + $0x70] sm:$0xff]
        %v1682 = vld [vmem:[%s1666 + $0x78] sm:$0xff]
        %v1699 = vunpack.c.l.b16 %v1667
        %v1700 = vunpack.c.h.b16 %v1667
        %v1701 = vunpack.c.l.b16 %v1668
        %v1702 = vunpack.c.h.b16 %v1668
        %v1703 = vunpack.c.l.b16 %v1669
        %v1704 = vunpack.c.h.b16 %v1669
        %v1705 = vunpack.c.l.b16 %v1670
        %v1706 = vunpack.c.h.b16 %v1670
        %v1707 = vunpack.c.l.b16 %v1671
        %v1708 = vunpack.c.h.b16 %v1671
        %v1709 = vunpack.c.l.b16 %v1672
        %v1710 = vunpack.c.h.b16 %v1672
        %v1711 = vunpack.c.l.b16 %v1673
        %v1712 = vunpack.c.h.b16 %v1673
        %v1713 = vunpack.c.l.b16 %v1674
        %v1714 = vunpack.c.h.b16 %v1674
        %v1715 = vunpack.c.l.b16 %v1675
        %v1716 = vunpack.c.h.b16 %v1675
        %v1717 = vunpack.c.l.b16 %v1676
        %v1718 = vunpack.c.h.b16 %v1676
        %v1719 = vunpack.c.l.b16 %v1677
        %v1720 = vunpack.c.h.b16 %v1677
        %v1721 = vunpack.c.l.b16 %v1678
        %v1722 = vunpack.c.h.b16 %v1678
        %v1723 = vunpack.c.l.b16 %v1679
        %v1724 = vunpack.c.h.b16 %v1679
        %v1725 = vunpack.c.l.b16 %v1680
        %v1726 = vunpack.c.h.b16 %v1680
        %v1727 = vunpack.c.l.b16 %v1681
        %v1728 = vunpack.c.h.b16 %v1681
        %v1729 = vunpack.c.l.b16 %v1682
        %v1730 = vunpack.c.h.b16 %v1682
        %v1731 = vpack.c.b16 %v1701, %v1699
        %v1732 = vpack.c.b16 %v1702, %v1700
        %v1733 = vpack.c.b16 %v1705, %v1703
        %v1734 = vpack.c.b16 %v1706, %v1704
        %v1735 = vpack.c.b16 %v1709, %v1707
        %v1736 = vpack.c.b16 %v1710, %v1708
        %v1737 = vpack.c.b16 %v1713, %v1711
        %v1738 = vpack.c.b16 %v1714, %v1712
        %v1739 = vpack.c.b16 %v1717, %v1715
        %v1740 = vpack.c.b16 %v1718, %v1716
        %v1741 = vpack.c.b16 %v1721, %v1719
        %v1742 = vpack.c.b16 %v1722, %v1720
        %v1743 = vpack.c.b16 %v1725, %v1723
        %v1744 = vpack.c.b16 %v1726, %v1724
        %v1745 = vpack.c.b16 %v1729, %v1727
        %v1746 = vpack.c.b16 %v1730, %v1728
        %v1756 = vsel %vm1524, %v1732, 0
        %v1759 = vsel %vm1524, %v1734, 0
        %v1762 = vsel %vm1524, %v1736, 0
        %v1765 = vsel %vm1524, %v1738, 0
        %v1768 = vsel %vm1524, %v1740, 0
        %v1771 = vsel %vm1524, %v1742, 0
        %v1774 = vsel %vm1524, %v1744, 0
        %v1777 = vsel %vm1524, %v1746, 0
        %1779 = vmatprep.subr.bf16.mxu0 0
        %1780 = vmatpush1.bf16.msra.mxu0 %v1507
        %1781 = vmatprep.subr.bf16.mxu0 0
        %1782 = vmatpush1.bf16.msra.mxu0 %v1508
        %1783 = vmatprep.subr.bf16.mxu0 0
        %1784 = vmatpush1.bf16.msra.mxu0 %v1509
        %1785 = vmatprep.subr.bf16.mxu0 0
        %1786 = vmatpush1.bf16.msra.mxu0 %v1510
        %1787 = vmatprep.subr.bf16.mxu0 0
        %1788 = vmatpush1.bf16.msra.mxu0 %v1511
        %1789 = vmatprep.subr.bf16.mxu0 0
        %1790 = vmatpush1.bf16.msra.mxu0 %v1512
        %1791 = vmatprep.subr.bf16.mxu0 0
        %1792 = vmatpush1.bf16.msra.mxu0 %v1513
        %1793 = vmatprep.subr.bf16.mxu0 0
        %1794 = vmatpush1.bf16.msra.mxu0 %v1514
        %1795 = vmatprep.subr.bf16.mxu0 0
        %1796 = vmatpush1.bf16.msra.mxu0 %v1551
        %1797 = vmatprep.subr.bf16.mxu0 0
        %1798 = vmatpush1.bf16.msra.mxu0 0
        %1799 = vmatprep.subr.bf16.mxu0 0
        %1800 = vmatpush1.bf16.msra.mxu0 0
        %1801 = vmatprep.subr.bf16.mxu0 0
        %1802 = vmatpush1.bf16.msra.mxu0 0
        %1803 = vmatprep.subr.bf16.mxu0 0
        %1804 = vmatpush1.bf16.msra.mxu0 0
        %1805 = vmatprep.subr.bf16.mxu0 0
        %1806 = vmatpush1.bf16.msra.mxu0 0
        %1807 = vmatprep.subr.bf16.mxu0 0
        %1808 = vmatpush1.bf16.msra.mxu0 0
        %1809 = vmatprep.subr.bf16.mxu0 0
        %1810 = vmatpush1.bf16.msra.mxu0 0
        %1811 = vmatprep.mubr.bf16.mxu0 %v1756
        %1812 = vmatmul.mubr.bf16.gmra.mrb[0].mxu0 %v1731
        %v1813 = vpop.f32.mrb[0].mxu0
        %v1814 = vadd.f32 0.0, %v1813
        %v1815 = vpop.f32.mrb[0].mxu0
        %v1816 = vpop.f32.mrb[0].mxu0
        %v1817 = vadd.f32 0.0, %v1816
        %v1818 = vpop.f32.mrb[0].mxu0
        %1819 = vmatprep.mubr.bf16.mxu0 %v1759
        %1820 = vmatmul.mubr.bf16.gmra.mrb[0].mxu0 %v1733
        %v1821 = vpop.f32.mrb[0].mxu0
        %v1822 = vadd.f32 0.0, %v1821
        %v1823 = vpop.f32.mrb[0].mxu0
        %v1824 = vpop.f32.mrb[0].mxu0
        %v1825 = vadd.f32 0.0, %v1824
        %v1826 = vpop.f32.mrb[0].mxu0
        %1827 = vmatprep.mubr.bf16.mxu0 %v1762
        %1828 = vmatmul.mubr.bf16.gmra.mrb[0].mxu0 %v1735
        %v1829 = vpop.f32.mrb[0].mxu0
        %v1830 = vadd.f32 0.0, %v1829
        %v1831 = vpop.f32.mrb[0].mxu0
        %v1832 = vpop.f32.mrb[0].mxu0
        %v1833 = vadd.f32 0.0, %v1832
        %v1834 = vpop.f32.mrb[0].mxu0
        %1835 = vmatprep.mubr.bf16.mxu0 %v1765
        %1836 = vmatmul.mubr.bf16.gmra.mrb[0].mxu0 %v1737
        %v1837 = vpop.f32.mrb[0].mxu0
        %v1838 = vadd.f32 0.0, %v1837
        %v1839 = vpop.f32.mrb[0].mxu0
        %v1840 = vpop.f32.mrb[0].mxu0
        %v1841 = vadd.f32 0.0, %v1840
        %v1842 = vpop.f32.mrb[0].mxu0
        %1843 = vmatprep.mubr.bf16.mxu0 %v1768
        %1844 = vmatmul.mubr.bf16.gmra.mrb[0].mxu0 %v1739
        %v1845 = vpop.f32.mrb[0].mxu0
        %v1846 = vadd.f32 0.0, %v1845
        %v1847 = vpop.f32.mrb[0].mxu0
        %v1848 = vpop.f32.mrb[0].mxu0
        %v1849 = vadd.f32 0.0, %v1848
        %v1850 = vpop.f32.mrb[0].mxu0
        %1851 = vmatprep.mubr.bf16.mxu0 %v1771
        %1852 = vmatmul.mubr.bf16.gmra.mrb[0].mxu0 %v1741
        %v1853 = vpop.f32.mrb[0].mxu0
        %v1854 = vadd.f32 0.0, %v1853
        %v1855 = vpop.f32.mrb[0].mxu0
        %v1856 = vpop.f32.mrb[0].mxu0
        %v1857 = vadd.f32 0.0, %v1856
        %v1858 = vpop.f32.mrb[0].mxu0
        %1859 = vmatprep.mubr.bf16.mxu0 %v1774
        %1860 = vmatmul.mubr.bf16.gmra.mrb[0].mxu0 %v1743
        %v1861 = vpop.f32.mrb[0].mxu0
        %v1862 = vadd.f32 0.0, %v1861
        %v1863 = vpop.f32.mrb[0].mxu0
        %v1864 = vpop.f32.mrb[0].mxu0
        %v1865 = vadd.f32 0.0, %v1864
        %v1866 = vpop.f32.mrb[0].mxu0
        %1867 = vmatprep.mubr.bf16.mxu0 %v1777
        %1868 = vmatmul.mubr.bf16.gmra.mrb[0].mxu0 %v1745
        %v1869 = vpop.f32.mrb[0].mxu0
        %v1870 = vadd.f32 0.0, %v1869
        %v1871 = vpop.f32.mrb[0].mxu0
        %v1872 = vpop.f32.mrb[0].mxu0
        %v1873 = vadd.f32 0.0, %v1872
        %v1874 = vpop.f32.mrb[0].mxu0
        %1875 = vdwg.mxu0
        %s1876 = scalar_lea.vmem [#allocation2], 128
        %1877 = vst [vmem:[%s1876] sm:$0xff] %v1814
        %1878 = vst [vmem:[%s1876 + $0x8] sm:$0xff] %v1817
        %1879 = vst [vmem:[%s1876 + $0x10] sm:$0xff] %v1822
        %1880 = vst [vmem:[%s1876 + $0x18] sm:$0xff] %v1825
        %1881 = vst [vmem:[%s1876 + $0x20] sm:$0xff] %v1830
        %1882 = vst [vmem:[%s1876 + $0x28] sm:$0xff] %v1833
        %1883 = vst [vmem:[%s1876 + $0x30] sm:$0xff] %v1838
        %1884 = vst [vmem:[%s1876 + $0x38] sm:$0xff] %v1841
        %1885 = vst [vmem:[%s1876 + $0x40] sm:$0xff] %v1846
        %1886 = vst [vmem:[%s1876 + $0x48] sm:$0xff] %v1849
        %1887 = vst [vmem:[%s1876 + $0x50] sm:$0xff] %v1854
        %1888 = vst [vmem:[%s1876 + $0x58] sm:$0xff] %v1857
        %1889 = vst [vmem:[%s1876 + $0x60] sm:$0xff] %v1862
        %1890 = vst [vmem:[%s1876 + $0x68] sm:$0xff] %v1865
        %1891 = vst [vmem:[%s1876 + $0x70] sm:$0xff] %v1870
        %1892 = vst [vmem:[%s1876 + $0x78] sm:$0xff] %v1873
        %s1893 = scalar_lea.vmem %s976, 256 [#allocation3]
        %v1894 = vld [vmem:[%s1893] sm:$0xff]
        %v1895 = vld [vmem:[%s1893 + $0x8] sm:$0xff]
        %v1896 = vld [vmem:[%s1893 + $0x10] sm:$0xff]
        %v1897 = vld [vmem:[%s1893 + $0x18] sm:$0xff]
        %v1898 = vld [vmem:[%s1893 + $0x20] sm:$0xff]
        %v1899 = vld [vmem:[%s1893 + $0x28] sm:$0xff]
        %v1900 = vld [vmem:[%s1893 + $0x30] sm:$0xff]
        %v1901 = vld [vmem:[%s1893 + $0x38] sm:$0xff]
        %v1902 = vld [vmem:[%s1893 + $0x40] sm:$0xff]
        %v1903 = vld [vmem:[%s1893 + $0x48] sm:$0xff]
        %v1904 = vld [vmem:[%s1893 + $0x50] sm:$0xff]
        %v1905 = vld [vmem:[%s1893 + $0x58] sm:$0xff]
        %v1906 = vld [vmem:[%s1893 + $0x60] sm:$0xff]
        %v1907 = vld [vmem:[%s1893 + $0x68] sm:$0xff]
        %v1908 = vld [vmem:[%s1893 + $0x70] sm:$0xff]
        %v1909 = vld [vmem:[%s1893 + $0x78] sm:$0xff]
        %v1926 = vunpack.c.l.b16 %v1894
        %v1927 = vunpack.c.h.b16 %v1894
        %v1928 = vunpack.c.l.b16 %v1895
        %v1929 = vunpack.c.h.b16 %v1895
        %v1930 = vunpack.c.l.b16 %v1896
        %v1931 = vunpack.c.h.b16 %v1896
        %v1932 = vunpack.c.l.b16 %v1897
        %v1933 = vunpack.c.h.b16 %v1897
        %v1934 = vunpack.c.l.b16 %v1898
        %v1935 = vunpack.c.h.b16 %v1898
        %v1936 = vunpack.c.l.b16 %v1899
        %v1937 = vunpack.c.h.b16 %v1899
        %v1938 = vunpack.c.l.b16 %v1900
        %v1939 = vunpack.c.h.b16 %v1900
        %v1940 = vunpack.c.l.b16 %v1901
        %v1941 = vunpack.c.h.b16 %v1901
        %v1942 = vunpack.c.l.b16 %v1902
        %v1943 = vunpack.c.h.b16 %v1902
        %v1944 = vunpack.c.l.b16 %v1903
        %v1945 = vunpack.c.h.b16 %v1903
        %v1946 = vunpack.c.l.b16 %v1904
        %v1947 = vunpack.c.h.b16 %v1904
        %v1948 = vunpack.c.l.b16 %v1905
        %v1949 = vunpack.c.h.b16 %v1905
        %v1950 = vunpack.c.l.b16 %v1906
        %v1951 = vunpack.c.h.b16 %v1906
        %v1952 = vunpack.c.l.b16 %v1907
        %v1953 = vunpack.c.h.b16 %v1907
        %v1954 = vunpack.c.l.b16 %v1908
        %v1955 = vunpack.c.h.b16 %v1908
        %v1956 = vunpack.c.l.b16 %v1909
        %v1957 = vunpack.c.h.b16 %v1909
        %v1958 = vpack.c.b16 %v1928, %v1926
        %v1959 = vpack.c.b16 %v1929, %v1927
        %v1960 = vpack.c.b16 %v1932, %v1930
        %v1961 = vpack.c.b16 %v1933, %v1931
        %v1962 = vpack.c.b16 %v1936, %v1934
        %v1963 = vpack.c.b16 %v1937, %v1935
        %v1964 = vpack.c.b16 %v1940, %v1938
        %v1965 = vpack.c.b16 %v1941, %v1939
        %v1966 = vpack.c.b16 %v1944, %v1942
        %v1967 = vpack.c.b16 %v1945, %v1943
        %v1968 = vpack.c.b16 %v1948, %v1946
        %v1969 = vpack.c.b16 %v1949, %v1947
        %v1970 = vpack.c.b16 %v1952, %v1950
        %v1971 = vpack.c.b16 %v1953, %v1951
        %v1972 = vpack.c.b16 %v1956, %v1954
        %v1973 = vpack.c.b16 %v1957, %v1955
        %v1983 = vsel %vm1524, %v1959, 0
        %v1986 = vsel %vm1524, %v1961, 0
        %v1989 = vsel %vm1524, %v1963, 0
        %v1992 = vsel %vm1524, %v1965, 0
        %v1995 = vsel %vm1524, %v1967, 0
        %v1998 = vsel %vm1524, %v1969, 0
        %v2001 = vsel %vm1524, %v1971, 0
        %v2004 = vsel %vm1524, %v1973, 0
        %2006 = vmatprep.subr.bf16.mxu0 0
        %2007 = vmatpush1.bf16.msra.mxu0 %v1507
        %2008 = vmatprep.subr.bf16.mxu0 0
        %2009 = vmatpush1.bf16.msra.mxu0 %v1508
        %2010 = vmatprep.subr.bf16.mxu0 0
        %2011 = vmatpush1.bf16.msra.mxu0 %v1509
        %2012 = vmatprep.subr.bf16.mxu0 0
        %2013 = vmatpush1.bf16.msra.mxu0 %v1510
        %2014 = vmatprep.subr.bf16.mxu0 0
        %2015 = vmatpush1.bf16.msra.mxu0 %v1511
        %2016 = vmatprep.subr.bf16.mxu0 0
        %2017 = vmatpush1.bf16.msra.mxu0 %v1512
        %2018 = vmatprep.subr.bf16.mxu0 0
        %2019 = vmatpush1.bf16.msra.mxu0 %v1513
        %2020 = vmatprep.subr.bf16.mxu0 0
        %2021 = vmatpush1.bf16.msra.mxu0 %v1514
        %2022 = vmatprep.subr.bf16.mxu0 0
        %2023 = vmatpush1.bf16.msra.mxu0 %v1551
        %2024 = vmatprep.subr.bf16.mxu0 0
        %2025 = vmatpush1.bf16.msra.mxu0 0
        %2026 = vmatprep.subr.bf16.mxu0 0
        %2027 = vmatpush1.bf16.msra.mxu0 0
        %2028 = vmatprep.subr.bf16.mxu0 0
        %2029 = vmatpush1.bf16.msra.mxu0 0
        %2030 = vmatprep.subr.bf16.mxu0 0
        %2031 = vmatpush1.bf16.msra.mxu0 0
        %2032 = vmatprep.subr.bf16.mxu0 0
        %2033 = vmatpush1.bf16.msra.mxu0 0
        %2034 = vmatprep.subr.bf16.mxu0 0
        %2035 = vmatpush1.bf16.msra.mxu0 0
        %2036 = vmatprep.subr.bf16.mxu0 0
        %2037 = vmatpush1.bf16.msra.mxu0 0
        %2038 = vmatprep.mubr.bf16.mxu0 %v1983
        %2039 = vmatmul.mubr.bf16.gmra.mrb[0].mxu0 %v1958
        %v2040 = vpop.f32.mrb[0].mxu0
        %v2041 = vadd.f32 0.0, %v2040
        %v2042 = vpop.f32.mrb[0].mxu0
        %v2043 = vpop.f32.mrb[0].mxu0
        %v2044 = vadd.f32 0.0, %v2043
        %v2045 = vpop.f32.mrb[0].mxu0
        %2046 = vmatprep.mubr.bf16.mxu0 %v1986
        %2047 = vmatmul.mubr.bf16.gmra.mrb[0].mxu0 %v1960
        %v2048 = vpop.f32.mrb[0].mxu0
        %v2049 = vadd.f32 0.0, %v2048
        %v2050 = vpop.f32.mrb[0].mxu0
        %v2051 = vpop.f32.mrb[0].mxu0
        %v2052 = vadd.f32 0.0, %v2051
        %v2053 = vpop.f32.mrb[0].mxu0
        %2054 = vmatprep.mubr.bf16.mxu0 %v1989
        %2055 = vmatmul.mubr.bf16.gmra.mrb[0].mxu0 %v1962
        %v2056 = vpop.f32.mrb[0].mxu0
        %v2057 = vadd.f32 0.0, %v2056
        %v2058 = vpop.f32.mrb[0].mxu0
        %v2059 = vpop.f32.mrb[0].mxu0
        %v2060 = vadd.f32 0.0, %v2059
        %v2061 = vpop.f32.mrb[0].mxu0
        %2062 = vmatprep.mubr.bf16.mxu0 %v1992
        %2063 = vmatmul.mubr.bf16.gmra.mrb[0].mxu0 %v1964
        %v2064 = vpop.f32.mrb[0].mxu0
        %v2065 = vadd.f32 0.0, %v2064
        %v2066 = vpop.f32.mrb[0].mxu0
        %v2067 = vpop.f32.mrb[0].mxu0
        %v2068 = vadd.f32 0.0, %v2067
        %v2069 = vpop.f32.mrb[0].mxu0
        %2070 = vmatprep.mubr.bf16.mxu0 %v1995
        %2071 = vmatmul.mubr.bf16.gmra.mrb[0].mxu0 %v1966
        %v2072 = vpop.f32.mrb[0].mxu0
        %v2073 = vadd.f32 0.0, %v2072
        %v2074 = vpop.f32.mrb[0].mxu0
        %v2075 = vpop.f32.mrb[0].mxu0
        %v2076 = vadd.f32 0.0, %v2075
        %v2077 = vpop.f32.mrb[0].mxu0
        %2078 = vmatprep.mubr.bf16.mxu0 %v1998
        %2079 = vmatmul.mubr.bf16.gmra.mrb[0].mxu0 %v1968
        %v2080 = vpop.f32.mrb[0].mxu0
        %v2081 = vadd.f32 0.0, %v2080
        %v2082 = vpop.f32.mrb[0].mxu0
        %v2083 = vpop.f32.mrb[0].mxu0
        %v2084 = vadd.f32 0.0, %v2083
        %v2085 = vpop.f32.mrb[0].mxu0
        %2086 = vmatprep.mubr.bf16.mxu0 %v2001
        %2087 = vmatmul.mubr.bf16.gmra.mrb[0].mxu0 %v1970
        %v2088 = vpop.f32.mrb[0].mxu0
        %v2089 = vadd.f32 0.0, %v2088
        %v2090 = vpop.f32.mrb[0].mxu0
        %v2091 = vpop.f32.mrb[0].mxu0
        %v2092 = vadd.f32 0.0, %v2091
        %v2093 = vpop.f32.mrb[0].mxu0
        %2094 = vmatprep.mubr.bf16.mxu0 %v2004
        %2095 = vmatmul.mubr.bf16.gmra.mrb[0].mxu0 %v1972
        %v2096 = vpop.f32.mrb[0].mxu0
        %v2097 = vadd.f32 0.0, %v2096
        %v2098 = vpop.f32.mrb[0].mxu0
        %v2099 = vpop.f32.mrb[0].mxu0
        %v2100 = vadd.f32 0.0, %v2099
        %v2101 = vpop.f32.mrb[0].mxu0
        %2102 = vdwg.mxu0
        %s2103 = scalar_lea.vmem [#allocation2], 256
        %2104 = vst [vmem:[%s2103] sm:$0xff] %v2041
        %2105 = vst [vmem:[%s2103 + $0x8] sm:$0xff] %v2044
        %2106 = vst [vmem:[%s2103 + $0x10] sm:$0xff] %v2049
        %2107 = vst [vmem:[%s2103 + $0x18] sm:$0xff] %v2052
        %2108 = vst [vmem:[%s2103 + $0x20] sm:$0xff] %v2057
        %2109 = vst [vmem:[%s2103 + $0x28] sm:$0xff] %v2060
        %2110 = vst [vmem:[%s2103 + $0x30] sm:$0xff] %v2065
        %2111 = vst [vmem:[%s2103 + $0x38] sm:$0xff] %v2068
        %2112 = vst [vmem:[%s2103 + $0x40] sm:$0xff] %v2073
        %2113 = vst [vmem:[%s2103 + $0x48] sm:$0xff] %v2076
        %2114 = vst [vmem:[%s2103 + $0x50] sm:$0xff] %v2081
        %2115 = vst [vmem:[%s2103 + $0x58] sm:$0xff] %v2084
        %2116 = vst [vmem:[%s2103 + $0x60] sm:$0xff] %v2089
        %2117 = vst [vmem:[%s2103 + $0x68] sm:$0xff] %v2092
        %2118 = vst [vmem:[%s2103 + $0x70] sm:$0xff] %v2097
        %2119 = vst [vmem:[%s2103 + $0x78] sm:$0xff] %v2100
        %s2120 = scalar_lea.vmem %s976, 384 [#allocation3]
        %v2121 = vld [vmem:[%s2120] sm:$0xff]
        %v2122 = vld [vmem:[%s2120 + $0x8] sm:$0xff]
        %v2123 = vld [vmem:[%s2120 + $0x10] sm:$0xff]
        %v2124 = vld [vmem:[%s2120 + $0x18] sm:$0xff]
        %v2125 = vld [vmem:[%s2120 + $0x20] sm:$0xff]
        %v2126 = vld [vmem:[%s2120 + $0x28] sm:$0xff]
        %v2127 = vld [vmem:[%s2120 + $0x30] sm:$0xff]
        %v2128 = vld [vmem:[%s2120 + $0x38] sm:$0xff]
        %v2129 = vld [vmem:[%s2120 + $0x40] sm:$0xff]
        %v2130 = vld [vmem:[%s2120 + $0x48] sm:$0xff]
        %v2131 = vld [vmem:[%s2120 + $0x50] sm:$0xff]
        %v2132 = vld [vmem:[%s2120 + $0x58] sm:$0xff]
        %v2133 = vld [vmem:[%s2120 + $0x60] sm:$0xff]
        %v2134 = vld [vmem:[%s2120 + $0x68] sm:$0xff]
        %v2135 = vld [vmem:[%s2120 + $0x70] sm:$0xff]
        %v2136 = vld [vmem:[%s2120 + $0x78] sm:$0xff]
        %v2153 = vunpack.c.l.b16 %v2121
        %v2154 = vunpack.c.h.b16 %v2121
        %v2155 = vunpack.c.l.b16 %v2122
        %v2156 = vunpack.c.h.b16 %v2122
        %v2157 = vunpack.c.l.b16 %v2123
        %v2158 = vunpack.c.h.b16 %v2123
        %v2159 = vunpack.c.l.b16 %v2124
        %v2160 = vunpack.c.h.b16 %v2124
        %v2161 = vunpack.c.l.b16 %v2125
        %v2162 = vunpack.c.h.b16 %v2125
        %v2163 = vunpack.c.l.b16 %v2126
        %v2164 = vunpack.c.h.b16 %v2126
        %v2165 = vunpack.c.l.b16 %v2127
        %v2166 = vunpack.c.h.b16 %v2127
        %v2167 = vunpack.c.l.b16 %v2128
        %v2168 = vunpack.c.h.b16 %v2128
        %v2169 = vunpack.c.l.b16 %v2129
        %v2170 = vunpack.c.h.b16 %v2129
        %v2171 = vunpack.c.l.b16 %v2130
        %v2172 = vunpack.c.h.b16 %v2130
        %v2173 = vunpack.c.l.b16 %v2131
        %v2174 = vunpack.c.h.b16 %v2131
        %v2175 = vunpack.c.l.b16 %v2132
        %v2176 = vunpack.c.h.b16 %v2132
        %v2177 = vunpack.c.l.b16 %v2133
        %v2178 = vunpack.c.h.b16 %v2133
        %v2179 = vunpack.c.l.b16 %v2134
        %v2180 = vunpack.c.h.b16 %v2134
        %v2181 = vunpack.c.l.b16 %v2135
        %v2182 = vunpack.c.h.b16 %v2135
        %v2183 = vunpack.c.l.b16 %v2136
        %v2184 = vunpack.c.h.b16 %v2136
        %v2185 = vpack.c.b16 %v2155, %v2153
        %v2186 = vpack.c.b16 %v2156, %v2154
        %v2187 = vpack.c.b16 %v2159, %v2157
        %v2188 = vpack.c.b16 %v2160, %v2158
        %v2189 = vpack.c.b16 %v2163, %v2161
        %v2190 = vpack.c.b16 %v2164, %v2162
        %v2191 = vpack.c.b16 %v2167, %v2165
        %v2192 = vpack.c.b16 %v2168, %v2166
        %v2193 = vpack.c.b16 %v2171, %v2169
        %v2194 = vpack.c.b16 %v2172, %v2170
        %v2195 = vpack.c.b16 %v2175, %v2173
        %v2196 = vpack.c.b16 %v2176, %v2174
        %v2197 = vpack.c.b16 %v2179, %v2177
        %v2198 = vpack.c.b16 %v2180, %v2178
        %v2199 = vpack.c.b16 %v2183, %v2181
        %v2200 = vpack.c.b16 %v2184, %v2182
        %v2210 = vsel %vm1524, %v2186, 0
        %v2213 = vsel %vm1524, %v2188, 0
        %v2216 = vsel %vm1524, %v2190, 0
        %v2219 = vsel %vm1524, %v2192, 0
        %v2222 = vsel %vm1524, %v2194, 0
        %v2225 = vsel %vm1524, %v2196, 0
        %v2228 = vsel %vm1524, %v2198, 0
        %v2231 = vsel %vm1524, %v2200, 0
        %2233 = vmatprep.subr.bf16.mxu0 0
        %2234 = vmatpush1.bf16.msra.mxu0 %v1507
        %2235 = vmatprep.subr.bf16.mxu0 0
        %2236 = vmatpush1.bf16.msra.mxu0 %v1508
        %2237 = vmatprep.subr.bf16.mxu0 0
        %2238 = vmatpush1.bf16.msra.mxu0 %v1509
        %2239 = vmatprep.subr.bf16.mxu0 0
        %2240 = vmatpush1.bf16.msra.mxu0 %v1510
        %2241 = vmatprep.subr.bf16.mxu0 0
        %2242 = vmatpush1.bf16.msra.mxu0 %v1511
        %2243 = vmatprep.subr.bf16.mxu0 0
        %2244 = vmatpush1.bf16.msra.mxu0 %v1512
        %2245 = vmatprep.subr.bf16.mxu0 0
        %2246 = vmatpush1.bf16.msra.mxu0 %v1513
        %2247 = vmatprep.subr.bf16.mxu0 0
        %2248 = vmatpush1.bf16.msra.mxu0 %v1514
        %2249 = vmatprep.subr.bf16.mxu0 0
        %2250 = vmatpush1.bf16.msra.mxu0 %v1551
        %2251 = vmatprep.subr.bf16.mxu0 0
        %2252 = vmatpush1.bf16.msra.mxu0 0
        %2253 = vmatprep.subr.bf16.mxu0 0
        %2254 = vmatpush1.bf16.msra.mxu0 0
        %2255 = vmatprep.subr.bf16.mxu0 0
        %2256 = vmatpush1.bf16.msra.mxu0 0
        %2257 = vmatprep.subr.bf16.mxu0 0
        %2258 = vmatpush1.bf16.msra.mxu0 0
        %2259 = vmatprep.subr.bf16.mxu0 0
        %2260 = vmatpush1.bf16.msra.mxu0 0
        %2261 = vmatprep.subr.bf16.mxu0 0
        %2262 = vmatpush1.bf16.msra.mxu0 0
        %2263 = vmatprep.subr.bf16.mxu0 0
        %2264 = vmatpush1.bf16.msra.mxu0 0
        %2265 = vmatprep.mubr.bf16.mxu0 %v2210
        %2266 = vmatmul.mubr.bf16.gmra.mrb[0].mxu0 %v2185
        %v2267 = vpop.f32.mrb[0].mxu0
        %v2268 = vadd.f32 0.0, %v2267
        %v2269 = vpop.f32.mrb[0].mxu0
        %v2270 = vpop.f32.mrb[0].mxu0
        %v2271 = vadd.f32 0.0, %v2270
        %v2272 = vpop.f32.mrb[0].mxu0
        %2273 = vmatprep.mubr.bf16.mxu0 %v2213
        %2274 = vmatmul.mubr.bf16.gmra.mrb[0].mxu0 %v2187
        %v2275 = vpop.f32.mrb[0].mxu0
        %v2276 = vadd.f32 0.0, %v2275
        %v2277 = vpop.f32.mrb[0].mxu0
        %v2278 = vpop.f32.mrb[0].mxu0
        %v2279 = vadd.f32 0.0, %v2278
        %v2280 = vpop.f32.mrb[0].mxu0
        %2281 = vmatprep.mubr.bf16.mxu0 %v2216
        %2282 = vmatmul.mubr.bf16.gmra.mrb[0].mxu0 %v2189
        %v2283 = vpop.f32.mrb[0].mxu0
        %v2284 = vadd.f32 0.0, %v2283
        %v2285 = vpop.f32.mrb[0].mxu0
        %v2286 = vpop.f32.mrb[0].mxu0
        %v2287 = vadd.f32 0.0, %v2286
        %v2288 = vpop.f32.mrb[0].mxu0
        %2289 = vmatprep.mubr.bf16.mxu0 %v2219
        %2290 = vmatmul.mubr.bf16.gmra.mrb[0].mxu0 %v2191
        %v2291 = vpop.f32.mrb[0].mxu0
        %v2292 = vadd.f32 0.0, %v2291
        %v2293 = vpop.f32.mrb[0].mxu0
        %v2294 = vpop.f32.mrb[0].mxu0
        %v2295 = vadd.f32 0.0, %v2294
        %v2296 = vpop.f32.mrb[0].mxu0
        %2297 = vmatprep.mubr.bf16.mxu0 %v2222
        %2298 = vmatmul.mubr.bf16.gmra.mrb[0].mxu0 %v2193
        %v2299 = vpop.f32.mrb[0].mxu0
        %v2300 = vadd.f32 0.0, %v2299
        %v2301 = vpop.f32.mrb[0].mxu0
        %v2302 = vpop.f32.mrb[0].mxu0
        %v2303 = vadd.f32 0.0, %v2302
        %v2304 = vpop.f32.mrb[0].mxu0
        %2305 = vmatprep.mubr.bf16.mxu0 %v2225
        %2306 = vmatmul.mubr.bf16.gmra.mrb[0].mxu0 %v2195
        %v2307 = vpop.f32.mrb[0].mxu0
        %v2308 = vadd.f32 0.0, %v2307
        %v2309 = vpop.f32.mrb[0].mxu0
        %v2310 = vpop.f32.mrb[0].mxu0
        %v2311 = vadd.f32 0.0, %v2310
        %v2312 = vpop.f32.mrb[0].mxu0
        %2313 = vmatprep.mubr.bf16.mxu0 %v2228
        %2314 = vmatmul.mubr.bf16.gmra.mrb[0].mxu0 %v2197
        %v2315 = vpop.f32.mrb[0].mxu0
        %v2316 = vadd.f32 0.0, %v2315
        %v2317 = vpop.f32.mrb[0].mxu0
        %v2318 = vpop.f32.mrb[0].mxu0
        %v2319 = vadd.f32 0.0, %v2318
        %v2320 = vpop.f32.mrb[0].mxu0
        %2321 = vmatprep.mubr.bf16.mxu0 %v2231
        %2322 = vmatmul.mubr.bf16.gmra.mrb[0].mxu0 %v2199
        %v2323 = vpop.f32.mrb[0].mxu0
        %v2324 = vadd.f32 0.0, %v2323
        %v2325 = vpop.f32.mrb[0].mxu0
        %v2326 = vpop.f32.mrb[0].mxu0
        %v2327 = vadd.f32 0.0, %v2326
        %v2328 = vpop.f32.mrb[0].mxu0
        %2329 = vdwg.mxu0
        %s2330 = scalar_lea.vmem [#allocation2], 384
        %2331 = vst [vmem:[%s2330] sm:$0xff] %v2268
        %2332 = vst [vmem:[%s2330 + $0x8] sm:$0xff] %v2271
        %2333 = vst [vmem:[%s2330 + $0x10] sm:$0xff] %v2276
        %2334 = vst [vmem:[%s2330 + $0x18] sm:$0xff] %v2279
        %2335 = vst [vmem:[%s2330 + $0x20] sm:$0xff] %v2284
        %2336 = vst [vmem:[%s2330 + $0x28] sm:$0xff] %v2287
        %2337 = vst [vmem:[%s2330 + $0x30] sm:$0xff] %v2292
        %2338 = vst [vmem:[%s2330 + $0x38] sm:$0xff] %v2295
        %2339 = vst [vmem:[%s2330 + $0x40] sm:$0xff] %v2300
        %2340 = vst [vmem:[%s2330 + $0x48] sm:$0xff] %v2303
        %2341 = vst [vmem:[%s2330 + $0x50] sm:$0xff] %v2308
        %2342 = vst [vmem:[%s2330 + $0x58] sm:$0xff] %v2311
        %2343 = vst [vmem:[%s2330 + $0x60] sm:$0xff] %v2316
        %2344 = vst [vmem:[%s2330 + $0x68] sm:$0xff] %v2319
        %2345 = vst [vmem:[%s2330 + $0x70] sm:$0xff] %v2324
        %2346 = vst [vmem:[%s2330 + $0x78] sm:$0xff] %v2327
        %s2347 = scalar_lea.vmem %s976, 512 [#allocation3]
        %v2348 = vld [vmem:[%s2347] sm:$0xff]
        %v2349 = vld [vmem:[%s2347 + $0x8] sm:$0xff]
        %v2350 = vld [vmem:[%s2347 + $0x10] sm:$0xff]
        %v2351 = vld [vmem:[%s2347 + $0x18] sm:$0xff]
        %v2352 = vld [vmem:[%s2347 + $0x20] sm:$0xff]
        %v2353 = vld [vmem:[%s2347 + $0x28] sm:$0xff]
        %v2354 = vld [vmem:[%s2347 + $0x30] sm:$0xff]
        %v2355 = vld [vmem:[%s2347 + $0x38] sm:$0xff]
        %v2356 = vld [vmem:[%s2347 + $0x40] sm:$0xff]
        %v2357 = vld [vmem:[%s2347 + $0x48] sm:$0xff]
        %v2358 = vld [vmem:[%s2347 + $0x50] sm:$0xff]
        %v2359 = vld [vmem:[%s2347 + $0x58] sm:$0xff]
        %v2360 = vld [vmem:[%s2347 + $0x60] sm:$0xff]
        %v2361 = vld [vmem:[%s2347 + $0x68] sm:$0xff]
        %v2362 = vld [vmem:[%s2347 + $0x70] sm:$0xff]
        %v2363 = vld [vmem:[%s2347 + $0x78] sm:$0xff]
        %v2380 = vunpack.c.l.b16 %v2348
        %v2381 = vunpack.c.h.b16 %v2348
        %v2382 = vunpack.c.l.b16 %v2349
        %v2383 = vunpack.c.h.b16 %v2349
        %v2384 = vunpack.c.l.b16 %v2350
        %v2385 = vunpack.c.h.b16 %v2350
        %v2386 = vunpack.c.l.b16 %v2351
        %v2387 = vunpack.c.h.b16 %v2351
        %v2388 = vunpack.c.l.b16 %v2352
        %v2389 = vunpack.c.h.b16 %v2352
        %v2390 = vunpack.c.l.b16 %v2353
        %v2391 = vunpack.c.h.b16 %v2353
        %v2392 = vunpack.c.l.b16 %v2354
        %v2393 = vunpack.c.h.b16 %v2354
        %v2394 = vunpack.c.l.b16 %v2355
        %v2395 = vunpack.c.h.b16 %v2355
        %v2396 = vunpack.c.l.b16 %v2356
        %v2397 = vunpack.c.h.b16 %v2356
        %v2398 = vunpack.c.l.b16 %v2357
        %v2399 = vunpack.c.h.b16 %v2357
        %v2400 = vunpack.c.l.b16 %v2358
        %v2401 = vunpack.c.h.b16 %v2358
        %v2402 = vunpack.c.l.b16 %v2359
        %v2403 = vunpack.c.h.b16 %v2359
        %v2404 = vunpack.c.l.b16 %v2360
        %v2405 = vunpack.c.h.b16 %v2360
        %v2406 = vunpack.c.l.b16 %v2361
        %v2407 = vunpack.c.h.b16 %v2361
        %v2408 = vunpack.c.l.b16 %v2362
        %v2409 = vunpack.c.h.b16 %v2362
        %v2410 = vunpack.c.l.b16 %v2363
        %v2411 = vunpack.c.h.b16 %v2363
        %v2412 = vpack.c.b16 %v2382, %v2380
        %v2413 = vpack.c.b16 %v2383, %v2381
        %v2414 = vpack.c.b16 %v2386, %v2384
        %v2415 = vpack.c.b16 %v2387, %v2385
        %v2416 = vpack.c.b16 %v2390, %v2388
        %v2417 = vpack.c.b16 %v2391, %v2389
        %v2418 = vpack.c.b16 %v2394, %v2392
        %v2419 = vpack.c.b16 %v2395, %v2393
        %v2420 = vpack.c.b16 %v2398, %v2396
        %v2421 = vpack.c.b16 %v2399, %v2397
        %v2422 = vpack.c.b16 %v2402, %v2400
        %v2423 = vpack.c.b16 %v2403, %v2401
        %v2424 = vpack.c.b16 %v2406, %v2404
        %v2425 = vpack.c.b16 %v2407, %v2405
        %v2426 = vpack.c.b16 %v2410, %v2408
        %v2427 = vpack.c.b16 %v2411, %v2409
        %v2437 = vsel %vm1524, %v2413, 0
        %v2440 = vsel %vm1524, %v2415, 0
        %v2443 = vsel %vm1524, %v2417, 0
        %v2446 = vsel %vm1524, %v2419, 0
        %v2449 = vsel %vm1524, %v2421, 0
        %v2452 = vsel %vm1524, %v2423, 0
        %v2455 = vsel %vm1524, %v2425, 0
        %v2458 = vsel %vm1524, %v2427, 0
        %2460 = vmatprep.subr.bf16.mxu0 0
        %2461 = vmatpush1.bf16.msra.mxu0 %v1507
        %2462 = vmatprep.subr.bf16.mxu0 0
        %2463 = vmatpush1.bf16.msra.mxu0 %v1508
        %2464 = vmatprep.subr.bf16.mxu0 0
        %2465 = vmatpush1.bf16.msra.mxu0 %v1509
        %2466 = vmatprep.subr.bf16.mxu0 0
        %2467 = vmatpush1.bf16.msra.mxu0 %v1510
        %2468 = vmatprep.subr.bf16.mxu0 0
        %2469 = vmatpush1.bf16.msra.mxu0 %v1511
        %2470 = vmatprep.subr.bf16.mxu0 0
        %2471 = vmatpush1.bf16.msra.mxu0 %v1512
        %2472 = vmatprep.subr.bf16.mxu0 0
        %2473 = vmatpush1.bf16.msra.mxu0 %v1513
        %2474 = vmatprep.subr.bf16.mxu0 0
        %2475 = vmatpush1.bf16.msra.mxu0 %v1514
        %2476 = vmatprep.subr.bf16.mxu0 0
        %2477 = vmatpush1.bf16.msra.mxu0 %v1551
        %2478 = vmatprep.subr.bf16.mxu0 0
        %2479 = vmatpush1.bf16.msra.mxu0 0
        %2480 = vmatprep.subr.bf16.mxu0 0
        %2481 = vmatpush1.bf16.msra.mxu0 0
        %2482 = vmatprep.subr.bf16.mxu0 0
        %2483 = vmatpush1.bf16.msra.mxu0 0
        %2484 = vmatprep.subr.bf16.mxu0 0
        %2485 = vmatpush1.bf16.msra.mxu0 0
        %2486 = vmatprep.subr.bf16.mxu0 0
        %2487 = vmatpush1.bf16.msra.mxu0 0
        %2488 = vmatprep.subr.bf16.mxu0 0
        %2489 = vmatpush1.bf16.msra.mxu0 0
        %2490 = vmatprep.subr.bf16.mxu0 0
        %2491 = vmatpush1.bf16.msra.mxu0 0
        %2492 = vmatprep.mubr.bf16.mxu0 %v2437
        %2493 = vmatmul.mubr.bf16.gmra.mrb[0].mxu0 %v2412
        %v2494 = vpop.f32.mrb[0].mxu0
        %v2495 = vadd.f32 0.0, %v2494
        %v2496 = vpop.f32.mrb[0].mxu0
        %v2497 = vpop.f32.mrb[0].mxu0
        %v2498 = vadd.f32 0.0, %v2497
        %v2499 = vpop.f32.mrb[0].mxu0
        %2500 = vmatprep.mubr.bf16.mxu0 %v2440
        %2501 = vmatmul.mubr.bf16.gmra.mrb[0].mxu0 %v2414
        %v2502 = vpop.f32.mrb[0].mxu0
        %v2503 = vadd.f32 0.0, %v2502
        %v2504 = vpop.f32.mrb[0].mxu0
        %v2505 = vpop.f32.mrb[0].mxu0
        %v2506 = vadd.f32 0.0, %v2505
        %v2507 = vpop.f32.mrb[0].mxu0
        %2508 = vmatprep.mubr.bf16.mxu0 %v2443
        %2509 = vmatmul.mubr.bf16.gmra.mrb[0].mxu0 %v2416
        %v2510 = vpop.f32.mrb[0].mxu0
        %v2511 = vadd.f32 0.0, %v2510
        %v2512 = vpop.f32.mrb[0].mxu0
        %v2513 = vpop.f32.mrb[0].mxu0
        %v2514 = vadd.f32 0.0, %v2513
        %v2515 = vpop.f32.mrb[0].mxu0
        %2516 = vmatprep.mubr.bf16.mxu0 %v2446
        %2517 = vmatmul.mubr.bf16.gmra.mrb[0].mxu0 %v2418
        %v2518 = vpop.f32.mrb[0].mxu0
        %v2519 = vadd.f32 0.0, %v2518
        %v2520 = vpop.f32.mrb[0].mxu0
        %v2521 = vpop.f32.mrb[0].mxu0
        %v2522 = vadd.f32 0.0, %v2521
        %v2523 = vpop.f32.mrb[0].mxu0
        %2524 = vmatprep.mubr.bf16.mxu0 %v2449
        %2525 = vmatmul.mubr.bf16.gmra.mrb[0].mxu0 %v2420
        %v2526 = vpop.f32.mrb[0].mxu0
        %v2527 = vadd.f32 0.0, %v2526
        %v2528 = vpop.f32.mrb[0].mxu0
        %v2529 = vpop.f32.mrb[0].mxu0
        %v2530 = vadd.f32 0.0, %v2529
        %v2531 = vpop.f32.mrb[0].mxu0
        %2532 = vmatprep.mubr.bf16.mxu0 %v2452
        %2533 = vmatmul.mubr.bf16.gmra.mrb[0].mxu0 %v2422
        %v2534 = vpop.f32.mrb[0].mxu0
        %v2535 = vadd.f32 0.0, %v2534
        %v2536 = vpop.f32.mrb[0].mxu0
        %v2537 = vpop.f32.mrb[0].mxu0
        %v2538 = vadd.f32 0.0, %v2537
        %v2539 = vpop.f32.mrb[0].mxu0
        %2540 = vmatprep.mubr.bf16.mxu0 %v2455
        %2541 = vmatmul.mubr.bf16.gmra.mrb[0].mxu0 %v2424
        %v2542 = vpop.f32.mrb[0].mxu0
        %v2543 = vadd.f32 0.0, %v2542
        %v2544 = vpop.f32.mrb[0].mxu0
        %v2545 = vpop.f32.mrb[0].mxu0
        %v2546 = vadd.f32 0.0, %v2545
        %v2547 = vpop.f32.mrb[0].mxu0
        %2548 = vmatprep.mubr.bf16.mxu0 %v2458
        %2549 = vmatmul.mubr.bf16.gmra.mrb[0].mxu0 %v2426
        %v2550 = vpop.f32.mrb[0].mxu0
        %v2551 = vadd.f32 0.0, %v2550
        %v2552 = vpop.f32.mrb[0].mxu0
        %v2553 = vpop.f32.mrb[0].mxu0
        %v2554 = vadd.f32 0.0, %v2553
        %v2555 = vpop.f32.mrb[0].mxu0
        %2556 = vdwg.mxu0
        %s2557 = scalar_lea.vmem [#allocation2], 512
        %2558 = vst [vmem:[%s2557] sm:$0xff] %v2495
        %2559 = vst [vmem:[%s2557 + $0x8] sm:$0xff] %v2498
        %2560 = vst [vmem:[%s2557 + $0x10] sm:$0xff] %v2503
        %2561 = vst [vmem:[%s2557 + $0x18] sm:$0xff] %v2506
        %2562 = vst [vmem:[%s2557 + $0x20] sm:$0xff] %v2511
        %2563 = vst [vmem:[%s2557 + $0x28] sm:$0xff] %v2514
        %2564 = vst [vmem:[%s2557 + $0x30] sm:$0xff] %v2519
        %2565 = vst [vmem:[%s2557 + $0x38] sm:$0xff] %v2522
        %2566 = vst [vmem:[%s2557 + $0x40] sm:$0xff] %v2527
        %2567 = vst [vmem:[%s2557 + $0x48] sm:$0xff] %v2530
        %2568 = vst [vmem:[%s2557 + $0x50] sm:$0xff] %v2535
        %2569 = vst [vmem:[%s2557 + $0x58] sm:$0xff] %v2538
        %2570 = vst [vmem:[%s2557 + $0x60] sm:$0xff] %v2543
        %2571 = vst [vmem:[%s2557 + $0x68] sm:$0xff] %v2546
        %2572 = vst [vmem:[%s2557 + $0x70] sm:$0xff] %v2551
        %2573 = vst [vmem:[%s2557 + $0x78] sm:$0xff] %v2554
        %s2574 = scalar_lea.vmem %s976, 640 [#allocation3]
        %v2575 = vld [vmem:[%s2574] sm:$0xff]
        %v2576 = vld [vmem:[%s2574 + $0x8] sm:$0xff]
        %v2577 = vld [vmem:[%s2574 + $0x10] sm:$0xff]
        %v2578 = vld [vmem:[%s2574 + $0x18] sm:$0xff]
        %v2579 = vld [vmem:[%s2574 + $0x20] sm:$0xff]
        %v2580 = vld [vmem:[%s2574 + $0x28] sm:$0xff]
        %v2581 = vld [vmem:[%s2574 + $0x30] sm:$0xff]
        %v2582 = vld [vmem:[%s2574 + $0x38] sm:$0xff]
        %v2583 = vld [vmem:[%s2574 + $0x40] sm:$0xff]
        %v2584 = vld [vmem:[%s2574 + $0x48] sm:$0xff]
        %v2585 = vld [vmem:[%s2574 + $0x50] sm:$0xff]
        %v2586 = vld [vmem:[%s2574 + $0x58] sm:$0xff]
        %v2587 = vld [vmem:[%s2574 + $0x60] sm:$0xff]
        %v2588 = vld [vmem:[%s2574 + $0x68] sm:$0xff]
        %v2589 = vld [vmem:[%s2574 + $0x70] sm:$0xff]
        %v2590 = vld [vmem:[%s2574 + $0x78] sm:$0xff]
        %v2607 = vunpack.c.l.b16 %v2575
        %v2608 = vunpack.c.h.b16 %v2575
        %v2609 = vunpack.c.l.b16 %v2576
        %v2610 = vunpack.c.h.b16 %v2576
        %v2611 = vunpack.c.l.b16 %v2577
        %v2612 = vunpack.c.h.b16 %v2577
        %v2613 = vunpack.c.l.b16 %v2578
        %v2614 = vunpack.c.h.b16 %v2578
        %v2615 = vunpack.c.l.b16 %v2579
        %v2616 = vunpack.c.h.b16 %v2579
        %v2617 = vunpack.c.l.b16 %v2580
        %v2618 = vunpack.c.h.b16 %v2580
        %v2619 = vunpack.c.l.b16 %v2581
        %v2620 = vunpack.c.h.b16 %v2581
        %v2621 = vunpack.c.l.b16 %v2582
        %v2622 = vunpack.c.h.b16 %v2582
        %v2623 = vunpack.c.l.b16 %v2583
        %v2624 = vunpack.c.h.b16 %v2583
        %v2625 = vunpack.c.l.b16 %v2584
        %v2626 = vunpack.c.h.b16 %v2584
        %v2627 = vunpack.c.l.b16 %v2585
        %v2628 = vunpack.c.h.b16 %v2585
        %v2629 = vunpack.c.l.b16 %v2586
        %v2630 = vunpack.c.h.b16 %v2586
        %v2631 = vunpack.c.l.b16 %v2587
        %v2632 = vunpack.c.h.b16 %v2587
        %v2633 = vunpack.c.l.b16 %v2588
        %v2634 = vunpack.c.h.b16 %v2588
        %v2635 = vunpack.c.l.b16 %v2589
        %v2636 = vunpack.c.h.b16 %v2589
        %v2637 = vunpack.c.l.b16 %v2590
        %v2638 = vunpack.c.h.b16 %v2590
        %v2639 = vpack.c.b16 %v2609, %v2607
        %v2640 = vpack.c.b16 %v2610, %v2608
        %v2641 = vpack.c.b16 %v2613, %v2611
        %v2642 = vpack.c.b16 %v2614, %v2612
        %v2643 = vpack.c.b16 %v2617, %v2615
        %v2644 = vpack.c.b16 %v2618, %v2616
        %v2645 = vpack.c.b16 %v2621, %v2619
        %v2646 = vpack.c.b16 %v2622, %v2620
        %v2647 = vpack.c.b16 %v2625, %v2623
        %v2648 = vpack.c.b16 %v2626, %v2624
        %v2649 = vpack.c.b16 %v2629, %v2627
        %v2650 = vpack.c.b16 %v2630, %v2628
        %v2651 = vpack.c.b16 %v2633, %v2631
        %v2652 = vpack.c.b16 %v2634, %v2632
        %v2653 = vpack.c.b16 %v2637, %v2635
        %v2654 = vpack.c.b16 %v2638, %v2636
        %v2664 = vsel %vm1524, %v2640, 0
        %v2667 = vsel %vm1524, %v2642, 0
        %v2670 = vsel %vm1524, %v2644, 0
        %v2673 = vsel %vm1524, %v2646, 0
        %v2676 = vsel %vm1524, %v2648, 0
        %v2679 = vsel %vm1524, %v2650, 0
        %v2682 = vsel %vm1524, %v2652, 0
        %v2685 = vsel %vm1524, %v2654, 0
        %2687 = vmatprep.subr.bf16.mxu0 0
        %2688 = vmatpush1.bf16.msra.mxu0 %v1507
        %2689 = vmatprep.subr.bf16.mxu0 0
        %2690 = vmatpush1.bf16.msra.mxu0 %v1508
        %2691 = vmatprep.subr.bf16.mxu0 0
        %2692 = vmatpush1.bf16.msra.mxu0 %v1509
        %2693 = vmatprep.subr.bf16.mxu0 0
        %2694 = vmatpush1.bf16.msra.mxu0 %v1510
        %2695 = vmatprep.subr.bf16.mxu0 0
        %2696 = vmatpush1.bf16.msra.mxu0 %v1511
        %2697 = vmatprep.subr.bf16.mxu0 0
        %2698 = vmatpush1.bf16.msra.mxu0 %v1512
        %2699 = vmatprep.subr.bf16.mxu0 0
        %2700 = vmatpush1.bf16.msra.mxu0 %v1513
        %2701 = vmatprep.subr.bf16.mxu0 0
        %2702 = vmatpush1.bf16.msra.mxu0 %v1514
        %2703 = vmatprep.subr.bf16.mxu0 0
        %2704 = vmatpush1.bf16.msra.mxu0 %v1551
        %2705 = vmatprep.subr.bf16.mxu0 0
        %2706 = vmatpush1.bf16.msra.mxu0 0
        %2707 = vmatprep.subr.bf16.mxu0 0
        %2708 = vmatpush1.bf16.msra.mxu0 0
        %2709 = vmatprep.subr.bf16.mxu0 0
        %2710 = vmatpush1.bf16.msra.mxu0 0
        %2711 = vmatprep.subr.bf16.mxu0 0
        %2712 = vmatpush1.bf16.msra.mxu0 0
        %2713 = vmatprep.subr.bf16.mxu0 0
        %2714 = vmatpush1.bf16.msra.mxu0 0
        %2715 = vmatprep.subr.bf16.mxu0 0
        %2716 = vmatpush1.bf16.msra.mxu0 0
        %2717 = vmatprep.subr.bf16.mxu0 0
        %2718 = vmatpush1.bf16.msra.mxu0 0
        %2719 = vmatprep.mubr.bf16.mxu0 %v2664
        %2720 = vmatmul.mubr.bf16.gmra.mrb[0].mxu0 %v2639
        %v2721 = vpop.f32.mrb[0].mxu0
        %v2722 = vadd.f32 0.0, %v2721
        %v2723 = vpop.f32.mrb[0].mxu0
        %v2724 = vpop.f32.mrb[0].mxu0
        %v2725 = vadd.f32 0.0, %v2724
        %v2726 = vpop.f32.mrb[0].mxu0
        %2727 = vmatprep.mubr.bf16.mxu0 %v2667
        %2728 = vmatmul.mubr.bf16.gmra.mrb[0].mxu0 %v2641
        %v2729 = vpop.f32.mrb[0].mxu0
        %v2730 = vadd.f32 0.0, %v2729
        %v2731 = vpop.f32.mrb[0].mxu0
        %v2732 = vpop.f32.mrb[0].mxu0
        %v2733 = vadd.f32 0.0, %v2732
        %v2734 = vpop.f32.mrb[0].mxu0
        %2735 = vmatprep.mubr.bf16.mxu0 %v2670
        %2736 = vmatmul.mubr.bf16.gmra.mrb[0].mxu0 %v2643
        %v2737 = vpop.f32.mrb[0].mxu0
        %v2738 = vadd.f32 0.0, %v2737
        %v2739 = vpop.f32.mrb[0].mxu0
        %v2740 = vpop.f32.mrb[0].mxu0
        %v2741 = vadd.f32 0.0, %v2740
        %v2742 = vpop.f32.mrb[0].mxu0
        %2743 = vmatprep.mubr.bf16.mxu0 %v2673
        %2744 = vmatmul.mubr.bf16.gmra.mrb[0].mxu0 %v2645
        %v2745 = vpop.f32.mrb[0].mxu0
        %v2746 = vadd.f32 0.0, %v2745
        %v2747 = vpop.f32.mrb[0].mxu0
        %v2748 = vpop.f32.mrb[0].mxu0
        %v2749 = vadd.f32 0.0, %v2748
        %v2750 = vpop.f32.mrb[0].mxu0
        %2751 = vmatprep.mubr.bf16.mxu0 %v2676
        %2752 = vmatmul.mubr.bf16.gmra.mrb[0].mxu0 %v2647
        %v2753 = vpop.f32.mrb[0].mxu0
        %v2754 = vadd.f32 0.0, %v2753
        %v2755 = vpop.f32.mrb[0].mxu0
        %v2756 = vpop.f32.mrb[0].mxu0
        %v2757 = vadd.f32 0.0, %v2756
        %v2758 = vpop.f32.mrb[0].mxu0
        %2759 = vmatprep.mubr.bf16.mxu0 %v2679
        %2760 = vmatmul.mubr.bf16.gmra.mrb[0].mxu0 %v2649
        %v2761 = vpop.f32.mrb[0].mxu0
        %v2762 = vadd.f32 0.0, %v2761
        %v2763 = vpop.f32.mrb[0].mxu0
        %v2764 = vpop.f32.mrb[0].mxu0
        %v2765 = vadd.f32 0.0, %v2764
        %v2766 = vpop.f32.mrb[0].mxu0
        %2767 = vmatprep.mubr.bf16.mxu0 %v2682
        %2768 = vmatmul.mubr.bf16.gmra.mrb[0].mxu0 %v2651
        %v2769 = vpop.f32.mrb[0].mxu0
        %v2770 = vadd.f32 0.0, %v2769
        %v2771 = vpop.f32.mrb[0].mxu0
        %v2772 = vpop.f32.mrb[0].mxu0
        %v2773 = vadd.f32 0.0, %v2772
        %v2774 = vpop.f32.mrb[0].mxu0
        %2775 = vmatprep.mubr.bf16.mxu0 %v2685
        %2776 = vmatmul.mubr.bf16.gmra.mrb[0].mxu0 %v2653
        %v2777 = vpop.f32.mrb[0].mxu0
        %v2778 = vadd.f32 0.0, %v2777
        %v2779 = vpop.f32.mrb[0].mxu0
        %v2780 = vpop.f32.mrb[0].mxu0
        %v2781 = vadd.f32 0.0, %v2780
        %v2782 = vpop.f32.mrb[0].mxu0
        %2783 = vdwg.mxu0
        %s2784 = scalar_lea.vmem [#allocation2], 640
        %2785 = vst [vmem:[%s2784] sm:$0xff] %v2722
        %2786 = vst [vmem:[%s2784 + $0x8] sm:$0xff] %v2725
        %2787 = vst [vmem:[%s2784 + $0x10] sm:$0xff] %v2730
        %2788 = vst [vmem:[%s2784 + $0x18] sm:$0xff] %v2733
        %2789 = vst [vmem:[%s2784 + $0x20] sm:$0xff] %v2738
        %2790 = vst [vmem:[%s2784 + $0x28] sm:$0xff] %v2741
        %2791 = vst [vmem:[%s2784 + $0x30] sm:$0xff] %v2746
        %2792 = vst [vmem:[%s2784 + $0x38] sm:$0xff] %v2749
        %2793 = vst [vmem:[%s2784 + $0x40] sm:$0xff] %v2754
        %2794 = vst [vmem:[%s2784 + $0x48] sm:$0xff] %v2757
        %2795 = vst [vmem:[%s2784 + $0x50] sm:$0xff] %v2762
        %2796 = vst [vmem:[%s2784 + $0x58] sm:$0xff] %v2765
        %2797 = vst [vmem:[%s2784 + $0x60] sm:$0xff] %v2770
        %2798 = vst [vmem:[%s2784 + $0x68] sm:$0xff] %v2773
        %2799 = vst [vmem:[%s2784 + $0x70] sm:$0xff] %v2778
        %2800 = vst [vmem:[%s2784 + $0x78] sm:$0xff] %v2781
        %s2801 = scalar_lea.vmem %s976, 768 [#allocation3]
        %v2802 = vld [vmem:[%s2801] sm:$0xff]
        %v2803 = vld [vmem:[%s2801 + $0x8] sm:$0xff]
        %v2804 = vld [vmem:[%s2801 + $0x10] sm:$0xff]
        %v2805 = vld [vmem:[%s2801 + $0x18] sm:$0xff]
        %v2806 = vld [vmem:[%s2801 + $0x20] sm:$0xff]
        %v2807 = vld [vmem:[%s2801 + $0x28] sm:$0xff]
        %v2808 = vld [vmem:[%s2801 + $0x30] sm:$0xff]
        %v2809 = vld [vmem:[%s2801 + $0x38] sm:$0xff]
        %v2810 = vld [vmem:[%s2801 + $0x40] sm:$0xff]
        %v2811 = vld [vmem:[%s2801 + $0x48] sm:$0xff]
        %v2812 = vld [vmem:[%s2801 + $0x50] sm:$0xff]
        %v2813 = vld [vmem:[%s2801 + $0x58] sm:$0xff]
        %v2814 = vld [vmem:[%s2801 + $0x60] sm:$0xff]
        %v2815 = vld [vmem:[%s2801 + $0x68] sm:$0xff]
        %v2816 = vld [vmem:[%s2801 + $0x70] sm:$0xff]
        %v2817 = vld [vmem:[%s2801 + $0x78] sm:$0xff]
        %v2834 = vunpack.c.l.b16 %v2802
        %v2835 = vunpack.c.h.b16 %v2802
        %v2836 = vunpack.c.l.b16 %v2803
        %v2837 = vunpack.c.h.b16 %v2803
        %v2838 = vunpack.c.l.b16 %v2804
        %v2839 = vunpack.c.h.b16 %v2804
        %v2840 = vunpack.c.l.b16 %v2805
        %v2841 = vunpack.c.h.b16 %v2805
        %v2842 = vunpack.c.l.b16 %v2806
        %v2843 = vunpack.c.h.b16 %v2806
        %v2844 = vunpack.c.l.b16 %v2807
        %v2845 = vunpack.c.h.b16 %v2807
        %v2846 = vunpack.c.l.b16 %v2808
        %v2847 = vunpack.c.h.b16 %v2808
        %v2848 = vunpack.c.l.b16 %v2809
        %v2849 = vunpack.c.h.b16 %v2809
        %v2850 = vunpack.c.l.b16 %v2810
        %v2851 = vunpack.c.h.b16 %v2810
        %v2852 = vunpack.c.l.b16 %v2811
        %v2853 = vunpack.c.h.b16 %v2811
        %v2854 = vunpack.c.l.b16 %v2812
        %v2855 = vunpack.c.h.b16 %v2812
        %v2856 = vunpack.c.l.b16 %v2813
        %v2857 = vunpack.c.h.b16 %v2813
        %v2858 = vunpack.c.l.b16 %v2814
        %v2859 = vunpack.c.h.b16 %v2814
        %v2860 = vunpack.c.l.b16 %v2815
        %v2861 = vunpack.c.h.b16 %v2815
        %v2862 = vunpack.c.l.b16 %v2816
        %v2863 = vunpack.c.h.b16 %v2816
        %v2864 = vunpack.c.l.b16 %v2817
        %v2865 = vunpack.c.h.b16 %v2817
        %v2866 = vpack.c.b16 %v2836, %v2834
        %v2867 = vpack.c.b16 %v2837, %v2835
        %v2868 = vpack.c.b16 %v2840, %v2838
        %v2869 = vpack.c.b16 %v2841, %v2839
        %v2870 = vpack.c.b16 %v2844, %v2842
        %v2871 = vpack.c.b16 %v2845, %v2843
        %v2872 = vpack.c.b16 %v2848, %v2846
        %v2873 = vpack.c.b16 %v2849, %v2847
        %v2874 = vpack.c.b16 %v2852, %v2850
        %v2875 = vpack.c.b16 %v2853, %v2851
        %v2876 = vpack.c.b16 %v2856, %v2854
        %v2877 = vpack.c.b16 %v2857, %v2855
        %v2878 = vpack.c.b16 %v2860, %v2858
        %v2879 = vpack.c.b16 %v2861, %v2859
        %v2880 = vpack.c.b16 %v2864, %v2862
        %v2881 = vpack.c.b16 %v2865, %v2863
        %v2891 = vsel %vm1524, %v2867, 0
        %v2894 = vsel %vm1524, %v2869, 0
        %v2897 = vsel %vm1524, %v2871, 0
        %v2900 = vsel %vm1524, %v2873, 0
        %v2903 = vsel %vm1524, %v2875, 0
        %v2906 = vsel %vm1524, %v2877, 0
        %v2909 = vsel %vm1524, %v2879, 0
        %v2912 = vsel %vm1524, %v2881, 0
        %2914 = vmatprep.subr.bf16.mxu0 0
        %2915 = vmatpush1.bf16.msra.mxu0 %v1507
        %2916 = vmatprep.subr.bf16.mxu0 0
        %2917 = vmatpush1.bf16.msra.mxu0 %v1508
        %2918 = vmatprep.subr.bf16.mxu0 0
        %2919 = vmatpush1.bf16.msra.mxu0 %v1509
        %2920 = vmatprep.subr.bf16.mxu0 0
        %2921 = vmatpush1.bf16.msra.mxu0 %v1510
        %2922 = vmatprep.subr.bf16.mxu0 0
        %2923 = vmatpush1.bf16.msra.mxu0 %v1511
        %2924 = vmatprep.subr.bf16.mxu0 0
        %2925 = vmatpush1.bf16.msra.mxu0 %v1512
        %2926 = vmatprep.subr.bf16.mxu0 0
        %2927 = vmatpush1.bf16.msra.mxu0 %v1513
        %2928 = vmatprep.subr.bf16.mxu0 0
        %2929 = vmatpush1.bf16.msra.mxu0 %v1514
        %2930 = vmatprep.subr.bf16.mxu0 0
        %2931 = vmatpush1.bf16.msra.mxu0 %v1551
        %2932 = vmatprep.subr.bf16.mxu0 0
        %2933 = vmatpush1.bf16.msra.mxu0 0
        %2934 = vmatprep.subr.bf16.mxu0 0
        %2935 = vmatpush1.bf16.msra.mxu0 0
        %2936 = vmatprep.subr.bf16.mxu0 0
        %2937 = vmatpush1.bf16.msra.mxu0 0
        %2938 = vmatprep.subr.bf16.mxu0 0
        %2939 = vmatpush1.bf16.msra.mxu0 0
        %2940 = vmatprep.subr.bf16.mxu0 0
        %2941 = vmatpush1.bf16.msra.mxu0 0
        %2942 = vmatprep.subr.bf16.mxu0 0
        %2943 = vmatpush1.bf16.msra.mxu0 0
        %2944 = vmatprep.subr.bf16.mxu0 0
        %2945 = vmatpush1.bf16.msra.mxu0 0
        %2946 = vmatprep.mubr.bf16.mxu0 %v2891
        %2947 = vmatmul.mubr.bf16.gmra.mrb[0].mxu0 %v2866
        %v2948 = vpop.f32.mrb[0].mxu0
        %v2949 = vadd.f32 0.0, %v2948
        %v2950 = vpop.f32.mrb[0].mxu0
        %v2951 = vpop.f32.mrb[0].mxu0
        %v2952 = vadd.f32 0.0, %v2951
        %v2953 = vpop.f32.mrb[0].mxu0
        %2954 = vmatprep.mubr.bf16.mxu0 %v2894
        %2955 = vmatmul.mubr.bf16.gmra.mrb[0].mxu0 %v2868
        %v2956 = vpop.f32.mrb[0].mxu0
        %v2957 = vadd.f32 0.0, %v2956
        %v2958 = vpop.f32.mrb[0].mxu0
        %v2959 = vpop.f32.mrb[0].mxu0
        %v2960 = vadd.f32 0.0, %v2959
        %v2961 = vpop.f32.mrb[0].mxu0
        %2962 = vmatprep.mubr.bf16.mxu0 %v2897
        %2963 = vmatmul.mubr.bf16.gmra.mrb[0].mxu0 %v2870
        %v2964 = vpop.f32.mrb[0].mxu0
        %v2965 = vadd.f32 0.0, %v2964
        %v2966 = vpop.f32.mrb[0].mxu0
        %v2967 = vpop.f32.mrb[0].mxu0
        %v2968 = vadd.f32 0.0, %v2967
        %v2969 = vpop.f32.mrb[0].mxu0
        %2970 = vmatprep.mubr.bf16.mxu0 %v2900
        %2971 = vmatmul.mubr.bf16.gmra.mrb[0].mxu0 %v2872
        %v2972 = vpop.f32.mrb[0].mxu0
        %v2973 = vadd.f32 0.0, %v2972
        %v2974 = vpop.f32.mrb[0].mxu0
        %v2975 = vpop.f32.mrb[0].mxu0
        %v2976 = vadd.f32 0.0, %v2975
        %v2977 = vpop.f32.mrb[0].mxu0
        %2978 = vmatprep.mubr.bf16.mxu0 %v2903
        %2979 = vmatmul.mubr.bf16.gmra.mrb[0].mxu0 %v2874
        %v2980 = vpop.f32.mrb[0].mxu0
        %v2981 = vadd.f32 0.0, %v2980
        %v2982 = vpop.f32.mrb[0].mxu0
        %v2983 = vpop.f32.mrb[0].mxu0
        %v2984 = vadd.f32 0.0, %v2983
        %v2985 = vpop.f32.mrb[0].mxu0
        %2986 = vmatprep.mubr.bf16.mxu0 %v2906
        %2987 = vmatmul.mubr.bf16.gmra.mrb[0].mxu0 %v2876
        %v2988 = vpop.f32.mrb[0].mxu0
        %v2989 = vadd.f32 0.0, %v2988
        %v2990 = vpop.f32.mrb[0].mxu0
        %v2991 = vpop.f32.mrb[0].mxu0
        %v2992 = vadd.f32 0.0, %v2991
        %v2993 = vpop.f32.mrb[0].mxu0
        %2994 = vmatprep.mubr.bf16.mxu0 %v2909
        %2995 = vmatmul.mubr.bf16.gmra.mrb[0].mxu0 %v2878
        %v2996 = vpop.f32.mrb[0].mxu0
        %v2997 = vadd.f32 0.0, %v2996
        %v2998 = vpop.f32.mrb[0].mxu0
        %v2999 = vpop.f32.mrb[0].mxu0
        %v3000 = vadd.f32 0.0, %v2999
        %v3001 = vpop.f32.mrb[0].mxu0
        %3002 = vmatprep.mubr.bf16.mxu0 %v2912
        %3003 = vmatmul.mubr.bf16.gmra.mrb[0].mxu0 %v2880
        %v3004 = vpop.f32.mrb[0].mxu0
        %v3005 = vadd.f32 0.0, %v3004
        %v3006 = vpop.f32.mrb[0].mxu0
        %v3007 = vpop.f32.mrb[0].mxu0
        %v3008 = vadd.f32 0.0, %v3007
        %v3009 = vpop.f32.mrb[0].mxu0
        %3010 = vdwg.mxu0
        %s3011 = scalar_lea.vmem [#allocation2], 768
        %3012 = vst [vmem:[%s3011] sm:$0xff] %v2949
        %3013 = vst [vmem:[%s3011 + $0x8] sm:$0xff] %v2952
        %3014 = vst [vmem:[%s3011 + $0x10] sm:$0xff] %v2957
        %3015 = vst [vmem:[%s3011 + $0x18] sm:$0xff] %v2960
        %3016 = vst [vmem:[%s3011 + $0x20] sm:$0xff] %v2965
        %3017 = vst [vmem:[%s3011 + $0x28] sm:$0xff] %v2968
        %3018 = vst [vmem:[%s3011 + $0x30] sm:$0xff] %v2973
        %3019 = vst [vmem:[%s3011 + $0x38] sm:$0xff] %v2976
        %3020 = vst [vmem:[%s3011 + $0x40] sm:$0xff] %v2981
        %3021 = vst [vmem:[%s3011 + $0x48] sm:$0xff] %v2984
        %3022 = vst [vmem:[%s3011 + $0x50] sm:$0xff] %v2989
        %3023 = vst [vmem:[%s3011 + $0x58] sm:$0xff] %v2992
        %3024 = vst [vmem:[%s3011 + $0x60] sm:$0xff] %v2997
        %3025 = vst [vmem:[%s3011 + $0x68] sm:$0xff] %v3000
        %3026 = vst [vmem:[%s3011 + $0x70] sm:$0xff] %v3005
        %3027 = vst [vmem:[%s3011 + $0x78] sm:$0xff] %v3008
        %s3028 = scalar_lea.vmem %s976, 896 [#allocation3]
        %v3029 = vld [vmem:[%s3028] sm:$0xff]
        %v3030 = vld [vmem:[%s3028 + $0x8] sm:$0xff]
        %v3031 = vld [vmem:[%s3028 + $0x10] sm:$0xff]
        %v3032 = vld [vmem:[%s3028 + $0x18] sm:$0xff]
        %v3033 = vld [vmem:[%s3028 + $0x20] sm:$0xff]
        %v3034 = vld [vmem:[%s3028 + $0x28] sm:$0xff]
        %v3035 = vld [vmem:[%s3028 + $0x30] sm:$0xff]
        %v3036 = vld [vmem:[%s3028 + $0x38] sm:$0xff]
        %v3037 = vld [vmem:[%s3028 + $0x40] sm:$0xff]
        %v3038 = vld [vmem:[%s3028 + $0x48] sm:$0xff]
        %v3039 = vld [vmem:[%s3028 + $0x50] sm:$0xff]
        %v3040 = vld [vmem:[%s3028 + $0x58] sm:$0xff]
        %v3041 = vld [vmem:[%s3028 + $0x60] sm:$0xff]
        %v3042 = vld [vmem:[%s3028 + $0x68] sm:$0xff]
        %v3043 = vld [vmem:[%s3028 + $0x70] sm:$0xff]
        %v3044 = vld [vmem:[%s3028 + $0x78] sm:$0xff]
        %v3061 = vunpack.c.l.b16 %v3029
        %v3062 = vunpack.c.h.b16 %v3029
        %v3063 = vunpack.c.l.b16 %v3030
        %v3064 = vunpack.c.h.b16 %v3030
        %v3065 = vunpack.c.l.b16 %v3031
        %v3066 = vunpack.c.h.b16 %v3031
        %v3067 = vunpack.c.l.b16 %v3032
        %v3068 = vunpack.c.h.b16 %v3032
        %v3069 = vunpack.c.l.b16 %v3033
        %v3070 = vunpack.c.h.b16 %v3033
        %v3071 = vunpack.c.l.b16 %v3034
        %v3072 = vunpack.c.h.b16 %v3034
        %v3073 = vunpack.c.l.b16 %v3035
        %v3074 = vunpack.c.h.b16 %v3035
        %v3075 = vunpack.c.l.b16 %v3036
        %v3076 = vunpack.c.h.b16 %v3036
        %v3077 = vunpack.c.l.b16 %v3037
        %v3078 = vunpack.c.h.b16 %v3037
        %v3079 = vunpack.c.l.b16 %v3038
        %v3080 = vunpack.c.h.b16 %v3038
        %v3081 = vunpack.c.l.b16 %v3039
        %v3082 = vunpack.c.h.b16 %v3039
        %v3083 = vunpack.c.l.b16 %v3040
        %v3084 = vunpack.c.h.b16 %v3040
        %v3085 = vunpack.c.l.b16 %v3041
        %v3086 = vunpack.c.h.b16 %v3041
        %v3087 = vunpack.c.l.b16 %v3042
        %v3088 = vunpack.c.h.b16 %v3042
        %v3089 = vunpack.c.l.b16 %v3043
        %v3090 = vunpack.c.h.b16 %v3043
        %v3091 = vunpack.c.l.b16 %v3044
        %v3092 = vunpack.c.h.b16 %v3044
        %v3093 = vpack.c.b16 %v3063, %v3061
        %v3094 = vpack.c.b16 %v3064, %v3062
        %v3095 = vpack.c.b16 %v3067, %v3065
        %v3096 = vpack.c.b16 %v3068, %v3066
        %v3097 = vpack.c.b16 %v3071, %v3069
        %v3098 = vpack.c.b16 %v3072, %v3070
        %v3099 = vpack.c.b16 %v3075, %v3073
        %v3100 = vpack.c.b16 %v3076, %v3074
        %v3101 = vpack.c.b16 %v3079, %v3077
        %v3102 = vpack.c.b16 %v3080, %v3078
        %v3103 = vpack.c.b16 %v3083, %v3081
        %v3104 = vpack.c.b16 %v3084, %v3082
        %v3105 = vpack.c.b16 %v3087, %v3085
        %v3106 = vpack.c.b16 %v3088, %v3086
        %v3107 = vpack.c.b16 %v3091, %v3089
        %v3108 = vpack.c.b16 %v3092, %v3090
        %v3118 = vsel %vm1524, %v3094, 0
        %v3121 = vsel %vm1524, %v3096, 0
        %v3124 = vsel %vm1524, %v3098, 0
        %v3127 = vsel %vm1524, %v3100, 0
        %v3130 = vsel %vm1524, %v3102, 0
        %v3133 = vsel %vm1524, %v3104, 0
        %v3136 = vsel %vm1524, %v3106, 0
        %v3139 = vsel %vm1524, %v3108, 0
        %3141 = vmatprep.subr.bf16.mxu0 0
        %3142 = vmatpush1.bf16.msra.mxu0 %v1507
        %3143 = vmatprep.subr.bf16.mxu0 0
        %3144 = vmatpush1.bf16.msra.mxu0 %v1508
        %3145 = vmatprep.subr.bf16.mxu0 0
        %3146 = vmatpush1.bf16.msra.mxu0 %v1509
        %3147 = vmatprep.subr.bf16.mxu0 0
        %3148 = vmatpush1.bf16.msra.mxu0 %v1510
        %3149 = vmatprep.subr.bf16.mxu0 0
        %3150 = vmatpush1.bf16.msra.mxu0 %v1511
        %3151 = vmatprep.subr.bf16.mxu0 0
        %3152 = vmatpush1.bf16.msra.mxu0 %v1512
        %3153 = vmatprep.subr.bf16.mxu0 0
        %3154 = vmatpush1.bf16.msra.mxu0 %v1513
        %3155 = vmatprep.subr.bf16.mxu0 0
        %3156 = vmatpush1.bf16.msra.mxu0 %v1514
        %3157 = vmatprep.subr.bf16.mxu0 0
        %3158 = vmatpush1.bf16.msra.mxu0 %v1551
        %3159 = vmatprep.subr.bf16.mxu0 0
        %3160 = vmatpush1.bf16.msra.mxu0 0
        %3161 = vmatprep.subr.bf16.mxu0 0
        %3162 = vmatpush1.bf16.msra.mxu0 0
        %3163 = vmatprep.subr.bf16.mxu0 0
        %3164 = vmatpush1.bf16.msra.mxu0 0
        %3165 = vmatprep.subr.bf16.mxu0 0
        %3166 = vmatpush1.bf16.msra.mxu0 0
        %3167 = vmatprep.subr.bf16.mxu0 0
        %3168 = vmatpush1.bf16.msra.mxu0 0
        %3169 = vmatprep.subr.bf16.mxu0 0
        %3170 = vmatpush1.bf16.msra.mxu0 0
        %3171 = vmatprep.subr.bf16.mxu0 0
        %3172 = vmatpush1.bf16.msra.mxu0 0
        %3173 = vmatprep.mubr.bf16.mxu0 %v3118
        %3174 = vmatmul.mubr.bf16.gmra.mrb[0].mxu0 %v3093
        %v3175 = vpop.f32.mrb[0].mxu0
        %v3176 = vadd.f32 0.0, %v3175
        %v3177 = vpop.f32.mrb[0].mxu0
        %v3178 = vpop.f32.mrb[0].mxu0
        %v3179 = vadd.f32 0.0, %v3178
        %v3180 = vpop.f32.mrb[0].mxu0
        %3181 = vmatprep.mubr.bf16.mxu0 %v3121
        %3182 = vmatmul.mubr.bf16.gmra.mrb[0].mxu0 %v3095
        %v3183 = vpop.f32.mrb[0].mxu0
        %v3184 = vadd.f32 0.0, %v3183
        %v3185 = vpop.f32.mrb[0].mxu0
        %v3186 = vpop.f32.mrb[0].mxu0
        %v3187 = vadd.f32 0.0, %v3186
        %v3188 = vpop.f32.mrb[0].mxu0
        %3189 = vmatprep.mubr.bf16.mxu0 %v3124
        %3190 = vmatmul.mubr.bf16.gmra.mrb[0].mxu0 %v3097
        %v3191 = vpop.f32.mrb[0].mxu0
        %v3192 = vadd.f32 0.0, %v3191
        %v3193 = vpop.f32.mrb[0].mxu0
        %v3194 = vpop.f32.mrb[0].mxu0
        %v3195 = vadd.f32 0.0, %v3194
        %v3196 = vpop.f32.mrb[0].mxu0
        %3197 = vmatprep.mubr.bf16.mxu0 %v3127
        %3198 = vmatmul.mubr.bf16.gmra.mrb[0].mxu0 %v3099
        %v3199 = vpop.f32.mrb[0].mxu0
        %v3200 = vadd.f32 0.0, %v3199
        %v3201 = vpop.f32.mrb[0].mxu0
        %v3202 = vpop.f32.mrb[0].mxu0
        %v3203 = vadd.f32 0.0, %v3202
        %v3204 = vpop.f32.mrb[0].mxu0
        %3205 = vmatprep.mubr.bf16.mxu0 %v3130
        %3206 = vmatmul.mubr.bf16.gmra.mrb[0].mxu0 %v3101
        %v3207 = vpop.f32.mrb[0].mxu0
        %v3208 = vadd.f32 0.0, %v3207
        %v3209 = vpop.f32.mrb[0].mxu0
        %v3210 = vpop.f32.mrb[0].mxu0
        %v3211 = vadd.f32 0.0, %v3210
        %v3212 = vpop.f32.mrb[0].mxu0
        %3213 = vmatprep.mubr.bf16.mxu0 %v3133
        %3214 = vmatmul.mubr.bf16.gmra.mrb[0].mxu0 %v3103
        %v3215 = vpop.f32.mrb[0].mxu0
        %v3216 = vadd.f32 0.0, %v3215
        %v3217 = vpop.f32.mrb[0].mxu0
        %v3218 = vpop.f32.mrb[0].mxu0
        %v3219 = vadd.f32 0.0, %v3218
        %v3220 = vpop.f32.mrb[0].mxu0
        %3221 = vmatprep.mubr.bf16.mxu0 %v3136
        %3222 = vmatmul.mubr.bf16.gmra.mrb[0].mxu0 %v3105
        %v3223 = vpop.f32.mrb[0].mxu0
        %v3224 = vadd.f32 0.0, %v3223
        %v3225 = vpop.f32.mrb[0].mxu0
        %v3226 = vpop.f32.mrb[0].mxu0
        %v3227 = vadd.f32 0.0, %v3226
        %v3228 = vpop.f32.mrb[0].mxu0
        %3229 = vmatprep.mubr.bf16.mxu0 %v3139
        %3230 = vmatmul.mubr.bf16.gmra.mrb[0].mxu0 %v3107
        %v3231 = vpop.f32.mrb[0].mxu0
        %v3232 = vadd.f32 0.0, %v3231
        %v3233 = vpop.f32.mrb[0].mxu0
        %v3234 = vpop.f32.mrb[0].mxu0
        %v3235 = vadd.f32 0.0, %v3234
        %v3236 = vpop.f32.mrb[0].mxu0
        %3237 = vdwg.mxu0
        %s3238 = scalar_lea.vmem [#allocation2], 896
        %3239 = vst [vmem:[%s3238] sm:$0xff] %v3176
        %3240 = vst [vmem:[%s3238 + $0x8] sm:$0xff] %v3179
        %3241 = vst [vmem:[%s3238 + $0x10] sm:$0xff] %v3184
        %3242 = vst [vmem:[%s3238 + $0x18] sm:$0xff] %v3187
        %3243 = vst [vmem:[%s3238 + $0x20] sm:$0xff] %v3192
        %3244 = vst [vmem:[%s3238 + $0x28] sm:$0xff] %v3195
        %3245 = vst [vmem:[%s3238 + $0x30] sm:$0xff] %v3200
        %3246 = vst [vmem:[%s3238 + $0x38] sm:$0xff] %v3203
        %3247 = vst [vmem:[%s3238 + $0x40] sm:$0xff] %v3208
        %3248 = vst [vmem:[%s3238 + $0x48] sm:$0xff] %v3211
        %3249 = vst [vmem:[%s3238 + $0x50] sm:$0xff] %v3216
        %3250 = vst [vmem:[%s3238 + $0x58] sm:$0xff] %v3219
        %3251 = vst [vmem:[%s3238 + $0x60] sm:$0xff] %v3224
        %3252 = vst [vmem:[%s3238 + $0x68] sm:$0xff] %v3227
        %3253 = vst [vmem:[%s3238 + $0x70] sm:$0xff] %v3232
        %3254 = vst [vmem:[%s3238 + $0x78] sm:$0xff] %v3235
        %v3255 = vld [vmem:[%s3] sm:$0xf]
        %v3256 = vld [vmem:[%s3 + $0x4] sm:$0xf]
        %v3257 = vld [vmem:[%s3 + $0x8] sm:$0xf]
        %v3258 = vld [vmem:[%s3 + $0xc] sm:$0xf]
        %v3259 = vld [vmem:[%s3 + $0x10] sm:$0xf]
        %v3260 = vld [vmem:[%s3 + $0x14] sm:$0xf]
        %v3261 = vld [vmem:[%s3 + $0x18] sm:$0xf]
        %v3262 = vld [vmem:[%s3 + $0x1c] sm:$0xf]
        %v3263 = vld [vmem:[%s3 + $0x20] sm:$0xf]
        %v3264 = vld [vmem:[%s3 + $0x24] sm:$0xf]
        %v3265 = vld [vmem:[%s3 + $0x28] sm:$0xf]
        %v3266 = vld [vmem:[%s3 + $0x2c] sm:$0xf]
        %v3267 = vld [vmem:[%s3 + $0x30] sm:$0xf]
        %v3268 = vld [vmem:[%s3 + $0x34] sm:$0xf]
        %v3269 = vld [vmem:[%s3 + $0x38] sm:$0xf]
        %v3270 = vld [vmem:[%s3 + $0x3c] sm:$0xf]
        %v3271 = vld [vmem:[%s4] sm:$0x1]
        %v3272 = vld [vmem:[#allocation2] sm:$0xff]
        %v3273 = vld [vmem:[#allocation2 + $0x8] sm:$0xff]
        %v3274 = vld [vmem:[#allocation2 + $0x10] sm:$0xff]
        %v3275 = vld [vmem:[#allocation2 + $0x18] sm:$0xff]
        %v3276 = vld [vmem:[#allocation2 + $0x20] sm:$0xff]
        %v3277 = vld [vmem:[#allocation2 + $0x28] sm:$0xff]
        %v3278 = vld [vmem:[#allocation2 + $0x30] sm:$0xff]
        %v3279 = vld [vmem:[#allocation2 + $0x38] sm:$0xff]
        %v3280 = vld [vmem:[#allocation2 + $0x40] sm:$0xff]
        %v3281 = vld [vmem:[#allocation2 + $0x48] sm:$0xff]
        %v3282 = vld [vmem:[#allocation2 + $0x50] sm:$0xff]
        %v3283 = vld [vmem:[#allocation2 + $0x58] sm:$0xff]
        %v3284 = vld [vmem:[#allocation2 + $0x60] sm:$0xff]
        %v3285 = vld [vmem:[#allocation2 + $0x68] sm:$0xff]
        %v3286 = vld [vmem:[#allocation2 + $0x70] sm:$0xff]
        %v3287 = vld [vmem:[#allocation2 + $0x78] sm:$0xff]
        %v3304 = vunpack.c.l.b16 %v3255
        %v3305 = vunpack.c.l.b16 %v3256
        %v3306 = vunpack.c.l.b16 %v3257
        %v3307 = vunpack.c.l.b16 %v3258
        %v3308 = vunpack.c.l.b16 %v3259
        %v3309 = vunpack.c.l.b16 %v3260
        %v3310 = vunpack.c.l.b16 %v3261
        %v3311 = vunpack.c.l.b16 %v3262
        %v3312 = vunpack.c.l.b16 %v3263
        %v3313 = vunpack.c.l.b16 %v3264
        %v3314 = vunpack.c.l.b16 %v3265
        %v3315 = vunpack.c.l.b16 %v3266
        %v3316 = vunpack.c.l.b16 %v3267
        %v3317 = vunpack.c.l.b16 %v3268
        %v3318 = vunpack.c.l.b16 %v3269
        %v3319 = vunpack.c.l.b16 %v3270
        %v3320 = vpack.c.b16 %v3305, %v3304
        %v3321 = vpack.c.b16 %v3307, %v3306
        %v3322 = vpack.c.b16 %v3309, %v3308
        %v3323 = vpack.c.b16 %v3311, %v3310
        %v3324 = vpack.c.b16 %v3313, %v3312
        %v3325 = vpack.c.b16 %v3315, %v3314
        %v3326 = vpack.c.b16 %v3317, %v3316
        %v3327 = vpack.c.b16 %v3319, %v3318
        %3336 = vmatprep.subr.bf16.mxu0 0
        %3337 = vmatpush1.bf16.msra.mxu0 %v3320
        %3338 = vmatprep.subr.bf16.mxu0 0
        %3339 = vmatpush1.bf16.msra.mxu0 %v3321
        %3340 = vmatprep.subr.bf16.mxu0 0
        %3341 = vmatpush1.bf16.msra.mxu0 %v3322
        %3342 = vmatprep.subr.bf16.mxu0 0
        %3343 = vmatpush1.bf16.msra.mxu0 %v3323
        %3344 = vmatprep.subr.bf16.mxu0 0
        %3345 = vmatpush1.bf16.msra.mxu0 %v3324
        %3346 = vmatprep.subr.bf16.mxu0 0
        %3347 = vmatpush1.bf16.msra.mxu0 %v3325
        %3348 = vmatprep.subr.bf16.mxu0 0
        %3349 = vmatpush1.bf16.msra.mxu0 %v3326
        %3350 = vmatprep.subr.bf16.mxu0 0
        %3351 = vmatpush1.bf16.msra.mxu0 %v3327
        %3352 = vmatprep.subr.bf16.mxu0 0
        %3353 = vmatpush1.bf16.msra.mxu0 0
        %3354 = vmatprep.subr.bf16.mxu0 0
        %3355 = vmatpush1.bf16.msra.mxu0 0
        %3356 = vmatprep.subr.bf16.mxu0 0
        %3357 = vmatpush1.bf16.msra.mxu0 0
        %3358 = vmatprep.subr.bf16.mxu0 0
        %3359 = vmatpush1.bf16.msra.mxu0 0
        %3360 = vmatprep.subr.bf16.mxu0 0
        %3361 = vmatpush1.bf16.msra.mxu0 0
        %3362 = vmatprep.subr.bf16.mxu0 0
        %3363 = vmatpush1.bf16.msra.mxu0 0
        %3364 = vmatprep.subr.bf16.mxu0 0
        %3365 = vmatpush1.bf16.msra.mxu0 0
        %3366 = vmatprep.subr.bf16.mxu0 0
        %3367 = vmatpush1.bf16.msra.mxu0 0
        %3368 = vmatprep.mubr.bf16.mxu0 0
        %3369 = vmatmul.mubr.bf16.gmra.mrb[0].mxu0 0
        %v3370 = vpop.f32.mrb[0].mxu0
        %v3371 = vadd.f32 %v3272, %v3370
        %v3372 = vpop.f32.mrb[0].mxu0
        %v3373 = vpop.f32.mrb[0].mxu0
        %v3374 = vadd.f32 %v3273, %v3373
        %v3375 = vpop.f32.mrb[0].mxu0
        %3376 = vmatprep.mubr.bf16.mxu0 0
        %3377 = vmatmul.mubr.bf16.gmra.mrb[0].mxu0 0
        %v3378 = vpop.f32.mrb[0].mxu0
        %v3379 = vadd.f32 %v3274, %v3378
        %v3380 = vpop.f32.mrb[0].mxu0
        %v3381 = vpop.f32.mrb[0].mxu0
        %v3382 = vadd.f32 %v3275, %v3381
        %v3383 = vpop.f32.mrb[0].mxu0
        %3384 = vmatprep.mubr.bf16.mxu0 0
        %3385 = vmatmul.mubr.bf16.gmra.mrb[0].mxu0 0
        %v3386 = vpop.f32.mrb[0].mxu0
        %v3387 = vadd.f32 %v3276, %v3386
        %v3388 = vpop.f32.mrb[0].mxu0
        %v3389 = vpop.f32.mrb[0].mxu0
        %v3390 = vadd.f32 %v3277, %v3389
        %v3391 = vpop.f32.mrb[0].mxu0
        %3392 = vmatprep.mubr.bf16.mxu0 0
        %3393 = vmatmul.mubr.bf16.gmra.mrb[0].mxu0 0
        %v3394 = vpop.f32.mrb[0].mxu0
        %v3395 = vadd.f32 %v3278, %v3394
        %v3396 = vpop.f32.mrb[0].mxu0
        %v3397 = vpop.f32.mrb[0].mxu0
        %v3398 = vadd.f32 %v3279, %v3397
        %v3399 = vpop.f32.mrb[0].mxu0
        %3400 = vdwg.mxu0
        %v3402 = vlaneseq
        %v3403 = vshrl.u32 %v3402, 7
        %v3404 = vsub.s32 0, %v3403
        %v3405 = vrot.slane %v3271, %v3404
        %v3407 = vadd.f32 %v3371, %v3405
        %v3408 = vadd.f32 %v3374, %v3405
        %v3409 = vadd.f32 %v3379, %v3405
        %v3410 = vadd.f32 %v3382, %v3405
        %v3411 = vadd.f32 %v3387, %v3405
        %v3412 = vadd.f32 %v3390, %v3405
        %v3413 = vadd.f32 %v3395, %v3405
        %v3414 = vadd.f32 %v3398, %v3405
        %3415 = vmatprep.subr.bf16.mxu0 0
        %3416 = vmatpush1.bf16.msra.mxu0 %v3320
        %3417 = vmatprep.subr.bf16.mxu0 0
        %3418 = vmatpush1.bf16.msra.mxu0 %v3321
        %3419 = vmatprep.subr.bf16.mxu0 0
        %3420 = vmatpush1.bf16.msra.mxu0 %v3322
        %3421 = vmatprep.subr.bf16.mxu0 0
        %3422 = vmatpush1.bf16.msra.mxu0 %v3323
        %3423 = vmatprep.subr.bf16.mxu0 0
        %3424 = vmatpush1.bf16.msra.mxu0 %v3324
        %3425 = vmatprep.subr.bf16.mxu0 0
        %3426 = vmatpush1.bf16.msra.mxu0 %v3325
        %3427 = vmatprep.subr.bf16.mxu0 0
        %3428 = vmatpush1.bf16.msra.mxu0 %v3326
        %3429 = vmatprep.subr.bf16.mxu0 0
        %3430 = vmatpush1.bf16.msra.mxu0 %v3327
        %3431 = vmatprep.subr.bf16.mxu0 0
        %3432 = vmatpush1.bf16.msra.mxu0 0
        %3433 = vmatprep.subr.bf16.mxu0 0
        %3434 = vmatpush1.bf16.msra.mxu0 0
        %3435 = vmatprep.subr.bf16.mxu0 0
        %3436 = vmatpush1.bf16.msra.mxu0 0
        %3437 = vmatprep.subr.bf16.mxu0 0
        %3438 = vmatpush1.bf16.msra.mxu0 0
        %3439 = vmatprep.subr.bf16.mxu0 0
        %3440 = vmatpush1.bf16.msra.mxu0 0
        %3441 = vmatprep.subr.bf16.mxu0 0
        %3442 = vmatpush1.bf16.msra.mxu0 0
        %3443 = vmatprep.subr.bf16.mxu0 0
        %3444 = vmatpush1.bf16.msra.mxu0 0
        %3445 = vmatprep.subr.bf16.mxu0 0
        %3446 = vmatpush1.bf16.msra.mxu0 0
        %3447 = vmatprep.mubr.bf16.mxu0 0
        %3448 = vmatmul.mubr.bf16.gmra.mrb[0].mxu0 0
        %v3449 = vpop.f32.mrb[0].mxu0
        %v3450 = vadd.f32 %v3280, %v3449
        %v3451 = vpop.f32.mrb[0].mxu0
        %v3452 = vpop.f32.mrb[0].mxu0
        %v3453 = vadd.f32 %v3281, %v3452
        %v3454 = vpop.f32.mrb[0].mxu0
        %3455 = vmatprep.mubr.bf16.mxu0 0
        %3456 = vmatmul.mubr.bf16.gmra.mrb[0].mxu0 0
        %v3457 = vpop.f32.mrb[0].mxu0
        %v3458 = vadd.f32 %v3282, %v3457
        %v3459 = vpop.f32.mrb[0].mxu0
        %v3460 = vpop.f32.mrb[0].mxu0
        %v3461 = vadd.f32 %v3283, %v3460
        %v3462 = vpop.f32.mrb[0].mxu0
        %3463 = vmatprep.mubr.bf16.mxu0 0
        %3464 = vmatmul.mubr.bf16.gmra.mrb[0].mxu0 0
        %v3465 = vpop.f32.mrb[0].mxu0
        %v3466 = vadd.f32 %v3284, %v3465
        %v3467 = vpop.f32.mrb[0].mxu0
        %v3468 = vpop.f32.mrb[0].mxu0
        %v3469 = vadd.f32 %v3285, %v3468
        %v3470 = vpop.f32.mrb[0].mxu0
        %3471 = vmatprep.mubr.bf16.mxu0 0
        %3472 = vmatmul.mubr.bf16.gmra.mrb[0].mxu0 0
        %v3473 = vpop.f32.mrb[0].mxu0
        %v3474 = vadd.f32 %v3286, %v3473
        %v3475 = vpop.f32.mrb[0].mxu0
        %v3476 = vpop.f32.mrb[0].mxu0
        %v3477 = vadd.f32 %v3287, %v3476
        %v3478 = vpop.f32.mrb[0].mxu0
        %3479 = vdwg.mxu0
        %v3480 = vadd.f32 %v3450, %v3405
        %v3481 = vadd.f32 %v3453, %v3405
        %v3482 = vadd.f32 %v3458, %v3405
        %v3483 = vadd.f32 %v3461, %v3405
        %v3484 = vadd.f32 %v3466, %v3405
        %v3485 = vadd.f32 %v3469, %v3405
        %v3486 = vadd.f32 %v3474, %v3405
        %v3487 = vadd.f32 %v3477, %v3405
        %v3488 = vtanh.pop %v3407
        %v3489 = vtanh.pop %v3408
        %v3490 = vtanh.pop %v3409
        %v3491 = vtanh.pop %v3410
        %v3492 = vtanh.pop %v3411
        %v3493 = vtanh.pop %v3412
        %v3494 = vtanh.pop %v3413
        %v3495 = vtanh.pop %v3414
        %v3496 = vtanh.pop %v3480
        %v3497 = vtanh.pop %v3481
        %v3498 = vtanh.pop %v3482
        %v3499 = vtanh.pop %v3483
        %v3500 = vtanh.pop %v3484
        %v3501 = vtanh.pop %v3485
        %v3502 = vtanh.pop %v3486
        %v3503 = vtanh.pop %v3487
        %v3504 = vld [vmem:[%s1876] sm:$0xff]
        %v3505 = vld [vmem:[%s1876 + $0x8] sm:$0xff]
        %v3506 = vld [vmem:[%s1876 + $0x10] sm:$0xff]
        %v3507 = vld [vmem:[%s1876 + $0x18] sm:$0xff]
        %v3508 = vld [vmem:[%s1876 + $0x20] sm:$0xff]
        %v3509 = vld [vmem:[%s1876 + $0x28] sm:$0xff]
        %v3510 = vld [vmem:[%s1876 + $0x30] sm:$0xff]
        %v3511 = vld [vmem:[%s1876 + $0x38] sm:$0xff]
        %v3512 = vld [vmem:[%s1876 + $0x40] sm:$0xff]
        %v3513 = vld [vmem:[%s1876 + $0x48] sm:$0xff]
        %v3514 = vld [vmem:[%s1876 + $0x50] sm:$0xff]
        %v3515 = vld [vmem:[%s1876 + $0x58] sm:$0xff]
        %v3516 = vld [vmem:[%s1876 + $0x60] sm:$0xff]
        %v3517 = vld [vmem:[%s1876 + $0x68] sm:$0xff]
        %v3518 = vld [vmem:[%s1876 + $0x70] sm:$0xff]
        %v3519 = vld [vmem:[%s1876 + $0x78] sm:$0xff]
        %v3520 = vpack.c.bf16 %v3489, %v3488
        %v3521 = vpack.c.bf16 %v3491, %v3490
        %v3522 = vpack.c.bf16 %v3493, %v3492
        %v3523 = vpack.c.bf16 %v3495, %v3494
        %3524 = vmatprep.subr.bf16.mxu0 0
        %3525 = vmatpush1.bf16.msra.mxu0 %v3320
        %3526 = vmatprep.subr.bf16.mxu0 0
        %3527 = vmatpush1.bf16.msra.mxu0 %v3321
        %3528 = vmatprep.subr.bf16.mxu0 0
        %3529 = vmatpush1.bf16.msra.mxu0 %v3322
        %3530 = vmatprep.subr.bf16.mxu0 0
        %3531 = vmatpush1.bf16.msra.mxu0 %v3323
        %3532 = vmatprep.subr.bf16.mxu0 0
        %3533 = vmatpush1.bf16.msra.mxu0 %v3324
        %3534 = vmatprep.subr.bf16.mxu0 0
        %3535 = vmatpush1.bf16.msra.mxu0 %v3325
        %3536 = vmatprep.subr.bf16.mxu0 0
        %3537 = vmatpush1.bf16.msra.mxu0 %v3326
        %3538 = vmatprep.subr.bf16.mxu0 0
        %3539 = vmatpush1.bf16.msra.mxu0 %v3327
        %3540 = vmatprep.subr.bf16.mxu0 0
        %3541 = vmatpush1.bf16.msra.mxu0 0
        %3542 = vmatprep.subr.bf16.mxu0 0
        %3543 = vmatpush1.bf16.msra.mxu0 0
        %3544 = vmatprep.subr.bf16.mxu0 0
        %3545 = vmatpush1.bf16.msra.mxu0 0
        %3546 = vmatprep.subr.bf16.mxu0 0
        %3547 = vmatpush1.bf16.msra.mxu0 0
        %3548 = vmatprep.subr.bf16.mxu0 0
        %3549 = vmatpush1.bf16.msra.mxu0 0
        %3550 = vmatprep.subr.bf16.mxu0 0
        %3551 = vmatpush1.bf16.msra.mxu0 0
        %3552 = vmatprep.subr.bf16.mxu0 0
        %3553 = vmatpush1.bf16.msra.mxu0 0
        %3554 = vmatprep.subr.bf16.mxu0 0
        %3555 = vmatpush1.bf16.msra.mxu0 0
        %3556 = vmatprep.mubr.bf16.mxu0 0
        %3557 = vmatmul.mubr.bf16.gmra.mrb[0].mxu0 %v3520
        %v3558 = vpop.f32.mrb[0].mxu0
        %v3559 = vadd.f32 %v3504, %v3558
        %v3560 = vpop.f32.mrb[0].mxu0
        %v3561 = vpop.f32.mrb[0].mxu0
        %v3562 = vadd.f32 %v3505, %v3561
        %v3563 = vpop.f32.mrb[0].mxu0
        %3564 = vmatprep.mubr.bf16.mxu0 0
        %3565 = vmatmul.mubr.bf16.gmra.mrb[0].mxu0 %v3521
        %v3566 = vpop.f32.mrb[0].mxu0
        %v3567 = vadd.f32 %v3506, %v3566
        %v3568 = vpop.f32.mrb[0].mxu0
        %v3569 = vpop.f32.mrb[0].mxu0
        %v3570 = vadd.f32 %v3507, %v3569
        %v3571 = vpop.f32.mrb[0].mxu0
        %3572 = vmatprep.mubr.bf16.mxu0 0
        %3573 = vmatmul.mubr.bf16.gmra.mrb[0].mxu0 %v3522
        %v3574 = vpop.f32.mrb[0].mxu0
        %v3575 = vadd.f32 %v3508, %v3574
        %v3576 = vpop.f32.mrb[0].mxu0
        %v3577 = vpop.f32.mrb[0].mxu0
        %v3578 = vadd.f32 %v3509, %v3577
        %v3579 = vpop.f32.mrb[0].mxu0
        %3580 = vmatprep.mubr.bf16.mxu0 0
        %3581 = vmatmul.mubr.bf16.gmra.mrb[0].mxu0 %v3523
        %v3582 = vpop.f32.mrb[0].mxu0
        %v3583 = vadd.f32 %v3510, %v3582
        %v3584 = vpop.f32.mrb[0].mxu0
        %v3585 = vpop.f32.mrb[0].mxu0
        %v3586 = vadd.f32 %v3511, %v3585
        %v3587 = vpop.f32.mrb[0].mxu0
        %3588 = vdwg.mxu0
        %v3589 = vadd.f32 %v3559, %v3405
        %v3590 = vadd.f32 %v3562, %v3405
        %v3591 = vadd.f32 %v3567, %v3405
        %v3592 = vadd.f32 %v3570, %v3405
        %v3593 = vadd.f32 %v3575, %v3405
        %v3594 = vadd.f32 %v3578, %v3405
        %v3595 = vadd.f32 %v3583, %v3405
        %v3596 = vadd.f32 %v3586, %v3405
        %v3597 = vpack.c.bf16 %v3497, %v3496
        %v3598 = vpack.c.bf16 %v3499, %v3498
        %v3599 = vpack.c.bf16 %v3501, %v3500
        %v3600 = vpack.c.bf16 %v3503, %v3502
        %3601 = vmatprep.subr.bf16.mxu0 0
        %3602 = vmatpush1.bf16.msra.mxu0 %v3320
        %3603 = vmatprep.subr.bf16.mxu0 0
        %3604 = vmatpush1.bf16.msra.mxu0 %v3321
        %3605 = vmatprep.subr.bf16.mxu0 0
        %3606 = vmatpush1.bf16.msra.mxu0 %v3322
        %3607 = vmatprep.subr.bf16.mxu0 0
        %3608 = vmatpush1.bf16.msra.mxu0 %v3323
        %3609 = vmatprep.subr.bf16.mxu0 0
        %3610 = vmatpush1.bf16.msra.mxu0 %v3324
        %3611 = vmatprep.subr.bf16.mxu0 0
        %3612 = vmatpush1.bf16.msra.mxu0 %v3325
        %3613 = vmatprep.subr.bf16.mxu0 0
        %3614 = vmatpush1.bf16.msra.mxu0 %v3326
        %3615 = vmatprep.subr.bf16.mxu0 0
        %3616 = vmatpush1.bf16.msra.mxu0 %v3327
        %3617 = vmatprep.subr.bf16.mxu0 0
        %3618 = vmatpush1.bf16.msra.mxu0 0
        %3619 = vmatprep.subr.bf16.mxu0 0
        %3620 = vmatpush1.bf16.msra.mxu0 0
        %3621 = vmatprep.subr.bf16.mxu0 0
        %3622 = vmatpush1.bf16.msra.mxu0 0
        %3623 = vmatprep.subr.bf16.mxu0 0
        %3624 = vmatpush1.bf16.msra.mxu0 0
        %3625 = vmatprep.subr.bf16.mxu0 0
        %3626 = vmatpush1.bf16.msra.mxu0 0
        %3627 = vmatprep.subr.bf16.mxu0 0
        %3628 = vmatpush1.bf16.msra.mxu0 0
        %3629 = vmatprep.subr.bf16.mxu0 0
        %3630 = vmatpush1.bf16.msra.mxu0 0
        %3631 = vmatprep.subr.bf16.mxu0 0
        %3632 = vmatpush1.bf16.msra.mxu0 0
        %3633 = vmatprep.mubr.bf16.mxu0 0
        %3634 = vmatmul.mubr.bf16.gmra.mrb[0].mxu0 %v3597
        %v3635 = vpop.f32.mrb[0].mxu0
        %v3636 = vadd.f32 %v3512, %v3635
        %v3637 = vpop.f32.mrb[0].mxu0
        %v3638 = vpop.f32.mrb[0].mxu0
        %v3639 = vadd.f32 %v3513, %v3638
        %v3640 = vpop.f32.mrb[0].mxu0
        %3641 = vmatprep.mubr.bf16.mxu0 0
        %3642 = vmatmul.mubr.bf16.gmra.mrb[0].mxu0 %v3598
        %v3643 = vpop.f32.mrb[0].mxu0
        %v3644 = vadd.f32 %v3514, %v3643
        %v3645 = vpop.f32.mrb[0].mxu0
        %v3646 = vpop.f32.mrb[0].mxu0
        %v3647 = vadd.f32 %v3515, %v3646
        %v3648 = vpop.f32.mrb[0].mxu0
        %3649 = vmatprep.mubr.bf16.mxu0 0
        %3650 = vmatmul.mubr.bf16.gmra.mrb[0].mxu0 %v3599
        %v3651 = vpop.f32.mrb[0].mxu0
        %v3652 = vadd.f32 %v3516, %v3651
        %v3653 = vpop.f32.mrb[0].mxu0
        %v3654 = vpop.f32.mrb[0].mxu0
        %v3655 = vadd.f32 %v3517, %v3654
        %v3656 = vpop.f32.mrb[0].mxu0
        %3657 = vmatprep.mubr.bf16.mxu0 0
        %3658 = vmatmul.mubr.bf16.gmra.mrb[0].mxu0 %v3600
        %v3659 = vpop.f32.mrb[0].mxu0
        %v3660 = vadd.f32 %v3518, %v3659
        %v3661 = vpop.f32.mrb[0].mxu0
        %v3662 = vpop.f32.mrb[0].mxu0
        %v3663 = vadd.f32 %v3519, %v3662
        %v3664 = vpop.f32.mrb[0].mxu0
        %3665 = vdwg.mxu0
        %v3666 = vadd.f32 %v3636, %v3405
        %v3667 = vadd.f32 %v3639, %v3405
        %v3668 = vadd.f32 %v3644, %v3405
        %v3669 = vadd.f32 %v3647, %v3405
        %v3670 = vadd.f32 %v3652, %v3405
        %v3671 = vadd.f32 %v3655, %v3405
        %v3672 = vadd.f32 %v3660, %v3405
        %v3673 = vadd.f32 %v3663, %v3405
        %v3674 = vtanh.pop %v3589
        %v3675 = vtanh.pop %v3590
        %v3676 = vtanh.pop %v3591
        %v3677 = vtanh.pop %v3592
        %v3678 = vtanh.pop %v3593
        %v3679 = vtanh.pop %v3594
        %v3680 = vtanh.pop %v3595
        %v3681 = vtanh.pop %v3596
        %v3682 = vtanh.pop %v3666
        %v3683 = vtanh.pop %v3667
        %v3684 = vtanh.pop %v3668
        %v3685 = vtanh.pop %v3669
        %v3686 = vtanh.pop %v3670
        %v3687 = vtanh.pop %v3671
        %v3688 = vtanh.pop %v3672
        %v3689 = vtanh.pop %v3673
        %v3690 = vld [vmem:[%s2103] sm:$0xff]
        %v3691 = vld [vmem:[%s2103 + $0x8] sm:$0xff]
        %v3692 = vld [vmem:[%s2103 + $0x10] sm:$0xff]
        %v3693 = vld [vmem:[%s2103 + $0x18] sm:$0xff]
        %v3694 = vld [vmem:[%s2103 + $0x20] sm:$0xff]
        %v3695 = vld [vmem:[%s2103 + $0x28] sm:$0xff]
        %v3696 = vld [vmem:[%s2103 + $0x30] sm:$0xff]
        %v3697 = vld [vmem:[%s2103 + $0x38] sm:$0xff]
        %v3698 = vld [vmem:[%s2103 + $0x40] sm:$0xff]
        %v3699 = vld [vmem:[%s2103 + $0x48] sm:$0xff]
        %v3700 = vld [vmem:[%s2103 + $0x50] sm:$0xff]
        %v3701 = vld [vmem:[%s2103 + $0x58] sm:$0xff]
        %v3702 = vld [vmem:[%s2103 + $0x60] sm:$0xff]
        %v3703 = vld [vmem:[%s2103 + $0x68] sm:$0xff]
        %v3704 = vld [vmem:[%s2103 + $0x70] sm:$0xff]
        %v3705 = vld [vmem:[%s2103 + $0x78] sm:$0xff]
        %v3706 = vpack.c.bf16 %v3675, %v3674
        %v3707 = vpack.c.bf16 %v3677, %v3676
        %v3708 = vpack.c.bf16 %v3679, %v3678
        %v3709 = vpack.c.bf16 %v3681, %v3680
        %3710 = vmatprep.subr.bf16.mxu0 0
        %3711 = vmatpush1.bf16.msra.mxu0 %v3320
        %3712 = vmatprep.subr.bf16.mxu0 0
        %3713 = vmatpush1.bf16.msra.mxu0 %v3321
        %3714 = vmatprep.subr.bf16.mxu0 0
        %3715 = vmatpush1.bf16.msra.mxu0 %v3322
        %3716 = vmatprep.subr.bf16.mxu0 0
        %3717 = vmatpush1.bf16.msra.mxu0 %v3323
        %3718 = vmatprep.subr.bf16.mxu0 0
        %3719 = vmatpush1.bf16.msra.mxu0 %v3324
        %3720 = vmatprep.subr.bf16.mxu0 0
        %3721 = vmatpush1.bf16.msra.mxu0 %v3325
        %3722 = vmatprep.subr.bf16.mxu0 0
        %3723 = vmatpush1.bf16.msra.mxu0 %v3326
        %3724 = vmatprep.subr.bf16.mxu0 0
        %3725 = vmatpush1.bf16.msra.mxu0 %v3327
        %3726 = vmatprep.subr.bf16.mxu0 0
        %3727 = vmatpush1.bf16.msra.mxu0 0
        %3728 = vmatprep.subr.bf16.mxu0 0
        %3729 = vmatpush1.bf16.msra.mxu0 0
        %3730 = vmatprep.subr.bf16.mxu0 0
        %3731 = vmatpush1.bf16.msra.mxu0 0
        %3732 = vmatprep.subr.bf16.mxu0 0
        %3733 = vmatpush1.bf16.msra.mxu0 0
        %3734 = vmatprep.subr.bf16.mxu0 0
        %3735 = vmatpush1.bf16.msra.mxu0 0
        %3736 = vmatprep.subr.bf16.mxu0 0
        %3737 = vmatpush1.bf16.msra.mxu0 0
        %3738 = vmatprep.subr.bf16.mxu0 0
        %3739 = vmatpush1.bf16.msra.mxu0 0
        %3740 = vmatprep.subr.bf16.mxu0 0
        %3741 = vmatpush1.bf16.msra.mxu0 0
        %3742 = vmatprep.mubr.bf16.mxu0 0
        %3743 = vmatmul.mubr.bf16.gmra.mrb[0].mxu0 %v3706
        %v3744 = vpop.f32.mrb[0].mxu0
        %v3745 = vadd.f32 %v3690, %v3744
        %v3746 = vpop.f32.mrb[0].mxu0
        %v3747 = vpop.f32.mrb[0].mxu0
        %v3748 = vadd.f32 %v3691, %v3747
        %v3749 = vpop.f32.mrb[0].mxu0
        %3750 = vmatprep.mubr.bf16.mxu0 0
        %3751 = vmatmul.mubr.bf16.gmra.mrb[0].mxu0 %v3707
        %v3752 = vpop.f32.mrb[0].mxu0
        %v3753 = vadd.f32 %v3692, %v3752
        %v3754 = vpop.f32.mrb[0].mxu0
        %v3755 = vpop.f32.mrb[0].mxu0
        %v3756 = vadd.f32 %v3693, %v3755
        %v3757 = vpop.f32.mrb[0].mxu0
        %3758 = vmatprep.mubr.bf16.mxu0 0
        %3759 = vmatmul.mubr.bf16.gmra.mrb[0].mxu0 %v3708
        %v3760 = vpop.f32.mrb[0].mxu0
        %v3761 = vadd.f32 %v3694, %v3760
        %v3762 = vpop.f32.mrb[0].mxu0
        %v3763 = vpop.f32.mrb[0].mxu0
        %v3764 = vadd.f32 %v3695, %v3763
        %v3765 = vpop.f32.mrb[0].mxu0
        %3766 = vmatprep.mubr.bf16.mxu0 0
        %3767 = vmatmul.mubr.bf16.gmra.mrb[0].mxu0 %v3709
        %v3768 = vpop.f32.mrb[0].mxu0
        %v3769 = vadd.f32 %v3696, %v3768
        %v3770 = vpop.f32.mrb[0].mxu0
        %v3771 = vpop.f32.mrb[0].mxu0
        %v3772 = vadd.f32 %v3697, %v3771
        %v3773 = vpop.f32.mrb[0].mxu0
        %3774 = vdwg.mxu0
        %v3775 = vadd.f32 %v3745, %v3405
        %v3776 = vadd.f32 %v3748, %v3405
        %v3777 = vadd.f32 %v3753, %v3405
        %v3778 = vadd.f32 %v3756, %v3405
        %v3779 = vadd.f32 %v3761, %v3405
        %v3780 = vadd.f32 %v3764, %v3405
        %v3781 = vadd.f32 %v3769, %v3405
        %v3782 = vadd.f32 %v3772, %v3405
        %v3783 = vpack.c.bf16 %v3683, %v3682
        %v3784 = vpack.c.bf16 %v3685, %v3684
        %v3785 = vpack.c.bf16 %v3687, %v3686
        %v3786 = vpack.c.bf16 %v3689, %v3688
        %3787 = vmatprep.subr.bf16.mxu0 0
        %3788 = vmatpush1.bf16.msra.mxu0 %v3320
        %3789 = vmatprep.subr.bf16.mxu0 0
        %3790 = vmatpush1.bf16.msra.mxu0 %v3321
        %3791 = vmatprep.subr.bf16.mxu0 0
        %3792 = vmatpush1.bf16.msra.mxu0 %v3322
        %3793 = vmatprep.subr.bf16.mxu0 0
        %3794 = vmatpush1.bf16.msra.mxu0 %v3323
        %3795 = vmatprep.subr.bf16.mxu0 0
        %3796 = vmatpush1.bf16.msra.mxu0 %v3324
        %3797 = vmatprep.subr.bf16.mxu0 0
        %3798 = vmatpush1.bf16.msra.mxu0 %v3325
        %3799 = vmatprep.subr.bf16.mxu0 0
        %3800 = vmatpush1.bf16.msra.mxu0 %v3326
        %3801 = vmatprep.subr.bf16.mxu0 0
        %3802 = vmatpush1.bf16.msra.mxu0 %v3327
        %3803 = vmatprep.subr.bf16.mxu0 0
        %3804 = vmatpush1.bf16.msra.mxu0 0
        %3805 = vmatprep.subr.bf16.mxu0 0
        %3806 = vmatpush1.bf16.msra.mxu0 0
        %3807 = vmatprep.subr.bf16.mxu0 0
        %3808 = vmatpush1.bf16.msra.mxu0 0
        %3809 = vmatprep.subr.bf16.mxu0 0
        %3810 = vmatpush1.bf16.msra.mxu0 0
        %3811 = vmatprep.subr.bf16.mxu0 0
        %3812 = vmatpush1.bf16.msra.mxu0 0
        %3813 = vmatprep.subr.bf16.mxu0 0
        %3814 = vmatpush1.bf16.msra.mxu0 0
        %3815 = vmatprep.subr.bf16.mxu0 0
        %3816 = vmatpush1.bf16.msra.mxu0 0
        %3817 = vmatprep.subr.bf16.mxu0 0
        %3818 = vmatpush1.bf16.msra.mxu0 0
        %3819 = vmatprep.mubr.bf16.mxu0 0
        %3820 = vmatmul.mubr.bf16.gmra.mrb[0].mxu0 %v3783
        %v3821 = vpop.f32.mrb[0].mxu0
        %v3822 = vadd.f32 %v3698, %v3821
        %v3823 = vpop.f32.mrb[0].mxu0
        %v3824 = vpop.f32.mrb[0].mxu0
        %v3825 = vadd.f32 %v3699, %v3824
        %v3826 = vpop.f32.mrb[0].mxu0
        %3827 = vmatprep.mubr.bf16.mxu0 0
        %3828 = vmatmul.mubr.bf16.gmra.mrb[0].mxu0 %v3784
        %v3829 = vpop.f32.mrb[0].mxu0
        %v3830 = vadd.f32 %v3700, %v3829
        %v3831 = vpop.f32.mrb[0].mxu0
        %v3832 = vpop.f32.mrb[0].mxu0
        %v3833 = vadd.f32 %v3701, %v3832
        %v3834 = vpop.f32.mrb[0].mxu0
        %3835 = vmatprep.mubr.bf16.mxu0 0
        %3836 = vmatmul.mubr.bf16.gmra.mrb[0].mxu0 %v3785
        %v3837 = vpop.f32.mrb[0].mxu0
        %v3838 = vadd.f32 %v3702, %v3837
        %v3839 = vpop.f32.mrb[0].mxu0
        %v3840 = vpop.f32.mrb[0].mxu0
        %v3841 = vadd.f32 %v3703, %v3840
        %v3842 = vpop.f32.mrb[0].mxu0
        %3843 = vmatprep.mubr.bf16.mxu0 0
        %3844 = vmatmul.mubr.bf16.gmra.mrb[0].mxu0 %v3786
        %v3845 = vpop.f32.mrb[0].mxu0
        %v3846 = vadd.f32 %v3704, %v3845
        %v3847 = vpop.f32.mrb[0].mxu0
        %v3848 = vpop.f32.mrb[0].mxu0
        %v3849 = vadd.f32 %v3705, %v3848
        %v3850 = vpop.f32.mrb[0].mxu0
        %3851 = vdwg.mxu0
        %v3852 = vadd.f32 %v3822, %v3405
        %v3853 = vadd.f32 %v3825, %v3405
        %v3854 = vadd.f32 %v3830, %v3405
        %v3855 = vadd.f32 %v3833, %v3405
        %v3856 = vadd.f32 %v3838, %v3405
        %v3857 = vadd.f32 %v3841, %v3405
        %v3858 = vadd.f32 %v3846, %v3405
        %v3859 = vadd.f32 %v3849, %v3405
        %v3860 = vtanh.pop %v3775
        %v3861 = vtanh.pop %v3776
        %v3862 = vtanh.pop %v3777
        %v3863 = vtanh.pop %v3778
        %v3864 = vtanh.pop %v3779
        %v3865 = vtanh.pop %v3780
        %v3866 = vtanh.pop %v3781
        %v3867 = vtanh.pop %v3782
        %v3868 = vtanh.pop %v3852
        %v3869 = vtanh.pop %v3853
        %v3870 = vtanh.pop %v3854
        %v3871 = vtanh.pop %v3855
        %v3872 = vtanh.pop %v3856
        %v3873 = vtanh.pop %v3857
        %v3874 = vtanh.pop %v3858
        %v3875 = vtanh.pop %v3859
        %v3876 = vld [vmem:[%s2330] sm:$0xff]
        %v3877 = vld [vmem:[%s2330 + $0x8] sm:$0xff]
        %v3878 = vld [vmem:[%s2330 + $0x10] sm:$0xff]
        %v3879 = vld [vmem:[%s2330 + $0x18] sm:$0xff]
        %v3880 = vld [vmem:[%s2330 + $0x20] sm:$0xff]
        %v3881 = vld [vmem:[%s2330 + $0x28] sm:$0xff]
        %v3882 = vld [vmem:[%s2330 + $0x30] sm:$0xff]
        %v3883 = vld [vmem:[%s2330 + $0x38] sm:$0xff]
        %v3884 = vld [vmem:[%s2330 + $0x40] sm:$0xff]
        %v3885 = vld [vmem:[%s2330 + $0x48] sm:$0xff]
        %v3886 = vld [vmem:[%s2330 + $0x50] sm:$0xff]
        %v3887 = vld [vmem:[%s2330 + $0x58] sm:$0xff]
        %v3888 = vld [vmem:[%s2330 + $0x60] sm:$0xff]
        %v3889 = vld [vmem:[%s2330 + $0x68] sm:$0xff]
        %v3890 = vld [vmem:[%s2330 + $0x70] sm:$0xff]
        %v3891 = vld [vmem:[%s2330 + $0x78] sm:$0xff]
        %v3892 = vpack.c.bf16 %v3861, %v3860
        %v3893 = vpack.c.bf16 %v3863, %v3862
        %v3894 = vpack.c.bf16 %v3865, %v3864
        %v3895 = vpack.c.bf16 %v3867, %v3866
        %3896 = vmatprep.subr.bf16.mxu0 0
        %3897 = vmatpush1.bf16.msra.mxu0 %v3320
        %3898 = vmatprep.subr.bf16.mxu0 0
        %3899 = vmatpush1.bf16.msra.mxu0 %v3321
        %3900 = vmatprep.subr.bf16.mxu0 0
        %3901 = vmatpush1.bf16.msra.mxu0 %v3322
        %3902 = vmatprep.subr.bf16.mxu0 0
        %3903 = vmatpush1.bf16.msra.mxu0 %v3323
        %3904 = vmatprep.subr.bf16.mxu0 0
        %3905 = vmatpush1.bf16.msra.mxu0 %v3324
        %3906 = vmatprep.subr.bf16.mxu0 0
        %3907 = vmatpush1.bf16.msra.mxu0 %v3325
        %3908 = vmatprep.subr.bf16.mxu0 0
        %3909 = vmatpush1.bf16.msra.mxu0 %v3326
        %3910 = vmatprep.subr.bf16.mxu0 0
        %3911 = vmatpush1.bf16.msra.mxu0 %v3327
        %3912 = vmatprep.subr.bf16.mxu0 0
        %3913 = vmatpush1.bf16.msra.mxu0 0
        %3914 = vmatprep.subr.bf16.mxu0 0
        %3915 = vmatpush1.bf16.msra.mxu0 0
        %3916 = vmatprep.subr.bf16.mxu0 0
        %3917 = vmatpush1.bf16.msra.mxu0 0
        %3918 = vmatprep.subr.bf16.mxu0 0
        %3919 = vmatpush1.bf16.msra.mxu0 0
        %3920 = vmatprep.subr.bf16.mxu0 0
        %3921 = vmatpush1.bf16.msra.mxu0 0
        %3922 = vmatprep.subr.bf16.mxu0 0
        %3923 = vmatpush1.bf16.msra.mxu0 0
        %3924 = vmatprep.subr.bf16.mxu0 0
        %3925 = vmatpush1.bf16.msra.mxu0 0
        %3926 = vmatprep.subr.bf16.mxu0 0
        %3927 = vmatpush1.bf16.msra.mxu0 0
        %3928 = vmatprep.mubr.bf16.mxu0 0
        %3929 = vmatmul.mubr.bf16.gmra.mrb[0].mxu0 %v3892
        %v3930 = vpop.f32.mrb[0].mxu0
        %v3931 = vadd.f32 %v3876, %v3930
        %v3932 = vpop.f32.mrb[0].mxu0
        %v3933 = vpop.f32.mrb[0].mxu0
        %v3934 = vadd.f32 %v3877, %v3933
        %v3935 = vpop.f32.mrb[0].mxu0
        %3936 = vmatprep.mubr.bf16.mxu0 0
        %3937 = vmatmul.mubr.bf16.gmra.mrb[0].mxu0 %v3893
        %v3938 = vpop.f32.mrb[0].mxu0
        %v3939 = vadd.f32 %v3878, %v3938
        %v3940 = vpop.f32.mrb[0].mxu0
        %v3941 = vpop.f32.mrb[0].mxu0
        %v3942 = vadd.f32 %v3879, %v3941
        %v3943 = vpop.f32.mrb[0].mxu0
        %3944 = vmatprep.mubr.bf16.mxu0 0
        %3945 = vmatmul.mubr.bf16.gmra.mrb[0].mxu0 %v3894
        %v3946 = vpop.f32.mrb[0].mxu0
        %v3947 = vadd.f32 %v3880, %v3946
        %v3948 = vpop.f32.mrb[0].mxu0
        %v3949 = vpop.f32.mrb[0].mxu0
        %v3950 = vadd.f32 %v3881, %v3949
        %v3951 = vpop.f32.mrb[0].mxu0
        %3952 = vmatprep.mubr.bf16.mxu0 0
        %3953 = vmatmul.mubr.bf16.gmra.mrb[0].mxu0 %v3895
        %v3954 = vpop.f32.mrb[0].mxu0
        %v3955 = vadd.f32 %v3882, %v3954
        %v3956 = vpop.f32.mrb[0].mxu0
        %v3957 = vpop.f32.mrb[0].mxu0
        %v3958 = vadd.f32 %v3883, %v3957
        %v3959 = vpop.f32.mrb[0].mxu0
        %3960 = vdwg.mxu0
        %v3961 = vadd.f32 %v3931, %v3405
        %v3962 = vadd.f32 %v3934, %v3405
        %v3963 = vadd.f32 %v3939, %v3405
        %v3964 = vadd.f32 %v3942, %v3405
        %v3965 = vadd.f32 %v3947, %v3405
        %v3966 = vadd.f32 %v3950, %v3405
        %v3967 = vadd.f32 %v3955, %v3405
        %v3968 = vadd.f32 %v3958, %v3405
        %v3969 = vpack.c.bf16 %v3869, %v3868
        %v3970 = vpack.c.bf16 %v3871, %v3870
        %v3971 = vpack.c.bf16 %v3873, %v3872
        %v3972 = vpack.c.bf16 %v3875, %v3874
        %3973 = vmatprep.subr.bf16.mxu0 0
        %3974 = vmatpush1.bf16.msra.mxu0 %v3320
        %3975 = vmatprep.subr.bf16.mxu0 0
        %3976 = vmatpush1.bf16.msra.mxu0 %v3321
        %3977 = vmatprep.subr.bf16.mxu0 0
        %3978 = vmatpush1.bf16.msra.mxu0 %v3322
        %3979 = vmatprep.subr.bf16.mxu0 0
        %3980 = vmatpush1.bf16.msra.mxu0 %v3323
        %3981 = vmatprep.subr.bf16.mxu0 0
        %3982 = vmatpush1.bf16.msra.mxu0 %v3324
        %3983 = vmatprep.subr.bf16.mxu0 0
        %3984 = vmatpush1.bf16.msra.mxu0 %v3325
        %3985 = vmatprep.subr.bf16.mxu0 0
        %3986 = vmatpush1.bf16.msra.mxu0 %v3326
        %3987 = vmatprep.subr.bf16.mxu0 0
        %3988 = vmatpush1.bf16.msra.mxu0 %v3327
        %3989 = vmatprep.subr.bf16.mxu0 0
        %3990 = vmatpush1.bf16.msra.mxu0 0
        %3991 = vmatprep.subr.bf16.mxu0 0
        %3992 = vmatpush1.bf16.msra.mxu0 0
        %3993 = vmatprep.subr.bf16.mxu0 0
        %3994 = vmatpush1.bf16.msra.mxu0 0
        %3995 = vmatprep.subr.bf16.mxu0 0
        %3996 = vmatpush1.bf16.msra.mxu0 0
        %3997 = vmatprep.subr.bf16.mxu0 0
        %3998 = vmatpush1.bf16.msra.mxu0 0
        %3999 = vmatprep.subr.bf16.mxu0 0
        %4000 = vmatpush1.bf16.msra.mxu0 0
        %4001 = vmatprep.subr.bf16.mxu0 0
        %4002 = vmatpush1.bf16.msra.mxu0 0
        %4003 = vmatprep.subr.bf16.mxu0 0
        %4004 = vmatpush1.bf16.msra.mxu0 0
        %4005 = vmatprep.mubr.bf16.mxu0 0
        %4006 = vmatmul.mubr.bf16.gmra.mrb[0].mxu0 %v3969
        %v4007 = vpop.f32.mrb[0].mxu0
        %v4008 = vadd.f32 %v3884, %v4007
        %v4009 = vpop.f32.mrb[0].mxu0
        %v4010 = vpop.f32.mrb[0].mxu0
        %v4011 = vadd.f32 %v3885, %v4010
        %v4012 = vpop.f32.mrb[0].mxu0
        %4013 = vmatprep.mubr.bf16.mxu0 0
        %4014 = vmatmul.mubr.bf16.gmra.mrb[0].mxu0 %v3970
        %v4015 = vpop.f32.mrb[0].mxu0
        %v4016 = vadd.f32 %v3886, %v4015
        %v4017 = vpop.f32.mrb[0].mxu0
        %v4018 = vpop.f32.mrb[0].mxu0
        %v4019 = vadd.f32 %v3887, %v4018
        %v4020 = vpop.f32.mrb[0].mxu0
        %4021 = vmatprep.mubr.bf16.mxu0 0
        %4022 = vmatmul.mubr.bf16.gmra.mrb[0].mxu0 %v3971
        %v4023 = vpop.f32.mrb[0].mxu0
        %v4024 = vadd.f32 %v3888, %v4023
        %v4025 = vpop.f32.mrb[0].mxu0
        %v4026 = vpop.f32.mrb[0].mxu0
        %v4027 = vadd.f32 %v3889, %v4026
        %v4028 = vpop.f32.mrb[0].mxu0
        %4029 = vmatprep.mubr.bf16.mxu0 0
        %4030 = vmatmul.mubr.bf16.gmra.mrb[0].mxu0 %v3972
        %v4031 = vpop.f32.mrb[0].mxu0
        %v4032 = vadd.f32 %v3890, %v4031
        %v4033 = vpop.f32.mrb[0].mxu0
        %v4034 = vpop.f32.mrb[0].mxu0
        %v4035 = vadd.f32 %v3891, %v4034
        %v4036 = vpop.f32.mrb[0].mxu0
        %4037 = vdwg.mxu0
        %v4038 = vadd.f32 %v4008, %v3405
        %v4039 = vadd.f32 %v4011, %v3405
        %v4040 = vadd.f32 %v4016, %v3405
        %v4041 = vadd.f32 %v4019, %v3405
        %v4042 = vadd.f32 %v4024, %v3405
        %v4043 = vadd.f32 %v4027, %v3405
        %v4044 = vadd.f32 %v4032, %v3405
        %v4045 = vadd.f32 %v4035, %v3405
        %v4046 = vtanh.pop %v3961
        %v4047 = vtanh.pop %v3962
        %v4048 = vtanh.pop %v3963
        %v4049 = vtanh.pop %v3964
        %v4050 = vtanh.pop %v3965
        %v4051 = vtanh.pop %v3966
        %v4052 = vtanh.pop %v3967
        %v4053 = vtanh.pop %v3968
        %v4054 = vtanh.pop %v4038
        %v4055 = vtanh.pop %v4039
        %v4056 = vtanh.pop %v4040
        %v4057 = vtanh.pop %v4041
        %v4058 = vtanh.pop %v4042
        %v4059 = vtanh.pop %v4043
        %v4060 = vtanh.pop %v4044
        %v4061 = vtanh.pop %v4045
        %v4062 = vld [vmem:[%s2557] sm:$0xff]
        %v4063 = vld [vmem:[%s2557 + $0x8] sm:$0xff]
        %v4064 = vld [vmem:[%s2557 + $0x10] sm:$0xff]
        %v4065 = vld [vmem:[%s2557 + $0x18] sm:$0xff]
        %v4066 = vld [vmem:[%s2557 + $0x20] sm:$0xff]
        %v4067 = vld [vmem:[%s2557 + $0x28] sm:$0xff]
        %v4068 = vld [vmem:[%s2557 + $0x30] sm:$0xff]
        %v4069 = vld [vmem:[%s2557 + $0x38] sm:$0xff]
        %v4070 = vld [vmem:[%s2557 + $0x40] sm:$0xff]
        %v4071 = vld [vmem:[%s2557 + $0x48] sm:$0xff]
        %v4072 = vld [vmem:[%s2557 + $0x50] sm:$0xff]
        %v4073 = vld [vmem:[%s2557 + $0x58] sm:$0xff]
        %v4074 = vld [vmem:[%s2557 + $0x60] sm:$0xff]
        %v4075 = vld [vmem:[%s2557 + $0x68] sm:$0xff]
        %v4076 = vld [vmem:[%s2557 + $0x70] sm:$0xff]
        %v4077 = vld [vmem:[%s2557 + $0x78] sm:$0xff]
        %v4078 = vpack.c.bf16 %v4047, %v4046
        %v4079 = vpack.c.bf16 %v4049, %v4048
        %v4080 = vpack.c.bf16 %v4051, %v4050
        %v4081 = vpack.c.bf16 %v4053, %v4052
        %4082 = vmatprep.subr.bf16.mxu0 0
        %4083 = vmatpush1.bf16.msra.mxu0 %v3320
        %4084 = vmatprep.subr.bf16.mxu0 0
        %4085 = vmatpush1.bf16.msra.mxu0 %v3321
        %4086 = vmatprep.subr.bf16.mxu0 0
        %4087 = vmatpush1.bf16.msra.mxu0 %v3322
        %4088 = vmatprep.subr.bf16.mxu0 0
        %4089 = vmatpush1.bf16.msra.mxu0 %v3323
        %4090 = vmatprep.subr.bf16.mxu0 0
        %4091 = vmatpush1.bf16.msra.mxu0 %v3324
        %4092 = vmatprep.subr.bf16.mxu0 0
        %4093 = vmatpush1.bf16.msra.mxu0 %v3325
        %4094 = vmatprep.subr.bf16.mxu0 0
        %4095 = vmatpush1.bf16.msra.mxu0 %v3326
        %4096 = vmatprep.subr.bf16.mxu0 0
        %4097 = vmatpush1.bf16.msra.mxu0 %v3327
        %4098 = vmatprep.subr.bf16.mxu0 0
        %4099 = vmatpush1.bf16.msra.mxu0 0
        %4100 = vmatprep.subr.bf16.mxu0 0
        %4101 = vmatpush1.bf16.msra.mxu0 0
        %4102 = vmatprep.subr.bf16.mxu0 0
        %4103 = vmatpush1.bf16.msra.mxu0 0
        %4104 = vmatprep.subr.bf16.mxu0 0
        %4105 = vmatpush1.bf16.msra.mxu0 0
        %4106 = vmatprep.subr.bf16.mxu0 0
        %4107 = vmatpush1.bf16.msra.mxu0 0
        %4108 = vmatprep.subr.bf16.mxu0 0
        %4109 = vmatpush1.bf16.msra.mxu0 0
        %4110 = vmatprep.subr.bf16.mxu0 0
        %4111 = vmatpush1.bf16.msra.mxu0 0
        %4112 = vmatprep.subr.bf16.mxu0 0
        %4113 = vmatpush1.bf16.msra.mxu0 0
        %4114 = vmatprep.mubr.bf16.mxu0 0
        %4115 = vmatmul.mubr.bf16.gmra.mrb[0].mxu0 %v4078
        %v4116 = vpop.f32.mrb[0].mxu0
        %v4117 = vadd.f32 %v4062, %v4116
        %v4118 = vpop.f32.mrb[0].mxu0
        %v4119 = vpop.f32.mrb[0].mxu0
        %v4120 = vadd.f32 %v4063, %v4119
        %v4121 = vpop.f32.mrb[0].mxu0
        %4122 = vmatprep.mubr.bf16.mxu0 0
        %4123 = vmatmul.mubr.bf16.gmra.mrb[0].mxu0 %v4079
        %v4124 = vpop.f32.mrb[0].mxu0
        %v4125 = vadd.f32 %v4064, %v4124
        %v4126 = vpop.f32.mrb[0].mxu0
        %v4127 = vpop.f32.mrb[0].mxu0
        %v4128 = vadd.f32 %v4065, %v4127
        %v4129 = vpop.f32.mrb[0].mxu0
        %4130 = vmatprep.mubr.bf16.mxu0 0
        %4131 = vmatmul.mubr.bf16.gmra.mrb[0].mxu0 %v4080
        %v4132 = vpop.f32.mrb[0].mxu0
        %v4133 = vadd.f32 %v4066, %v4132
        %v4134 = vpop.f32.mrb[0].mxu0
        %v4135 = vpop.f32.mrb[0].mxu0
        %v4136 = vadd.f32 %v4067, %v4135
        %v4137 = vpop.f32.mrb[0].mxu0
        %4138 = vmatprep.mubr.bf16.mxu0 0
        %4139 = vmatmul.mubr.bf16.gmra.mrb[0].mxu0 %v4081
        %v4140 = vpop.f32.mrb[0].mxu0
        %v4141 = vadd.f32 %v4068, %v4140
        %v4142 = vpop.f32.mrb[0].mxu0
        %v4143 = vpop.f32.mrb[0].mxu0
        %v4144 = vadd.f32 %v4069, %v4143
        %v4145 = vpop.f32.mrb[0].mxu0
        %4146 = vdwg.mxu0
        %v4147 = vadd.f32 %v4117, %v3405
        %v4148 = vadd.f32 %v4120, %v3405
        %v4149 = vadd.f32 %v4125, %v3405
        %v4150 = vadd.f32 %v4128, %v3405
        %v4151 = vadd.f32 %v4133, %v3405
        %v4152 = vadd.f32 %v4136, %v3405
        %v4153 = vadd.f32 %v4141, %v3405
        %v4154 = vadd.f32 %v4144, %v3405
        %v4155 = vpack.c.bf16 %v4055, %v4054
        %v4156 = vpack.c.bf16 %v4057, %v4056
        %v4157 = vpack.c.bf16 %v4059, %v4058
        %v4158 = vpack.c.bf16 %v4061, %v4060
        %4159 = vmatprep.subr.bf16.mxu0 0
        %4160 = vmatpush1.bf16.msra.mxu0 %v3320
        %4161 = vmatprep.subr.bf16.mxu0 0
        %4162 = vmatpush1.bf16.msra.mxu0 %v3321
        %4163 = vmatprep.subr.bf16.mxu0 0
        %4164 = vmatpush1.bf16.msra.mxu0 %v3322
        %4165 = vmatprep.subr.bf16.mxu0 0
        %4166 = vmatpush1.bf16.msra.mxu0 %v3323
        %4167 = vmatprep.subr.bf16.mxu0 0
        %4168 = vmatpush1.bf16.msra.mxu0 %v3324
        %4169 = vmatprep.subr.bf16.mxu0 0
        %4170 = vmatpush1.bf16.msra.mxu0 %v3325
        %4171 = vmatprep.subr.bf16.mxu0 0
        %4172 = vmatpush1.bf16.msra.mxu0 %v3326
        %4173 = vmatprep.subr.bf16.mxu0 0
        %4174 = vmatpush1.bf16.msra.mxu0 %v3327
        %4175 = vmatprep.subr.bf16.mxu0 0
        %4176 = vmatpush1.bf16.msra.mxu0 0
        %4177 = vmatprep.subr.bf16.mxu0 0
        %4178 = vmatpush1.bf16.msra.mxu0 0
        %4179 = vmatprep.subr.bf16.mxu0 0
        %4180 = vmatpush1.bf16.msra.mxu0 0
        %4181 = vmatprep.subr.bf16.mxu0 0
        %4182 = vmatpush1.bf16.msra.mxu0 0
        %4183 = vmatprep.subr.bf16.mxu0 0
        %4184 = vmatpush1.bf16.msra.mxu0 0
        %4185 = vmatprep.subr.bf16.mxu0 0
        %4186 = vmatpush1.bf16.msra.mxu0 0
        %4187 = vmatprep.subr.bf16.mxu0 0
        %4188 = vmatpush1.bf16.msra.mxu0 0
        %4189 = vmatprep.subr.bf16.mxu0 0
        %4190 = vmatpush1.bf16.msra.mxu0 0
        %4191 = vmatprep.mubr.bf16.mxu0 0
        %4192 = vmatmul.mubr.bf16.gmra.mrb[0].mxu0 %v4155
        %v4193 = vpop.f32.mrb[0].mxu0
        %v4194 = vadd.f32 %v4070, %v4193
        %v4195 = vpop.f32.mrb[0].mxu0
        %v4196 = vpop.f32.mrb[0].mxu0
        %v4197 = vadd.f32 %v4071, %v4196
        %v4198 = vpop.f32.mrb[0].mxu0
        %4199 = vmatprep.mubr.bf16.mxu0 0
        %4200 = vmatmul.mubr.bf16.gmra.mrb[0].mxu0 %v4156
        %v4201 = vpop.f32.mrb[0].mxu0
        %v4202 = vadd.f32 %v4072, %v4201
        %v4203 = vpop.f32.mrb[0].mxu0
        %v4204 = vpop.f32.mrb[0].mxu0
        %v4205 = vadd.f32 %v4073, %v4204
        %v4206 = vpop.f32.mrb[0].mxu0
        %4207 = vmatprep.mubr.bf16.mxu0 0
        %4208 = vmatmul.mubr.bf16.gmra.mrb[0].mxu0 %v4157
        %v4209 = vpop.f32.mrb[0].mxu0
        %v4210 = vadd.f32 %v4074, %v4209
        %v4211 = vpop.f32.mrb[0].mxu0
        %v4212 = vpop.f32.mrb[0].mxu0
        %v4213 = vadd.f32 %v4075, %v4212
        %v4214 = vpop.f32.mrb[0].mxu0
        %4215 = vmatprep.mubr.bf16.mxu0 0
        %4216 = vmatmul.mubr.bf16.gmra.mrb[0].mxu0 %v4158
        %v4217 = vpop.f32.mrb[0].mxu0
        %v4218 = vadd.f32 %v4076, %v4217
        %v4219 = vpop.f32.mrb[0].mxu0
        %v4220 = vpop.f32.mrb[0].mxu0
        %v4221 = vadd.f32 %v4077, %v4220
        %v4222 = vpop.f32.mrb[0].mxu0
        %4223 = vdwg.mxu0
        %v4224 = vadd.f32 %v4194, %v3405
        %v4225 = vadd.f32 %v4197, %v3405
        %v4226 = vadd.f32 %v4202, %v3405
        %v4227 = vadd.f32 %v4205, %v3405
        %v4228 = vadd.f32 %v4210, %v3405
        %v4229 = vadd.f32 %v4213, %v3405
        %v4230 = vadd.f32 %v4218, %v3405
        %v4231 = vadd.f32 %v4221, %v3405
        %v4232 = vtanh.pop %v4147
        %v4233 = vtanh.pop %v4148
        %v4234 = vtanh.pop %v4149
        %v4235 = vtanh.pop %v4150
        %v4236 = vtanh.pop %v4151
        %v4237 = vtanh.pop %v4152
        %v4238 = vtanh.pop %v4153
        %v4239 = vtanh.pop %v4154
        %v4240 = vtanh.pop %v4224
        %v4241 = vtanh.pop %v4225
        %v4242 = vtanh.pop %v4226
        %v4243 = vtanh.pop %v4227
        %v4244 = vtanh.pop %v4228
        %v4245 = vtanh.pop %v4229
        %v4246 = vtanh.pop %v4230
        %v4247 = vtanh.pop %v4231
        %v4248 = vld [vmem:[%s2784] sm:$0xff]
        %v4249 = vld [vmem:[%s2784 + $0x8] sm:$0xff]
        %v4250 = vld [vmem:[%s2784 + $0x10] sm:$0xff]
        %v4251 = vld [vmem:[%s2784 + $0x18] sm:$0xff]
        %v4252 = vld [vmem:[%s2784 + $0x20] sm:$0xff]
        %v4253 = vld [vmem:[%s2784 + $0x28] sm:$0xff]
        %v4254 = vld [vmem:[%s2784 + $0x30] sm:$0xff]
        %v4255 = vld [vmem:[%s2784 + $0x38] sm:$0xff]
        %v4256 = vld [vmem:[%s2784 + $0x40] sm:$0xff]
        %v4257 = vld [vmem:[%s2784 + $0x48] sm:$0xff]
        %v4258 = vld [vmem:[%s2784 + $0x50] sm:$0xff]
        %v4259 = vld [vmem:[%s2784 + $0x58] sm:$0xff]
        %v4260 = vld [vmem:[%s2784 + $0x60] sm:$0xff]
        %v4261 = vld [vmem:[%s2784 + $0x68] sm:$0xff]
        %v4262 = vld [vmem:[%s2784 + $0x70] sm:$0xff]
        %v4263 = vld [vmem:[%s2784 + $0x78] sm:$0xff]
        %v4264 = vpack.c.bf16 %v4233, %v4232
        %v4265 = vpack.c.bf16 %v4235, %v4234
        %v4266 = vpack.c.bf16 %v4237, %v4236
        %v4267 = vpack.c.bf16 %v4239, %v4238
        %4268 = vmatprep.subr.bf16.mxu0 0
        %4269 = vmatpush1.bf16.msra.mxu0 %v3320
        %4270 = vmatprep.subr.bf16.mxu0 0
        %4271 = vmatpush1.bf16.msra.mxu0 %v3321
        %4272 = vmatprep.subr.bf16.mxu0 0
        %4273 = vmatpush1.bf16.msra.mxu0 %v3322
        %4274 = vmatprep.subr.bf16.mxu0 0
        %4275 = vmatpush1.bf16.msra.mxu0 %v3323
        %4276 = vmatprep.subr.bf16.mxu0 0
        %4277 = vmatpush1.bf16.msra.mxu0 %v3324
        %4278 = vmatprep.subr.bf16.mxu0 0
        %4279 = vmatpush1.bf16.msra.mxu0 %v3325
        %4280 = vmatprep.subr.bf16.mxu0 0
        %4281 = vmatpush1.bf16.msra.mxu0 %v3326
        %4282 = vmatprep.subr.bf16.mxu0 0
        %4283 = vmatpush1.bf16.msra.mxu0 %v3327
        %4284 = vmatprep.subr.bf16.mxu0 0
        %4285 = vmatpush1.bf16.msra.mxu0 0
        %4286 = vmatprep.subr.bf16.mxu0 0
        %4287 = vmatpush1.bf16.msra.mxu0 0
        %4288 = vmatprep.subr.bf16.mxu0 0
        %4289 = vmatpush1.bf16.msra.mxu0 0
        %4290 = vmatprep.subr.bf16.mxu0 0
        %4291 = vmatpush1.bf16.msra.mxu0 0
        %4292 = vmatprep.subr.bf16.mxu0 0
        %4293 = vmatpush1.bf16.msra.mxu0 0
        %4294 = vmatprep.subr.bf16.mxu0 0
        %4295 = vmatpush1.bf16.msra.mxu0 0
        %4296 = vmatprep.subr.bf16.mxu0 0
        %4297 = vmatpush1.bf16.msra.mxu0 0
        %4298 = vmatprep.subr.bf16.mxu0 0
        %4299 = vmatpush1.bf16.msra.mxu0 0
        %4300 = vmatprep.mubr.bf16.mxu0 0
        %4301 = vmatmul.mubr.bf16.gmra.mrb[0].mxu0 %v4264
        %v4302 = vpop.f32.mrb[0].mxu0
        %v4303 = vadd.f32 %v4248, %v4302
        %v4304 = vpop.f32.mrb[0].mxu0
        %v4305 = vpop.f32.mrb[0].mxu0
        %v4306 = vadd.f32 %v4249, %v4305
        %v4307 = vpop.f32.mrb[0].mxu0
        %4308 = vmatprep.mubr.bf16.mxu0 0
        %4309 = vmatmul.mubr.bf16.gmra.mrb[0].mxu0 %v4265
        %v4310 = vpop.f32.mrb[0].mxu0
        %v4311 = vadd.f32 %v4250, %v4310
        %v4312 = vpop.f32.mrb[0].mxu0
        %v4313 = vpop.f32.mrb[0].mxu0
        %v4314 = vadd.f32 %v4251, %v4313
        %v4315 = vpop.f32.mrb[0].mxu0
        %4316 = vmatprep.mubr.bf16.mxu0 0
        %4317 = vmatmul.mubr.bf16.gmra.mrb[0].mxu0 %v4266
        %v4318 = vpop.f32.mrb[0].mxu0
        %v4319 = vadd.f32 %v4252, %v4318
        %v4320 = vpop.f32.mrb[0].mxu0
        %v4321 = vpop.f32.mrb[0].mxu0
        %v4322 = vadd.f32 %v4253, %v4321
        %v4323 = vpop.f32.mrb[0].mxu0
        %4324 = vmatprep.mubr.bf16.mxu0 0
        %4325 = vmatmul.mubr.bf16.gmra.mrb[0].mxu0 %v4267
        %v4326 = vpop.f32.mrb[0].mxu0
        %v4327 = vadd.f32 %v4254, %v4326
        %v4328 = vpop.f32.mrb[0].mxu0
        %v4329 = vpop.f32.mrb[0].mxu0
        %v4330 = vadd.f32 %v4255, %v4329
        %v4331 = vpop.f32.mrb[0].mxu0
        %4332 = vdwg.mxu0
        %v4333 = vadd.f32 %v4303, %v3405
        %v4334 = vadd.f32 %v4306, %v3405
        %v4335 = vadd.f32 %v4311, %v3405
        %v4336 = vadd.f32 %v4314, %v3405
        %v4337 = vadd.f32 %v4319, %v3405
        %v4338 = vadd.f32 %v4322, %v3405
        %v4339 = vadd.f32 %v4327, %v3405
        %v4340 = vadd.f32 %v4330, %v3405
        %v4341 = vpack.c.bf16 %v4241, %v4240
        %v4342 = vpack.c.bf16 %v4243, %v4242
        %v4343 = vpack.c.bf16 %v4245, %v4244
        %v4344 = vpack.c.bf16 %v4247, %v4246
        %4345 = vmatprep.subr.bf16.mxu0 0
        %4346 = vmatpush1.bf16.msra.mxu0 %v3320
        %4347 = vmatprep.subr.bf16.mxu0 0
        %4348 = vmatpush1.bf16.msra.mxu0 %v3321
        %4349 = vmatprep.subr.bf16.mxu0 0
        %4350 = vmatpush1.bf16.msra.mxu0 %v3322
        %4351 = vmatprep.subr.bf16.mxu0 0
        %4352 = vmatpush1.bf16.msra.mxu0 %v3323
        %4353 = vmatprep.subr.bf16.mxu0 0
        %4354 = vmatpush1.bf16.msra.mxu0 %v3324
        %4355 = vmatprep.subr.bf16.mxu0 0
        %4356 = vmatpush1.bf16.msra.mxu0 %v3325
        %4357 = vmatprep.subr.bf16.mxu0 0
        %4358 = vmatpush1.bf16.msra.mxu0 %v3326
        %4359 = vmatprep.subr.bf16.mxu0 0
        %4360 = vmatpush1.bf16.msra.mxu0 %v3327
        %4361 = vmatprep.subr.bf16.mxu0 0
        %4362 = vmatpush1.bf16.msra.mxu0 0
        %4363 = vmatprep.subr.bf16.mxu0 0
        %4364 = vmatpush1.bf16.msra.mxu0 0
        %4365 = vmatprep.subr.bf16.mxu0 0
        %4366 = vmatpush1.bf16.msra.mxu0 0
        %4367 = vmatprep.subr.bf16.mxu0 0
        %4368 = vmatpush1.bf16.msra.mxu0 0
        %4369 = vmatprep.subr.bf16.mxu0 0
        %4370 = vmatpush1.bf16.msra.mxu0 0
        %4371 = vmatprep.subr.bf16.mxu0 0
        %4372 = vmatpush1.bf16.msra.mxu0 0
        %4373 = vmatprep.subr.bf16.mxu0 0
        %4374 = vmatpush1.bf16.msra.mxu0 0
        %4375 = vmatprep.subr.bf16.mxu0 0
        %4376 = vmatpush1.bf16.msra.mxu0 0
        %4377 = vmatprep.mubr.bf16.mxu0 0
        %4378 = vmatmul.mubr.bf16.gmra.mrb[0].mxu0 %v4341
        %v4379 = vpop.f32.mrb[0].mxu0
        %v4380 = vadd.f32 %v4256, %v4379
        %v4381 = vpop.f32.mrb[0].mxu0
        %v4382 = vpop.f32.mrb[0].mxu0
        %v4383 = vadd.f32 %v4257, %v4382
        %v4384 = vpop.f32.mrb[0].mxu0
        %4385 = vmatprep.mubr.bf16.mxu0 0
        %4386 = vmatmul.mubr.bf16.gmra.mrb[0].mxu0 %v4342
        %v4387 = vpop.f32.mrb[0].mxu0
        %v4388 = vadd.f32 %v4258, %v4387
        %v4389 = vpop.f32.mrb[0].mxu0
        %v4390 = vpop.f32.mrb[0].mxu0
        %v4391 = vadd.f32 %v4259, %v4390
        %v4392 = vpop.f32.mrb[0].mxu0
        %4393 = vmatprep.mubr.bf16.mxu0 0
        %4394 = vmatmul.mubr.bf16.gmra.mrb[0].mxu0 %v4343
        %v4395 = vpop.f32.mrb[0].mxu0
        %v4396 = vadd.f32 %v4260, %v4395
        %v4397 = vpop.f32.mrb[0].mxu0
        %v4398 = vpop.f32.mrb[0].mxu0
        %v4399 = vadd.f32 %v4261, %v4398
        %v4400 = vpop.f32.mrb[0].mxu0
        %4401 = vmatprep.mubr.bf16.mxu0 0
        %4402 = vmatmul.mubr.bf16.gmra.mrb[0].mxu0 %v4344
        %v4403 = vpop.f32.mrb[0].mxu0
        %v4404 = vadd.f32 %v4262, %v4403
        %v4405 = vpop.f32.mrb[0].mxu0
        %v4406 = vpop.f32.mrb[0].mxu0
        %v4407 = vadd.f32 %v4263, %v4406
        %v4408 = vpop.f32.mrb[0].mxu0
        %4409 = vdwg.mxu0
        %v4410 = vadd.f32 %v4380, %v3405
        %v4411 = vadd.f32 %v4383, %v3405
        %v4412 = vadd.f32 %v4388, %v3405
        %v4413 = vadd.f32 %v4391, %v3405
        %v4414 = vadd.f32 %v4396, %v3405
        %v4415 = vadd.f32 %v4399, %v3405
        %v4416 = vadd.f32 %v4404, %v3405
        %v4417 = vadd.f32 %v4407, %v3405
        %v4418 = vtanh.pop %v4333
        %v4419 = vtanh.pop %v4334
        %v4420 = vtanh.pop %v4335
        %v4421 = vtanh.pop %v4336
        %v4422 = vtanh.pop %v4337
        %v4423 = vtanh.pop %v4338
        %v4424 = vtanh.pop %v4339
        %v4425 = vtanh.pop %v4340
        %v4426 = vtanh.pop %v4410
        %v4427 = vtanh.pop %v4411
        %v4428 = vtanh.pop %v4412
        %v4429 = vtanh.pop %v4413
        %v4430 = vtanh.pop %v4414
        %v4431 = vtanh.pop %v4415
        %v4432 = vtanh.pop %v4416
        %v4433 = vtanh.pop %v4417
        %v4434 = vld [vmem:[%s3011] sm:$0xff]
        %v4435 = vld [vmem:[%s3011 + $0x8] sm:$0xff]
        %v4436 = vld [vmem:[%s3011 + $0x10] sm:$0xff]
        %v4437 = vld [vmem:[%s3011 + $0x18] sm:$0xff]
        %v4438 = vld [vmem:[%s3011 + $0x20] sm:$0xff]
        %v4439 = vld [vmem:[%s3011 + $0x28] sm:$0xff]
        %v4440 = vld [vmem:[%s3011 + $0x30] sm:$0xff]
        %v4441 = vld [vmem:[%s3011 + $0x38] sm:$0xff]
        %v4442 = vld [vmem:[%s3011 + $0x40] sm:$0xff]
        %v4443 = vld [vmem:[%s3011 + $0x48] sm:$0xff]
        %v4444 = vld [vmem:[%s3011 + $0x50] sm:$0xff]
        %v4445 = vld [vmem:[%s3011 + $0x58] sm:$0xff]
        %v4446 = vld [vmem:[%s3011 + $0x60] sm:$0xff]
        %v4447 = vld [vmem:[%s3011 + $0x68] sm:$0xff]
        %v4448 = vld [vmem:[%s3011 + $0x70] sm:$0xff]
        %v4449 = vld [vmem:[%s3011 + $0x78] sm:$0xff]
        %v4450 = vpack.c.bf16 %v4419, %v4418
        %v4451 = vpack.c.bf16 %v4421, %v4420
        %v4452 = vpack.c.bf16 %v4423, %v4422
        %v4453 = vpack.c.bf16 %v4425, %v4424
        %4454 = vmatprep.subr.bf16.mxu0 0
        %4455 = vmatpush1.bf16.msra.mxu0 %v3320
        %4456 = vmatprep.subr.bf16.mxu0 0
        %4457 = vmatpush1.bf16.msra.mxu0 %v3321
        %4458 = vmatprep.subr.bf16.mxu0 0
        %4459 = vmatpush1.bf16.msra.mxu0 %v3322
        %4460 = vmatprep.subr.bf16.mxu0 0
        %4461 = vmatpush1.bf16.msra.mxu0 %v3323
        %4462 = vmatprep.subr.bf16.mxu0 0
        %4463 = vmatpush1.bf16.msra.mxu0 %v3324
        %4464 = vmatprep.subr.bf16.mxu0 0
        %4465 = vmatpush1.bf16.msra.mxu0 %v3325
        %4466 = vmatprep.subr.bf16.mxu0 0
        %4467 = vmatpush1.bf16.msra.mxu0 %v3326
        %4468 = vmatprep.subr.bf16.mxu0 0
        %4469 = vmatpush1.bf16.msra.mxu0 %v3327
        %4470 = vmatprep.subr.bf16.mxu0 0
        %4471 = vmatpush1.bf16.msra.mxu0 0
        %4472 = vmatprep.subr.bf16.mxu0 0
        %4473 = vmatpush1.bf16.msra.mxu0 0
        %4474 = vmatprep.subr.bf16.mxu0 0
        %4475 = vmatpush1.bf16.msra.mxu0 0
        %4476 = vmatprep.subr.bf16.mxu0 0
        %4477 = vmatpush1.bf16.msra.mxu0 0
        %4478 = vmatprep.subr.bf16.mxu0 0
        %4479 = vmatpush1.bf16.msra.mxu0 0
        %4480 = vmatprep.subr.bf16.mxu0 0
        %4481 = vmatpush1.bf16.msra.mxu0 0
        %4482 = vmatprep.subr.bf16.mxu0 0
        %4483 = vmatpush1.bf16.msra.mxu0 0
        %4484 = vmatprep.subr.bf16.mxu0 0
        %4485 = vmatpush1.bf16.msra.mxu0 0
        %4486 = vmatprep.mubr.bf16.mxu0 0
        %4487 = vmatmul.mubr.bf16.gmra.mrb[0].mxu0 %v4450
        %v4488 = vpop.f32.mrb[0].mxu0
        %v4489 = vadd.f32 %v4434, %v4488
        %v4490 = vpop.f32.mrb[0].mxu0
        %v4491 = vpop.f32.mrb[0].mxu0
        %v4492 = vadd.f32 %v4435, %v4491
        %v4493 = vpop.f32.mrb[0].mxu0
        %4494 = vmatprep.mubr.bf16.mxu0 0
        %4495 = vmatmul.mubr.bf16.gmra.mrb[0].mxu0 %v4451
        %v4496 = vpop.f32.mrb[0].mxu0
        %v4497 = vadd.f32 %v4436, %v4496
        %v4498 = vpop.f32.mrb[0].mxu0
        %v4499 = vpop.f32.mrb[0].mxu0
        %v4500 = vadd.f32 %v4437, %v4499
        %v4501 = vpop.f32.mrb[0].mxu0
        %4502 = vmatprep.mubr.bf16.mxu0 0
        %4503 = vmatmul.mubr.bf16.gmra.mrb[0].mxu0 %v4452
        %v4504 = vpop.f32.mrb[0].mxu0
        %v4505 = vadd.f32 %v4438, %v4504
        %v4506 = vpop.f32.mrb[0].mxu0
        %v4507 = vpop.f32.mrb[0].mxu0
        %v4508 = vadd.f32 %v4439, %v4507
        %v4509 = vpop.f32.mrb[0].mxu0
        %4510 = vmatprep.mubr.bf16.mxu0 0
        %4511 = vmatmul.mubr.bf16.gmra.mrb[0].mxu0 %v4453
        %v4512 = vpop.f32.mrb[0].mxu0
        %v4513 = vadd.f32 %v4440, %v4512
        %v4514 = vpop.f32.mrb[0].mxu0
        %v4515 = vpop.f32.mrb[0].mxu0
        %v4516 = vadd.f32 %v4441, %v4515
        %v4517 = vpop.f32.mrb[0].mxu0
        %4518 = vdwg.mxu0
        %v4519 = vadd.f32 %v4489, %v3405
        %v4520 = vadd.f32 %v4492, %v3405
        %v4521 = vadd.f32 %v4497, %v3405
        %v4522 = vadd.f32 %v4500, %v3405
        %v4523 = vadd.f32 %v4505, %v3405
        %v4524 = vadd.f32 %v4508, %v3405
        %v4525 = vadd.f32 %v4513, %v3405
        %v4526 = vadd.f32 %v4516, %v3405
        %v4527 = vpack.c.bf16 %v4427, %v4426
        %v4528 = vpack.c.bf16 %v4429, %v4428
        %v4529 = vpack.c.bf16 %v4431, %v4430
        %v4530 = vpack.c.bf16 %v4433, %v4432
        %4531 = vmatprep.subr.bf16.mxu0 0
        %4532 = vmatpush1.bf16.msra.mxu0 %v3320
        %4533 = vmatprep.subr.bf16.mxu0 0
        %4534 = vmatpush1.bf16.msra.mxu0 %v3321
        %4535 = vmatprep.subr.bf16.mxu0 0
        %4536 = vmatpush1.bf16.msra.mxu0 %v3322
        %4537 = vmatprep.subr.bf16.mxu0 0
        %4538 = vmatpush1.bf16.msra.mxu0 %v3323
        %4539 = vmatprep.subr.bf16.mxu0 0
        %4540 = vmatpush1.bf16.msra.mxu0 %v3324
        %4541 = vmatprep.subr.bf16.mxu0 0
        %4542 = vmatpush1.bf16.msra.mxu0 %v3325
        %4543 = vmatprep.subr.bf16.mxu0 0
        %4544 = vmatpush1.bf16.msra.mxu0 %v3326
        %4545 = vmatprep.subr.bf16.mxu0 0
        %4546 = vmatpush1.bf16.msra.mxu0 %v3327
        %4547 = vmatprep.subr.bf16.mxu0 0
        %4548 = vmatpush1.bf16.msra.mxu0 0
        %4549 = vmatprep.subr.bf16.mxu0 0
        %4550 = vmatpush1.bf16.msra.mxu0 0
        %4551 = vmatprep.subr.bf16.mxu0 0
        %4552 = vmatpush1.bf16.msra.mxu0 0
        %4553 = vmatprep.subr.bf16.mxu0 0
        %4554 = vmatpush1.bf16.msra.mxu0 0
        %4555 = vmatprep.subr.bf16.mxu0 0
        %4556 = vmatpush1.bf16.msra.mxu0 0
        %4557 = vmatprep.subr.bf16.mxu0 0
        %4558 = vmatpush1.bf16.msra.mxu0 0
        %4559 = vmatprep.subr.bf16.mxu0 0
        %4560 = vmatpush1.bf16.msra.mxu0 0
        %4561 = vmatprep.subr.bf16.mxu0 0
        %4562 = vmatpush1.bf16.msra.mxu0 0
        %4563 = vmatprep.mubr.bf16.mxu0 0
        %4564 = vmatmul.mubr.bf16.gmra.mrb[0].mxu0 %v4527
        %v4565 = vpop.f32.mrb[0].mxu0
        %v4566 = vadd.f32 %v4442, %v4565
        %v4567 = vpop.f32.mrb[0].mxu0
        %v4568 = vpop.f32.mrb[0].mxu0
        %v4569 = vadd.f32 %v4443, %v4568
        %v4570 = vpop.f32.mrb[0].mxu0
        %4571 = vmatprep.mubr.bf16.mxu0 0
        %4572 = vmatmul.mubr.bf16.gmra.mrb[0].mxu0 %v4528
        %v4573 = vpop.f32.mrb[0].mxu0
        %v4574 = vadd.f32 %v4444, %v4573
        %v4575 = vpop.f32.mrb[0].mxu0
        %v4576 = vpop.f32.mrb[0].mxu0
        %v4577 = vadd.f32 %v4445, %v4576
        %v4578 = vpop.f32.mrb[0].mxu0
        %4579 = vmatprep.mubr.bf16.mxu0 0
        %4580 = vmatmul.mubr.bf16.gmra.mrb[0].mxu0 %v4529
        %v4581 = vpop.f32.mrb[0].mxu0
        %v4582 = vadd.f32 %v4446, %v4581
        %v4583 = vpop.f32.mrb[0].mxu0
        %v4584 = vpop.f32.mrb[0].mxu0
        %v4585 = vadd.f32 %v4447, %v4584
        %v4586 = vpop.f32.mrb[0].mxu0
        %4587 = vmatprep.mubr.bf16.mxu0 0
        %4588 = vmatmul.mubr.bf16.gmra.mrb[0].mxu0 %v4530
        %v4589 = vpop.f32.mrb[0].mxu0
        %v4590 = vadd.f32 %v4448, %v4589
        %v4591 = vpop.f32.mrb[0].mxu0
        %v4592 = vpop.f32.mrb[0].mxu0
        %v4593 = vadd.f32 %v4449, %v4592
        %v4594 = vpop.f32.mrb[0].mxu0
        %4595 = vdwg.mxu0
        %v4596 = vadd.f32 %v4566, %v3405
        %v4597 = vadd.f32 %v4569, %v3405
        %v4598 = vadd.f32 %v4574, %v3405
        %v4599 = vadd.f32 %v4577, %v3405
        %v4600 = vadd.f32 %v4582, %v3405
        %v4601 = vadd.f32 %v4585, %v3405
        %v4602 = vadd.f32 %v4590, %v3405
        %v4603 = vadd.f32 %v4593, %v3405
        %v4604 = vtanh.pop %v4519
        %v4605 = vtanh.pop %v4520
        %v4606 = vtanh.pop %v4521
        %v4607 = vtanh.pop %v4522
        %v4608 = vtanh.pop %v4523
        %v4609 = vtanh.pop %v4524
        %v4610 = vtanh.pop %v4525
        %v4611 = vtanh.pop %v4526
        %v4612 = vtanh.pop %v4596
        %v4613 = vtanh.pop %v4597
        %v4614 = vtanh.pop %v4598
        %v4615 = vtanh.pop %v4599
        %v4616 = vtanh.pop %v4600
        %v4617 = vtanh.pop %v4601
        %v4618 = vtanh.pop %v4602
        %v4619 = vtanh.pop %v4603
        %v4620 = vld [vmem:[%s3238] sm:$0xff]
        %v4621 = vld [vmem:[%s3238 + $0x8] sm:$0xff]
        %v4622 = vld [vmem:[%s3238 + $0x10] sm:$0xff]
        %v4623 = vld [vmem:[%s3238 + $0x18] sm:$0xff]
        %v4624 = vld [vmem:[%s3238 + $0x20] sm:$0xff]
        %v4625 = vld [vmem:[%s3238 + $0x28] sm:$0xff]
        %v4626 = vld [vmem:[%s3238 + $0x30] sm:$0xff]
        %v4627 = vld [vmem:[%s3238 + $0x38] sm:$0xff]
        %v4628 = vld [vmem:[%s3238 + $0x40] sm:$0xff]
        %v4629 = vld [vmem:[%s3238 + $0x48] sm:$0xff]
        %v4630 = vld [vmem:[%s3238 + $0x50] sm:$0xff]
        %v4631 = vld [vmem:[%s3238 + $0x58] sm:$0xff]
        %v4632 = vld [vmem:[%s3238 + $0x60] sm:$0xff]
        %v4633 = vld [vmem:[%s3238 + $0x68] sm:$0xff]
        %v4634 = vld [vmem:[%s3238 + $0x70] sm:$0xff]
        %v4635 = vld [vmem:[%s3238 + $0x78] sm:$0xff]
        %v4636 = vpack.c.bf16 %v4605, %v4604
        %v4637 = vpack.c.bf16 %v4607, %v4606
        %v4638 = vpack.c.bf16 %v4609, %v4608
        %v4639 = vpack.c.bf16 %v4611, %v4610
        %4640 = vmatprep.subr.bf16.mxu0 0
        %4641 = vmatpush1.bf16.msra.mxu0 %v3320
        %4642 = vmatprep.subr.bf16.mxu0 0
        %4643 = vmatpush1.bf16.msra.mxu0 %v3321
        %4644 = vmatprep.subr.bf16.mxu0 0
        %4645 = vmatpush1.bf16.msra.mxu0 %v3322
        %4646 = vmatprep.subr.bf16.mxu0 0
        %4647 = vmatpush1.bf16.msra.mxu0 %v3323
        %4648 = vmatprep.subr.bf16.mxu0 0
        %4649 = vmatpush1.bf16.msra.mxu0 %v3324
        %4650 = vmatprep.subr.bf16.mxu0 0
        %4651 = vmatpush1.bf16.msra.mxu0 %v3325
        %4652 = vmatprep.subr.bf16.mxu0 0
        %4653 = vmatpush1.bf16.msra.mxu0 %v3326
        %4654 = vmatprep.subr.bf16.mxu0 0
        %4655 = vmatpush1.bf16.msra.mxu0 %v3327
        %4656 = vmatprep.subr.bf16.mxu0 0
        %4657 = vmatpush1.bf16.msra.mxu0 0
        %4658 = vmatprep.subr.bf16.mxu0 0
        %4659 = vmatpush1.bf16.msra.mxu0 0
        %4660 = vmatprep.subr.bf16.mxu0 0
        %4661 = vmatpush1.bf16.msra.mxu0 0
        %4662 = vmatprep.subr.bf16.mxu0 0
        %4663 = vmatpush1.bf16.msra.mxu0 0
        %4664 = vmatprep.subr.bf16.mxu0 0
        %4665 = vmatpush1.bf16.msra.mxu0 0
        %4666 = vmatprep.subr.bf16.mxu0 0
        %4667 = vmatpush1.bf16.msra.mxu0 0
        %4668 = vmatprep.subr.bf16.mxu0 0
        %4669 = vmatpush1.bf16.msra.mxu0 0
        %4670 = vmatprep.subr.bf16.mxu0 0
        %4671 = vmatpush1.bf16.msra.mxu0 0
        %4672 = vmatprep.mubr.bf16.mxu0 0
        %4673 = vmatmul.mubr.bf16.gmra.mrb[0].mxu0 %v4636
        %v4674 = vpop.f32.mrb[0].mxu0
        %v4675 = vadd.f32 %v4620, %v4674
        %v4676 = vpop.f32.mrb[0].mxu0
        %v4677 = vpop.f32.mrb[0].mxu0
        %v4678 = vadd.f32 %v4621, %v4677
        %v4679 = vpop.f32.mrb[0].mxu0
        %4680 = vmatprep.mubr.bf16.mxu0 0
        %4681 = vmatmul.mubr.bf16.gmra.mrb[0].mxu0 %v4637
        %v4682 = vpop.f32.mrb[0].mxu0
        %v4683 = vadd.f32 %v4622, %v4682
        %v4684 = vpop.f32.mrb[0].mxu0
        %v4685 = vpop.f32.mrb[0].mxu0
        %v4686 = vadd.f32 %v4623, %v4685
        %v4687 = vpop.f32.mrb[0].mxu0
        %4688 = vmatprep.mubr.bf16.mxu0 0
        %4689 = vmatmul.mubr.bf16.gmra.mrb[0].mxu0 %v4638
        %v4690 = vpop.f32.mrb[0].mxu0
        %v4691 = vadd.f32 %v4624, %v4690
        %v4692 = vpop.f32.mrb[0].mxu0
        %v4693 = vpop.f32.mrb[0].mxu0
        %v4694 = vadd.f32 %v4625, %v4693
        %v4695 = vpop.f32.mrb[0].mxu0
        %4696 = vmatprep.mubr.bf16.mxu0 0
        %4697 = vmatmul.mubr.bf16.gmra.mrb[0].mxu0 %v4639
        %v4698 = vpop.f32.mrb[0].mxu0
        %v4699 = vadd.f32 %v4626, %v4698
        %v4700 = vpop.f32.mrb[0].mxu0
        %v4701 = vpop.f32.mrb[0].mxu0
        %v4702 = vadd.f32 %v4627, %v4701
        %v4703 = vpop.f32.mrb[0].mxu0
        %4704 = vdwg.mxu0
        %v4705 = vadd.f32 %v4675, %v3405
        %v4706 = vadd.f32 %v4678, %v3405
        %v4707 = vadd.f32 %v4683, %v3405
        %v4708 = vadd.f32 %v4686, %v3405
        %v4709 = vadd.f32 %v4691, %v3405
        %v4710 = vadd.f32 %v4694, %v3405
        %v4711 = vadd.f32 %v4699, %v3405
        %v4712 = vadd.f32 %v4702, %v3405
        %v4713 = vpack.c.bf16 %v4613, %v4612
        %v4714 = vpack.c.bf16 %v4615, %v4614
        %v4715 = vpack.c.bf16 %v4617, %v4616
        %v4716 = vpack.c.bf16 %v4619, %v4618
        %4717 = vmatprep.subr.bf16.mxu0 0
        %4718 = vmatpush1.bf16.msra.mxu0 %v3320
        %4719 = vmatprep.subr.bf16.mxu0 0
        %4720 = vmatpush1.bf16.msra.mxu0 %v3321
        %4721 = vmatprep.subr.bf16.mxu0 0
        %4722 = vmatpush1.bf16.msra.mxu0 %v3322
        %4723 = vmatprep.subr.bf16.mxu0 0
        %4724 = vmatpush1.bf16.msra.mxu0 %v3323
        %4725 = vmatprep.subr.bf16.mxu0 0
        %4726 = vmatpush1.bf16.msra.mxu0 %v3324
        %4727 = vmatprep.subr.bf16.mxu0 0
        %4728 = vmatpush1.bf16.msra.mxu0 %v3325
        %4729 = vmatprep.subr.bf16.mxu0 0
        %4730 = vmatpush1.bf16.msra.mxu0 %v3326
        %4731 = vmatprep.subr.bf16.mxu0 0
        %4732 = vmatpush1.bf16.msra.mxu0 %v3327
        %4733 = vmatprep.subr.bf16.mxu0 0
        %4734 = vmatpush1.bf16.msra.mxu0 0
        %4735 = vmatprep.subr.bf16.mxu0 0
        %4736 = vmatpush1.bf16.msra.mxu0 0
        %4737 = vmatprep.subr.bf16.mxu0 0
        %4738 = vmatpush1.bf16.msra.mxu0 0
        %4739 = vmatprep.subr.bf16.mxu0 0
        %4740 = vmatpush1.bf16.msra.mxu0 0
        %4741 = vmatprep.subr.bf16.mxu0 0
        %4742 = vmatpush1.bf16.msra.mxu0 0
        %4743 = vmatprep.subr.bf16.mxu0 0
        %4744 = vmatpush1.bf16.msra.mxu0 0
        %4745 = vmatprep.subr.bf16.mxu0 0
        %4746 = vmatpush1.bf16.msra.mxu0 0
        %4747 = vmatprep.subr.bf16.mxu0 0
        %4748 = vmatpush1.bf16.msra.mxu0 0
        %4749 = vmatprep.mubr.bf16.mxu0 0
        %4750 = vmatmul.mubr.bf16.gmra.mrb[0].mxu0 %v4713
        %v4751 = vpop.f32.mrb[0].mxu0
        %v4752 = vadd.f32 %v4628, %v4751
        %v4753 = vpop.f32.mrb[0].mxu0
        %v4754 = vpop.f32.mrb[0].mxu0
        %v4755 = vadd.f32 %v4629, %v4754
        %v4756 = vpop.f32.mrb[0].mxu0
        %4757 = vmatprep.mubr.bf16.mxu0 0
        %4758 = vmatmul.mubr.bf16.gmra.mrb[0].mxu0 %v4714
        %v4759 = vpop.f32.mrb[0].mxu0
        %v4760 = vadd.f32 %v4630, %v4759
        %v4761 = vpop.f32.mrb[0].mxu0
        %v4762 = vpop.f32.mrb[0].mxu0
        %v4763 = vadd.f32 %v4631, %v4762
        %v4764 = vpop.f32.mrb[0].mxu0
        %4765 = vmatprep.mubr.bf16.mxu0 0
        %4766 = vmatmul.mubr.bf16.gmra.mrb[0].mxu0 %v4715
        %v4767 = vpop.f32.mrb[0].mxu0
        %v4768 = vadd.f32 %v4632, %v4767
        %v4769 = vpop.f32.mrb[0].mxu0
        %v4770 = vpop.f32.mrb[0].mxu0
        %v4771 = vadd.f32 %v4633, %v4770
        %v4772 = vpop.f32.mrb[0].mxu0
        %4773 = vmatprep.mubr.bf16.mxu0 0
        %4774 = vmatmul.mubr.bf16.gmra.mrb[0].mxu0 %v4716
        %v4775 = vpop.f32.mrb[0].mxu0
        %v4776 = vadd.f32 %v4634, %v4775
        %v4777 = vpop.f32.mrb[0].mxu0
        %v4778 = vpop.f32.mrb[0].mxu0
        %v4779 = vadd.f32 %v4635, %v4778
        %v4780 = vpop.f32.mrb[0].mxu0
        %4781 = vdwg.mxu0
        %v4782 = vadd.f32 %v4752, %v3405
        %v4783 = vadd.f32 %v4755, %v3405
        %v4784 = vadd.f32 %v4760, %v3405
        %v4785 = vadd.f32 %v4763, %v3405
        %v4786 = vadd.f32 %v4768, %v3405
        %v4787 = vadd.f32 %v4771, %v3405
        %v4788 = vadd.f32 %v4776, %v3405
        %v4789 = vadd.f32 %v4779, %v3405
        %v4790 = vtanh.pop %v4705
        %v4791 = vtanh.pop %v4706
        %v4792 = vtanh.pop %v4707
        %v4793 = vtanh.pop %v4708
        %v4794 = vtanh.pop %v4709
        %v4795 = vtanh.pop %v4710
        %v4796 = vtanh.pop %v4711
        %v4797 = vtanh.pop %v4712
        %v4798 = vtanh.pop %v4782
        %v4799 = vtanh.pop %v4783
        %v4800 = vtanh.pop %v4784
        %v4801 = vtanh.pop %v4785
        %v4802 = vtanh.pop %v4786
        %v4803 = vtanh.pop %v4787
        %v4804 = vtanh.pop %v4788
        %v4805 = vtanh.pop %v4789
        %v4806 = vpack.c.bf16 %v4791, %v4790
        %v4807 = vpack.c.bf16 %v4793, %v4792
        %v4808 = vpack.c.bf16 %v4795, %v4794
        %v4809 = vpack.c.bf16 %v4797, %v4796
        %v4810 = vpack.c.bf16 %v4799, %v4798
        %v4811 = vpack.c.bf16 %v4801, %v4800
        %v4812 = vpack.c.bf16 %v4803, %v4802
        %v4813 = vpack.c.bf16 %v4805, %v4804
        %v4814 = vld [vmem:[%s5] sm:$0xf]
        %v4815 = vld [vmem:[%s5 + $0x4] sm:$0xf]
        %v4816 = vld [vmem:[%s5 + $0x8] sm:$0xf]
        %v4817 = vld [vmem:[%s5 + $0xc] sm:$0xf]
        %v4818 = vld [vmem:[%s5 + $0x10] sm:$0xf]
        %v4819 = vld [vmem:[%s5 + $0x14] sm:$0xf]
        %v4820 = vld [vmem:[%s5 + $0x18] sm:$0xf]
        %v4821 = vld [vmem:[%s5 + $0x1c] sm:$0xf]
        %v4822 = vld [vmem:[%s5 + $0x20] sm:$0xf]
        %v4823 = vld [vmem:[%s5 + $0x24] sm:$0xf]
        %v4824 = vld [vmem:[%s5 + $0x28] sm:$0xf]
        %v4825 = vld [vmem:[%s5 + $0x2c] sm:$0xf]
        %v4826 = vld [vmem:[%s5 + $0x30] sm:$0xf]
        %v4827 = vld [vmem:[%s5 + $0x34] sm:$0xf]
        %v4828 = vld [vmem:[%s5 + $0x38] sm:$0xf]
        %v4829 = vld [vmem:[%s5 + $0x3c] sm:$0xf]
        %v4846 = vunpack.c.l.b16 %v4814
        %v4847 = vunpack.c.l.b16 %v4815
        %v4848 = vunpack.c.l.b16 %v4816
        %v4849 = vunpack.c.l.b16 %v4817
        %v4850 = vunpack.c.l.b16 %v4818
        %v4851 = vunpack.c.l.b16 %v4819
        %v4852 = vunpack.c.l.b16 %v4820
        %v4853 = vunpack.c.l.b16 %v4821
        %v4854 = vunpack.c.l.b16 %v4822
        %v4855 = vunpack.c.l.b16 %v4823
        %v4856 = vunpack.c.l.b16 %v4824
        %v4857 = vunpack.c.l.b16 %v4825
        %v4858 = vunpack.c.l.b16 %v4826
        %v4859 = vunpack.c.l.b16 %v4827
        %v4860 = vunpack.c.l.b16 %v4828
        %v4861 = vunpack.c.l.b16 %v4829
        %v4862 = vpack.c.b16 %v4847, %v4846
        %v4863 = vpack.c.b16 %v4849, %v4848
        %v4864 = vpack.c.b16 %v4851, %v4850
        %v4865 = vpack.c.b16 %v4853, %v4852
        %v4866 = vpack.c.b16 %v4855, %v4854
        %v4867 = vpack.c.b16 %v4857, %v4856
        %v4868 = vpack.c.b16 %v4859, %v4858
        %v4869 = vpack.c.b16 %v4861, %v4860
        %4878 = vmatprep.subr.bf16.mxu0 0
        %4879 = vmatpush1.bf16.msra.mxu0 %v4862
        %4880 = vmatprep.subr.bf16.mxu0 0
        %4881 = vmatpush1.bf16.msra.mxu0 %v4863
        %4882 = vmatprep.subr.bf16.mxu0 0
        %4883 = vmatpush1.bf16.msra.mxu0 %v4864
        %4884 = vmatprep.subr.bf16.mxu0 0
        %4885 = vmatpush1.bf16.msra.mxu0 %v4865
        %4886 = vmatprep.subr.bf16.mxu0 0
        %4887 = vmatpush1.bf16.msra.mxu0 %v4866
        %4888 = vmatprep.subr.bf16.mxu0 0
        %4889 = vmatpush1.bf16.msra.mxu0 %v4867
        %4890 = vmatprep.subr.bf16.mxu0 0
        %4891 = vmatpush1.bf16.msra.mxu0 %v4868
        %4892 = vmatprep.subr.bf16.mxu0 0
        %4893 = vmatpush1.bf16.msra.mxu0 %v4869
        %4894 = vmatprep.subr.bf16.mxu0 0
        %4895 = vmatpush1.bf16.msra.mxu0 0
        %4896 = vmatprep.subr.bf16.mxu0 0
        %4897 = vmatpush1.bf16.msra.mxu0 0
        %4898 = vmatprep.subr.bf16.mxu0 0
        %4899 = vmatpush1.bf16.msra.mxu0 0
        %4900 = vmatprep.subr.bf16.mxu0 0
        %4901 = vmatpush1.bf16.msra.mxu0 0
        %4902 = vmatprep.subr.bf16.mxu0 0
        %4903 = vmatpush1.bf16.msra.mxu0 0
        %4904 = vmatprep.subr.bf16.mxu0 0
        %4905 = vmatpush1.bf16.msra.mxu0 0
        %4906 = vmatprep.subr.bf16.mxu0 0
        %4907 = vmatpush1.bf16.msra.mxu0 0
        %4908 = vmatprep.subr.bf16.mxu0 0
        %4909 = vmatpush1.bf16.msra.mxu0 0
        %4910 = vmatprep.mubr.bf16.mxu0 0
        %4911 = vmatmul.mubr.bf16.gmra.mrb[0].mxu0 %v4806
        %v4912 = vpop.f32.mrb[0].mxu0
        %v4913 = vadd.f32 %v1306, %v4912
        %v4914 = vpop.f32.mrb[0].mxu0
        %v4915 = vpop.f32.mrb[0].mxu0
        %v4916 = vadd.f32 %v1309, %v4915
        %v4917 = vpop.f32.mrb[0].mxu0
        %4918 = vmatprep.mubr.bf16.mxu0 0
        %4919 = vmatmul.mubr.bf16.gmra.mrb[0].mxu0 %v4807
        %v4920 = vpop.f32.mrb[0].mxu0
        %v4921 = vadd.f32 %v1314, %v4920
        %v4922 = vpop.f32.mrb[0].mxu0
        %v4923 = vpop.f32.mrb[0].mxu0
        %v4924 = vadd.f32 %v1317, %v4923
        %v4925 = vpop.f32.mrb[0].mxu0
        %4926 = vmatprep.mubr.bf16.mxu0 0
        %4927 = vmatmul.mubr.bf16.gmra.mrb[0].mxu0 %v4808
        %v4928 = vpop.f32.mrb[0].mxu0
        %v4929 = vadd.f32 %v1322, %v4928
        %v4930 = vpop.f32.mrb[0].mxu0
        %v4931 = vpop.f32.mrb[0].mxu0
        %v4932 = vadd.f32 %v1325, %v4931
        %v4933 = vpop.f32.mrb[0].mxu0
        %4934 = vmatprep.mubr.bf16.mxu0 0
        %4935 = vmatmul.mubr.bf16.gmra.mrb[0].mxu0 %v4809
        %v4936 = vpop.f32.mrb[0].mxu0
        %v4937 = vadd.f32 %v1330, %v4936
        %v4938 = vpop.f32.mrb[0].mxu0
        %v4939 = vpop.f32.mrb[0].mxu0
        %v4940 = vadd.f32 %v1333, %v4939
        %v4941 = vpop.f32.mrb[0].mxu0
        %4942 = vmatprep.mubr.bf16.mxu0 0
        %4943 = vmatmul.mubr.bf16.gmra.mrb[0].mxu0 %v4810
        %v4944 = vpop.f32.mrb[0].mxu0
        %v4945 = vadd.f32 %v1338, %v4944
        %v4946 = vpop.f32.mrb[0].mxu0
        %v4947 = vpop.f32.mrb[0].mxu0
        %v4948 = vadd.f32 %v1341, %v4947
        %v4949 = vpop.f32.mrb[0].mxu0
        %4950 = vmatprep.mubr.bf16.mxu0 0
        %4951 = vmatmul.mubr.bf16.gmra.mrb[0].mxu0 %v4811
        %v4952 = vpop.f32.mrb[0].mxu0
        %v4953 = vadd.f32 %v1346, %v4952
        %v4954 = vpop.f32.mrb[0].mxu0
        %v4955 = vpop.f32.mrb[0].mxu0
        %v4956 = vadd.f32 %v1349, %v4955
        %v4957 = vpop.f32.mrb[0].mxu0
        %4958 = vmatprep.mubr.bf16.mxu0 0
        %4959 = vmatmul.mubr.bf16.gmra.mrb[0].mxu0 %v4812
        %v4960 = vpop.f32.mrb[0].mxu0
        %v4961 = vadd.f32 %v1354, %v4960
        %v4962 = vpop.f32.mrb[0].mxu0
        %v4963 = vpop.f32.mrb[0].mxu0
        %v4964 = vadd.f32 %v1357, %v4963
        %v4965 = vpop.f32.mrb[0].mxu0
        %4966 = vmatprep.mubr.bf16.mxu0 0
        %4967 = vmatmul.mubr.bf16.gmra.mrb[0].mxu0 %v4813
        %v4968 = vpop.f32.mrb[0].mxu0
        %v4969 = vadd.f32 %v1362, %v4968
        %v4970 = vpop.f32.mrb[0].mxu0
        %v4971 = vpop.f32.mrb[0].mxu0
        %v4972 = vadd.f32 %v1365, %v4971
        %v4973 = vpop.f32.mrb[0].mxu0
        %4974 = vdwg.mxu0
        %v4975 = vmax.f32 %v4913, 0.0
        %v4976 = vmax.f32 %v4916, 0.0
        %v4977 = vmax.f32 %v4921, 0.0
        %v4978 = vmax.f32 %v4924, 0.0
        %v4979 = vmax.f32 %v4929, 0.0
        %v4980 = vmax.f32 %v4932, 0.0
        %v4981 = vmax.f32 %v4937, 0.0
        %v4982 = vmax.f32 %v4940, 0.0
        %v4983 = vmax.f32 %v4945, 0.0
        %v4984 = vmax.f32 %v4948, 0.0
        %v4985 = vmax.f32 %v4953, 0.0
        %v4986 = vmax.f32 %v4956, 0.0
        %v4987 = vmax.f32 %v4961, 0.0
        %v4988 = vmax.f32 %v4964, 0.0
        %v4989 = vmax.f32 %v4969, 0.0
        %v4990 = vmax.f32 %v4972, 0.0
        %v4991 = vpack.c.bf16 %v4976, %v4975
        %v4992 = vpack.c.bf16 %v4978, %v4977
        %v4993 = vpack.c.bf16 %v4980, %v4979
        %v4994 = vpack.c.bf16 %v4982, %v4981
        %v4995 = vpack.c.bf16 %v4984, %v4983
        %v4996 = vpack.c.bf16 %v4986, %v4985
        %v4997 = vpack.c.bf16 %v4988, %v4987
        %v4998 = vpack.c.bf16 %v4990, %v4989
        %v4999 = vld [vmem:[%s8] sm:$0xf]
        %v5000 = vld [vmem:[%s8 + $0x4] sm:$0xf]
        %v5001 = vld [vmem:[%s8 + $0x8] sm:$0xf]
        %v5002 = vld [vmem:[%s8 + $0xc] sm:$0xf]
        %v5003 = vld [vmem:[%s8 + $0x10] sm:$0xf]
        %v5004 = vld [vmem:[%s8 + $0x14] sm:$0xf]
        %v5005 = vld [vmem:[%s8 + $0x18] sm:$0xf]
        %v5006 = vld [vmem:[%s8 + $0x1c] sm:$0xf]
        %v5007 = vld [vmem:[%s8 + $0x20] sm:$0xf]
        %v5008 = vld [vmem:[%s8 + $0x24] sm:$0xf]
        %v5009 = vld [vmem:[%s8 + $0x28] sm:$0xf]
        %v5010 = vld [vmem:[%s8 + $0x2c] sm:$0xf]
        %v5011 = vld [vmem:[%s8 + $0x30] sm:$0xf]
        %v5012 = vld [vmem:[%s8 + $0x34] sm:$0xf]
        %v5013 = vld [vmem:[%s8 + $0x38] sm:$0xf]
        %v5014 = vld [vmem:[%s8 + $0x3c] sm:$0xf]
        %v5015 = vld [vmem:[%s9] sm:$0x1]
        %v5017 = vlaneseq
        %v5018 = vshrl.u32 %v5017, 7
        %v5019 = vsub.s32 0, %v5018
        %v5020 = vrot.slane %v5015, %v5019
        %v5038 = vunpack.c.l.b16 %v4999
        %v5039 = vunpack.c.l.b16 %v5000
        %v5040 = vunpack.c.l.b16 %v5001
        %v5041 = vunpack.c.l.b16 %v5002
        %v5042 = vunpack.c.l.b16 %v5003
        %v5043 = vunpack.c.l.b16 %v5004
        %v5044 = vunpack.c.l.b16 %v5005
        %v5045 = vunpack.c.l.b16 %v5006
        %v5046 = vunpack.c.l.b16 %v5007
        %v5047 = vunpack.c.l.b16 %v5008
        %v5048 = vunpack.c.l.b16 %v5009
        %v5049 = vunpack.c.l.b16 %v5010
        %v5050 = vunpack.c.l.b16 %v5011
        %v5051 = vunpack.c.l.b16 %v5012
        %v5052 = vunpack.c.l.b16 %v5013
        %v5053 = vunpack.c.l.b16 %v5014
        %v5054 = vpack.c.b16 %v5039, %v5038
        %v5055 = vpack.c.b16 %v5041, %v5040
        %v5056 = vpack.c.b16 %v5043, %v5042
        %v5057 = vpack.c.b16 %v5045, %v5044
        %v5058 = vpack.c.b16 %v5047, %v5046
        %v5059 = vpack.c.b16 %v5049, %v5048
        %v5060 = vpack.c.b16 %v5051, %v5050
        %v5061 = vpack.c.b16 %v5053, %v5052
        %5070 = vmatprep.subr.bf16.mxu0 0
        %5071 = vmatpush1.bf16.msra.mxu0 %v5054
        %5072 = vmatprep.subr.bf16.mxu0 0
        %5073 = vmatpush1.bf16.msra.mxu0 %v5055
        %5074 = vmatprep.subr.bf16.mxu0 0
        %5075 = vmatpush1.bf16.msra.mxu0 %v5056
        %5076 = vmatprep.subr.bf16.mxu0 0
        %5077 = vmatpush1.bf16.msra.mxu0 %v5057
        %5078 = vmatprep.subr.bf16.mxu0 0
        %5079 = vmatpush1.bf16.msra.mxu0 %v5058
        %5080 = vmatprep.subr.bf16.mxu0 0
        %5081 = vmatpush1.bf16.msra.mxu0 %v5059
        %5082 = vmatprep.subr.bf16.mxu0 0
        %5083 = vmatpush1.bf16.msra.mxu0 %v5060
        %5084 = vmatprep.subr.bf16.mxu0 0
        %5085 = vmatpush1.bf16.msra.mxu0 %v5061
        %5086 = vmatprep.subr.bf16.mxu0 0
        %5087 = vmatpush1.bf16.msra.mxu0 0
        %5088 = vmatprep.subr.bf16.mxu0 0
        %5089 = vmatpush1.bf16.msra.mxu0 0
        %5090 = vmatprep.subr.bf16.mxu0 0
        %5091 = vmatpush1.bf16.msra.mxu0 0
        %5092 = vmatprep.subr.bf16.mxu0 0
        %5093 = vmatpush1.bf16.msra.mxu0 0
        %5094 = vmatprep.subr.bf16.mxu0 0
        %5095 = vmatpush1.bf16.msra.mxu0 0
        %5096 = vmatprep.subr.bf16.mxu0 0
        %5097 = vmatpush1.bf16.msra.mxu0 0
        %5098 = vmatprep.subr.bf16.mxu0 0
        %5099 = vmatpush1.bf16.msra.mxu0 0
        %5100 = vmatprep.subr.bf16.mxu0 0
        %5101 = vmatpush1.bf16.msra.mxu0 0
        %5102 = vmatprep.mubr.bf16.mxu0 0
        %5103 = vmatmul.mubr.bf16.gmra.mrb[0].mxu0 %v4991
        %v5104 = vpop.f32.mrb[0].mxu0
        %v5105 = vadd.f32 %v5020, %v5104
        %v5106 = vpop.f32.mrb[0].mxu0
        %v5107 = vpop.f32.mrb[0].mxu0
        %v5108 = vadd.f32 %v5020, %v5107
        %v5109 = vpop.f32.mrb[0].mxu0
        %5110 = vmatprep.mubr.bf16.mxu0 0
        %5111 = vmatmul.mubr.bf16.gmra.mrb[0].mxu0 %v4992
        %v5112 = vpop.f32.mrb[0].mxu0
        %v5113 = vadd.f32 %v5020, %v5112
        %v5114 = vpop.f32.mrb[0].mxu0
        %v5115 = vpop.f32.mrb[0].mxu0
        %v5116 = vadd.f32 %v5020, %v5115
        %v5117 = vpop.f32.mrb[0].mxu0
        %5118 = vmatprep.mubr.bf16.mxu0 0
        %5119 = vmatmul.mubr.bf16.gmra.mrb[0].mxu0 %v4993
        %v5120 = vpop.f32.mrb[0].mxu0
        %v5121 = vadd.f32 %v5020, %v5120
        %v5122 = vpop.f32.mrb[0].mxu0
        %v5123 = vpop.f32.mrb[0].mxu0
        %v5124 = vadd.f32 %v5020, %v5123
        %v5125 = vpop.f32.mrb[0].mxu0
        %5126 = vmatprep.mubr.bf16.mxu0 0
        %5127 = vmatmul.mubr.bf16.gmra.mrb[0].mxu0 %v4994
        %v5128 = vpop.f32.mrb[0].mxu0
        %v5129 = vadd.f32 %v5020, %v5128
        %v5130 = vpop.f32.mrb[0].mxu0
        %v5131 = vpop.f32.mrb[0].mxu0
        %v5132 = vadd.f32 %v5020, %v5131
        %v5133 = vpop.f32.mrb[0].mxu0
        %5134 = vmatprep.mubr.bf16.mxu0 0
        %5135 = vmatmul.mubr.bf16.gmra.mrb[0].mxu0 %v4995
        %v5136 = vpop.f32.mrb[0].mxu0
        %v5137 = vadd.f32 %v5020, %v5136
        %v5138 = vpop.f32.mrb[0].mxu0
        %v5139 = vpop.f32.mrb[0].mxu0
        %v5140 = vadd.f32 %v5020, %v5139
        %v5141 = vpop.f32.mrb[0].mxu0
        %5142 = vmatprep.mubr.bf16.mxu0 0
        %5143 = vmatmul.mubr.bf16.gmra.mrb[0].mxu0 %v4996
        %v5144 = vpop.f32.mrb[0].mxu0
        %v5145 = vadd.f32 %v5020, %v5144
        %v5146 = vpop.f32.mrb[0].mxu0
        %v5147 = vpop.f32.mrb[0].mxu0
        %v5148 = vadd.f32 %v5020, %v5147
        %v5149 = vpop.f32.mrb[0].mxu0
        %5150 = vmatprep.mubr.bf16.mxu0 0
        %5151 = vmatmul.mubr.bf16.gmra.mrb[0].mxu0 %v4997
        %v5152 = vpop.f32.mrb[0].mxu0
        %v5153 = vadd.f32 %v5020, %v5152
        %v5154 = vpop.f32.mrb[0].mxu0
        %v5155 = vpop.f32.mrb[0].mxu0
        %v5156 = vadd.f32 %v5020, %v5155
        %v5157 = vpop.f32.mrb[0].mxu0
        %5158 = vmatprep.mubr.bf16.mxu0 0
        %5159 = vmatmul.mubr.bf16.gmra.mrb[0].mxu0 %v4998
        %v5160 = vpop.f32.mrb[0].mxu0
        %v5161 = vadd.f32 %v5020, %v5160
        %v5162 = vpop.f32.mrb[0].mxu0
        %v5163 = vpop.f32.mrb[0].mxu0
        %v5164 = vadd.f32 %v5020, %v5163
        %v5165 = vpop.f32.mrb[0].mxu0
        %5166 = vdwg.mxu0
        %v5167 = vmax.f32 %v5105, 0.0
        %v5168 = vmax.f32 %v5108, 0.0
        %v5169 = vmax.f32 %v5113, 0.0
        %v5170 = vmax.f32 %v5116, 0.0
        %v5171 = vmax.f32 %v5121, 0.0
        %v5172 = vmax.f32 %v5124, 0.0
        %v5173 = vmax.f32 %v5129, 0.0
        %v5174 = vmax.f32 %v5132, 0.0
        %v5175 = vmax.f32 %v5137, 0.0
        %v5176 = vmax.f32 %v5140, 0.0
        %v5177 = vmax.f32 %v5145, 0.0
        %v5178 = vmax.f32 %v5148, 0.0
        %v5179 = vmax.f32 %v5153, 0.0
        %v5180 = vmax.f32 %v5156, 0.0
        %v5181 = vmax.f32 %v5161, 0.0
        %v5182 = vmax.f32 %v5164, 0.0
        %v5183 = vpack.c.bf16 %v5168, %v5167
        %v5184 = vpack.c.bf16 %v5170, %v5169
        %v5185 = vpack.c.bf16 %v5172, %v5171
        %v5186 = vpack.c.bf16 %v5174, %v5173
        %v5187 = vpack.c.bf16 %v5176, %v5175
        %v5188 = vpack.c.bf16 %v5178, %v5177
        %v5189 = vpack.c.bf16 %v5180, %v5179
        %v5190 = vpack.c.bf16 %v5182, %v5181
        %v5191 = vld [vmem:[%s10] sm:$0xf]
        %v5192 = vld [vmem:[%s10 + $0x4] sm:$0xf]
        %v5193 = vld [vmem:[%s10 + $0x8] sm:$0xf]
        %v5194 = vld [vmem:[%s10 + $0xc] sm:$0xf]
        %v5195 = vld [vmem:[%s10 + $0x10] sm:$0xf]
        %v5196 = vld [vmem:[%s10 + $0x14] sm:$0xf]
        %v5197 = vld [vmem:[%s10 + $0x18] sm:$0xf]
        %v5198 = vld [vmem:[%s10 + $0x1c] sm:$0xf]
        %v5199 = vld [vmem:[%s10 + $0x20] sm:$0xf]
        %v5200 = vld [vmem:[%s10 + $0x24] sm:$0xf]
        %v5201 = vld [vmem:[%s10 + $0x28] sm:$0xf]
        %v5202 = vld [vmem:[%s10 + $0x2c] sm:$0xf]
        %v5203 = vld [vmem:[%s10 + $0x30] sm:$0xf]
        %v5204 = vld [vmem:[%s10 + $0x34] sm:$0xf]
        %v5205 = vld [vmem:[%s10 + $0x38] sm:$0xf]
        %v5206 = vld [vmem:[%s10 + $0x3c] sm:$0xf]
        %v5207 = vld [vmem:[%s11] sm:$0x1]
        %v5209 = vlaneseq
        %v5210 = vshrl.u32 %v5209, 7
        %v5211 = vsub.s32 0, %v5210
        %v5212 = vrot.slane %v5207, %v5211
        %v5230 = vunpack.c.l.b16 %v5191
        %v5231 = vunpack.c.l.b16 %v5192
        %v5232 = vunpack.c.l.b16 %v5193
        %v5233 = vunpack.c.l.b16 %v5194
        %v5234 = vunpack.c.l.b16 %v5195
        %v5235 = vunpack.c.l.b16 %v5196
        %v5236 = vunpack.c.l.b16 %v5197
        %v5237 = vunpack.c.l.b16 %v5198
        %v5238 = vunpack.c.l.b16 %v5199
        %v5239 = vunpack.c.l.b16 %v5200
        %v5240 = vunpack.c.l.b16 %v5201
        %v5241 = vunpack.c.l.b16 %v5202
        %v5242 = vunpack.c.l.b16 %v5203
        %v5243 = vunpack.c.l.b16 %v5204
        %v5244 = vunpack.c.l.b16 %v5205
        %v5245 = vunpack.c.l.b16 %v5206
        %v5246 = vpack.c.b16 %v5231, %v5230
        %v5247 = vpack.c.b16 %v5233, %v5232
        %v5248 = vpack.c.b16 %v5235, %v5234
        %v5249 = vpack.c.b16 %v5237, %v5236
        %v5250 = vpack.c.b16 %v5239, %v5238
        %v5251 = vpack.c.b16 %v5241, %v5240
        %v5252 = vpack.c.b16 %v5243, %v5242
        %v5253 = vpack.c.b16 %v5245, %v5244
        %5262 = vmatprep.subr.bf16.mxu0 0
        %5263 = vmatpush1.bf16.msra.mxu0 %v5246
        %5264 = vmatprep.subr.bf16.mxu0 0
        %5265 = vmatpush1.bf16.msra.mxu0 %v5247
        %5266 = vmatprep.subr.bf16.mxu0 0
        %5267 = vmatpush1.bf16.msra.mxu0 %v5248
        %5268 = vmatprep.subr.bf16.mxu0 0
        %5269 = vmatpush1.bf16.msra.mxu0 %v5249
        %5270 = vmatprep.subr.bf16.mxu0 0
        %5271 = vmatpush1.bf16.msra.mxu0 %v5250
        %5272 = vmatprep.subr.bf16.mxu0 0
        %5273 = vmatpush1.bf16.msra.mxu0 %v5251
        %5274 = vmatprep.subr.bf16.mxu0 0
        %5275 = vmatpush1.bf16.msra.mxu0 %v5252
        %5276 = vmatprep.subr.bf16.mxu0 0
        %5277 = vmatpush1.bf16.msra.mxu0 %v5253
        %5278 = vmatprep.subr.bf16.mxu0 0
        %5279 = vmatpush1.bf16.msra.mxu0 0
        %5280 = vmatprep.subr.bf16.mxu0 0
        %5281 = vmatpush1.bf16.msra.mxu0 0
        %5282 = vmatprep.subr.bf16.mxu0 0
        %5283 = vmatpush1.bf16.msra.mxu0 0
        %5284 = vmatprep.subr.bf16.mxu0 0
        %5285 = vmatpush1.bf16.msra.mxu0 0
        %5286 = vmatprep.subr.bf16.mxu0 0
        %5287 = vmatpush1.bf16.msra.mxu0 0
        %5288 = vmatprep.subr.bf16.mxu0 0
        %5289 = vmatpush1.bf16.msra.mxu0 0
        %5290 = vmatprep.subr.bf16.mxu0 0
        %5291 = vmatpush1.bf16.msra.mxu0 0
        %5292 = vmatprep.subr.bf16.mxu0 0
        %5293 = vmatpush1.bf16.msra.mxu0 0
        %5294 = vmatprep.mubr.bf16.mxu0 0
        %5295 = vmatmul.mubr.bf16.gmra.mrb[0].mxu0 %v5183
        %v5296 = vpop.f32.mrb[0].mxu0
        %v5297 = vadd.f32 %v5212, %v5296
        %v5298 = vpop.f32.mrb[0].mxu0
        %v5299 = vpop.f32.mrb[0].mxu0
        %v5300 = vadd.f32 %v5212, %v5299
        %v5301 = vpop.f32.mrb[0].mxu0
        %5302 = vmatprep.mubr.bf16.mxu0 0
        %5303 = vmatmul.mubr.bf16.gmra.mrb[0].mxu0 %v5184
        %v5304 = vpop.f32.mrb[0].mxu0
        %v5305 = vadd.f32 %v5212, %v5304
        %v5306 = vpop.f32.mrb[0].mxu0
        %v5307 = vpop.f32.mrb[0].mxu0
        %v5308 = vadd.f32 %v5212, %v5307
        %v5309 = vpop.f32.mrb[0].mxu0
        %5310 = vmatprep.mubr.bf16.mxu0 0
        %5311 = vmatmul.mubr.bf16.gmra.mrb[0].mxu0 %v5185
        %v5312 = vpop.f32.mrb[0].mxu0
        %v5313 = vadd.f32 %v5212, %v5312
        %v5314 = vpop.f32.mrb[0].mxu0
        %v5315 = vpop.f32.mrb[0].mxu0
        %v5316 = vadd.f32 %v5212, %v5315
        %v5317 = vpop.f32.mrb[0].mxu0
        %5318 = vmatprep.mubr.bf16.mxu0 0
        %5319 = vmatmul.mubr.bf16.gmra.mrb[0].mxu0 %v5186
        %v5320 = vpop.f32.mrb[0].mxu0
        %v5321 = vadd.f32 %v5212, %v5320
        %v5322 = vpop.f32.mrb[0].mxu0
        %v5323 = vpop.f32.mrb[0].mxu0
        %v5324 = vadd.f32 %v5212, %v5323
        %v5325 = vpop.f32.mrb[0].mxu0
        %5326 = vmatprep.mubr.bf16.mxu0 0
        %5327 = vmatmul.mubr.bf16.gmra.mrb[0].mxu0 %v5187
        %v5328 = vpop.f32.mrb[0].mxu0
        %v5329 = vadd.f32 %v5212, %v5328
        %v5330 = vpop.f32.mrb[0].mxu0
        %v5331 = vpop.f32.mrb[0].mxu0
        %v5332 = vadd.f32 %v5212, %v5331
        %v5333 = vpop.f32.mrb[0].mxu0
        %5334 = vmatprep.mubr.bf16.mxu0 0
        %5335 = vmatmul.mubr.bf16.gmra.mrb[0].mxu0 %v5188
        %v5336 = vpop.f32.mrb[0].mxu0
        %v5337 = vadd.f32 %v5212, %v5336
        %v5338 = vpop.f32.mrb[0].mxu0
        %v5339 = vpop.f32.mrb[0].mxu0
        %v5340 = vadd.f32 %v5212, %v5339
        %v5341 = vpop.f32.mrb[0].mxu0
        %5342 = vmatprep.mubr.bf16.mxu0 0
        %5343 = vmatmul.mubr.bf16.gmra.mrb[0].mxu0 %v5189
        %v5344 = vpop.f32.mrb[0].mxu0
        %v5345 = vadd.f32 %v5212, %v5344
        %v5346 = vpop.f32.mrb[0].mxu0
        %v5347 = vpop.f32.mrb[0].mxu0
        %v5348 = vadd.f32 %v5212, %v5347
        %v5349 = vpop.f32.mrb[0].mxu0
        %5350 = vmatprep.mubr.bf16.mxu0 0
        %5351 = vmatmul.mubr.bf16.gmra.mrb[0].mxu0 %v5190
        %v5352 = vpop.f32.mrb[0].mxu0
        %v5353 = vadd.f32 %v5212, %v5352
        %v5354 = vpop.f32.mrb[0].mxu0
        %v5355 = vpop.f32.mrb[0].mxu0
        %v5356 = vadd.f32 %v5212, %v5355
        %v5357 = vpop.f32.mrb[0].mxu0
        %5358 = vdwg.mxu0
        %v5359 = vmax.f32 %v5297, 0.0
        %v5360 = vmax.f32 %v5300, 0.0
        %v5361 = vmax.f32 %v5305, 0.0
        %v5362 = vmax.f32 %v5308, 0.0
        %v5363 = vmax.f32 %v5313, 0.0
        %v5364 = vmax.f32 %v5316, 0.0
        %v5365 = vmax.f32 %v5321, 0.0
        %v5366 = vmax.f32 %v5324, 0.0
        %v5367 = vmax.f32 %v5329, 0.0
        %v5368 = vmax.f32 %v5332, 0.0
        %v5369 = vmax.f32 %v5337, 0.0
        %v5370 = vmax.f32 %v5340, 0.0
        %v5371 = vmax.f32 %v5345, 0.0
        %v5372 = vmax.f32 %v5348, 0.0
        %v5373 = vmax.f32 %v5353, 0.0
        %v5374 = vmax.f32 %v5356, 0.0
        %v5375 = vpack.c.bf16 %v5360, %v5359
        %v5376 = vpack.c.bf16 %v5362, %v5361
        %v5377 = vpack.c.bf16 %v5364, %v5363
        %v5378 = vpack.c.bf16 %v5366, %v5365
        %v5379 = vpack.c.bf16 %v5368, %v5367
        %v5380 = vpack.c.bf16 %v5370, %v5369
        %v5381 = vpack.c.bf16 %v5372, %v5371
        %v5382 = vpack.c.bf16 %v5374, %v5373
        %v5383 = vld [vmem:[%s12] sm:$0xf]
        %v5384 = vld [vmem:[%s12 + $0x4] sm:$0xf]
        %v5385 = vld [vmem:[%s12 + $0x8] sm:$0xf]
        %v5386 = vld [vmem:[%s12 + $0xc] sm:$0xf]
        %v5387 = vld [vmem:[%s12 + $0x10] sm:$0xf]
        %v5388 = vld [vmem:[%s12 + $0x14] sm:$0xf]
        %v5389 = vld [vmem:[%s12 + $0x18] sm:$0xf]
        %v5390 = vld [vmem:[%s12 + $0x1c] sm:$0xf]
        %v5391 = vld [vmem:[%s12 + $0x20] sm:$0xf]
        %v5392 = vld [vmem:[%s12 + $0x24] sm:$0xf]
        %v5393 = vld [vmem:[%s12 + $0x28] sm:$0xf]
        %v5394 = vld [vmem:[%s12 + $0x2c] sm:$0xf]
        %v5395 = vld [vmem:[%s12 + $0x30] sm:$0xf]
        %v5396 = vld [vmem:[%s12 + $0x34] sm:$0xf]
        %v5397 = vld [vmem:[%s12 + $0x38] sm:$0xf]
        %v5398 = vld [vmem:[%s12 + $0x3c] sm:$0xf]
        %v5399 = vld [vmem:[%s13] sm:$0x1]
        %v5401 = vlaneseq
        %v5402 = vshrl.u32 %v5401, 7
        %v5403 = vsub.s32 0, %v5402
        %v5404 = vrot.slane %v5399, %v5403
        %v5422 = vunpack.c.l.b16 %v5383
        %v5423 = vunpack.c.l.b16 %v5384
        %v5424 = vunpack.c.l.b16 %v5385
        %v5425 = vunpack.c.l.b16 %v5386
        %v5426 = vunpack.c.l.b16 %v5387
        %v5427 = vunpack.c.l.b16 %v5388
        %v5428 = vunpack.c.l.b16 %v5389
        %v5429 = vunpack.c.l.b16 %v5390
        %v5430 = vunpack.c.l.b16 %v5391
        %v5431 = vunpack.c.l.b16 %v5392
        %v5432 = vunpack.c.l.b16 %v5393
        %v5433 = vunpack.c.l.b16 %v5394
        %v5434 = vunpack.c.l.b16 %v5395
        %v5435 = vunpack.c.l.b16 %v5396
        %v5436 = vunpack.c.l.b16 %v5397
        %v5437 = vunpack.c.l.b16 %v5398
        %v5438 = vpack.c.b16 %v5423, %v5422
        %v5439 = vpack.c.b16 %v5425, %v5424
        %v5440 = vpack.c.b16 %v5427, %v5426
        %v5441 = vpack.c.b16 %v5429, %v5428
        %v5442 = vpack.c.b16 %v5431, %v5430
        %v5443 = vpack.c.b16 %v5433, %v5432
        %v5444 = vpack.c.b16 %v5435, %v5434
        %v5445 = vpack.c.b16 %v5437, %v5436
        %5454 = vmatprep.subr.bf16.mxu0 0
        %5455 = vmatpush1.bf16.msra.mxu0 %v5438
        %5456 = vmatprep.subr.bf16.mxu0 0
        %5457 = vmatpush1.bf16.msra.mxu0 %v5439
        %5458 = vmatprep.subr.bf16.mxu0 0
        %5459 = vmatpush1.bf16.msra.mxu0 %v5440
        %5460 = vmatprep.subr.bf16.mxu0 0
        %5461 = vmatpush1.bf16.msra.mxu0 %v5441
        %5462 = vmatprep.subr.bf16.mxu0 0
        %5463 = vmatpush1.bf16.msra.mxu0 %v5442
        %5464 = vmatprep.subr.bf16.mxu0 0
        %5465 = vmatpush1.bf16.msra.mxu0 %v5443
        %5466 = vmatprep.subr.bf16.mxu0 0
        %5467 = vmatpush1.bf16.msra.mxu0 %v5444
        %5468 = vmatprep.subr.bf16.mxu0 0
        %5469 = vmatpush1.bf16.msra.mxu0 %v5445
        %5470 = vmatprep.subr.bf16.mxu0 0
        %5471 = vmatpush1.bf16.msra.mxu0 0
        %5472 = vmatprep.subr.bf16.mxu0 0
        %5473 = vmatpush1.bf16.msra.mxu0 0
        %5474 = vmatprep.subr.bf16.mxu0 0
        %5475 = vmatpush1.bf16.msra.mxu0 0
        %5476 = vmatprep.subr.bf16.mxu0 0
        %5477 = vmatpush1.bf16.msra.mxu0 0
        %5478 = vmatprep.subr.bf16.mxu0 0
        %5479 = vmatpush1.bf16.msra.mxu0 0
        %5480 = vmatprep.subr.bf16.mxu0 0
        %5481 = vmatpush1.bf16.msra.mxu0 0
        %5482 = vmatprep.subr.bf16.mxu0 0
        %5483 = vmatpush1.bf16.msra.mxu0 0
        %5484 = vmatprep.subr.bf16.mxu0 0
        %5485 = vmatpush1.bf16.msra.mxu0 0
        %5486 = vmatprep.mubr.bf16.mxu0 0
        %5487 = vmatmul.mubr.bf16.gmra.mrb[0].mxu0 %v5375
        %v5488 = vpop.f32.mrb[0].mxu0
        %v5489 = vadd.f32 %v5404, %v5488
        %v5490 = vpop.f32.mrb[0].mxu0
        %v5491 = vpop.f32.mrb[0].mxu0
        %v5492 = vadd.f32 %v5404, %v5491
        %v5493 = vpop.f32.mrb[0].mxu0
        %5494 = vmatprep.mubr.bf16.mxu0 0
        %5495 = vmatmul.mubr.bf16.gmra.mrb[0].mxu0 %v5376
        %v5496 = vpop.f32.mrb[0].mxu0
        %v5497 = vadd.f32 %v5404, %v5496
        %v5498 = vpop.f32.mrb[0].mxu0
        %v5499 = vpop.f32.mrb[0].mxu0
        %v5500 = vadd.f32 %v5404, %v5499
        %v5501 = vpop.f32.mrb[0].mxu0
        %5502 = vmatprep.mubr.bf16.mxu0 0
        %5503 = vmatmul.mubr.bf16.gmra.mrb[0].mxu0 %v5377
        %v5504 = vpop.f32.mrb[0].mxu0
        %v5505 = vadd.f32 %v5404, %v5504
        %v5506 = vpop.f32.mrb[0].mxu0
        %v5507 = vpop.f32.mrb[0].mxu0
        %v5508 = vadd.f32 %v5404, %v5507
        %v5509 = vpop.f32.mrb[0].mxu0
        %5510 = vmatprep.mubr.bf16.mxu0 0
        %5511 = vmatmul.mubr.bf16.gmra.mrb[0].mxu0 %v5378
        %v5512 = vpop.f32.mrb[0].mxu0
        %v5513 = vadd.f32 %v5404, %v5512
        %v5514 = vpop.f32.mrb[0].mxu0
        %v5515 = vpop.f32.mrb[0].mxu0
        %v5516 = vadd.f32 %v5404, %v5515
        %v5517 = vpop.f32.mrb[0].mxu0
        %5518 = vmatprep.mubr.bf16.mxu0 0
        %5519 = vmatmul.mubr.bf16.gmra.mrb[0].mxu0 %v5379
        %v5520 = vpop.f32.mrb[0].mxu0
        %v5521 = vadd.f32 %v5404, %v5520
        %v5522 = vpop.f32.mrb[0].mxu0
        %v5523 = vpop.f32.mrb[0].mxu0
        %v5524 = vadd.f32 %v5404, %v5523
        %v5525 = vpop.f32.mrb[0].mxu0
        %5526 = vmatprep.mubr.bf16.mxu0 0
        %5527 = vmatmul.mubr.bf16.gmra.mrb[0].mxu0 %v5380
        %v5528 = vpop.f32.mrb[0].mxu0
        %v5529 = vadd.f32 %v5404, %v5528
        %v5530 = vpop.f32.mrb[0].mxu0
        %v5531 = vpop.f32.mrb[0].mxu0
        %v5532 = vadd.f32 %v5404, %v5531
        %v5533 = vpop.f32.mrb[0].mxu0
        %5534 = vmatprep.mubr.bf16.mxu0 0
        %5535 = vmatmul.mubr.bf16.gmra.mrb[0].mxu0 %v5381
        %v5536 = vpop.f32.mrb[0].mxu0
        %v5537 = vadd.f32 %v5404, %v5536
        %v5538 = vpop.f32.mrb[0].mxu0
        %v5539 = vpop.f32.mrb[0].mxu0
        %v5540 = vadd.f32 %v5404, %v5539
        %v5541 = vpop.f32.mrb[0].mxu0
        %5542 = vmatprep.mubr.bf16.mxu0 0
        %5543 = vmatmul.mubr.bf16.gmra.mrb[0].mxu0 %v5382
        %v5544 = vpop.f32.mrb[0].mxu0
        %v5545 = vadd.f32 %v5404, %v5544
        %v5546 = vpop.f32.mrb[0].mxu0
        %v5547 = vpop.f32.mrb[0].mxu0
        %v5548 = vadd.f32 %v5404, %v5547
        %v5549 = vpop.f32.mrb[0].mxu0
        %5550 = vdwg.mxu0
        %5551 = vst [vmem:[%s1037] sm:$0xff] %v5489
        %5552 = vst [vmem:[%s1037 + $0x8] sm:$0xff] %v5492
        %5553 = vst [vmem:[%s1037 + $0x10] sm:$0xff] %v5497
        %5554 = vst [vmem:[%s1037 + $0x18] sm:$0xff] %v5500
        %5555 = vst [vmem:[%s1037 + $0x20] sm:$0xff] %v5505
        %5556 = vst [vmem:[%s1037 + $0x28] sm:$0xff] %v5508
        %5557 = vst [vmem:[%s1037 + $0x30] sm:$0xff] %v5513
        %5558 = vst [vmem:[%s1037 + $0x38] sm:$0xff] %v5516
        %5559 = vst [vmem:[%s1037 + $0x40] sm:$0xff] %v5521
        %5560 = vst [vmem:[%s1037 + $0x48] sm:$0xff] %v5524
        %5561 = vst [vmem:[%s1037 + $0x50] sm:$0xff] %v5529
        %5562 = vst [vmem:[%s1037 + $0x58] sm:$0xff] %v5532
        %5563 = vst [vmem:[%s1037 + $0x60] sm:$0xff] %v5537
        %5564 = vst [vmem:[%s1037 + $0x68] sm:$0xff] %v5540
        %5565 = vst [vmem:[%s1037 + $0x70] sm:$0xff] %v5545
        %5566 = vst [vmem:[%s1037 + $0x78] sm:$0xff] %v5548
        %s5567 = smul.u32 16, %s25
        %p5568 = scmp.lt.s32.totalorder %s5567, 31
        %s5569 = scalar_select %p5568, %s5567, 31
        %s5570 = smul.addr %s5569, 8
        %s5571 = scalar_lea.vmem %s14, %s5570
        // Predicated region
        $region115: #{net_forward.1} parent=109 // pred_check
          %p5572 = pneg %p347
        $region116: #{net_forward.1} parent=109 // pred_check_branch
          %5574 = sbr.rel (%p5572) target = $region118
        $region117: #{net_forward.1} parent=109 // pred_region
          %s5575 = smul.u32 16, %s25
        $region118: #{net_forward.1} parent=109 // pred_fallthru
          _
      $region110: #{net_forward.1} parent=5 // pred_fallthru
        _
      %p5576 = scmp.le.s32.totalorder 2, %s20
      // Predicated region
      $region119: #{net_forward.1} parent=5 // pred_check
        %p5577 = pneg %p5576
      $region120: #{net_forward.1} parent=5 // pred_check_branch
        %5579 = sbr.rel (%p5577) target = $region122
      $region121: #{net_forward.1} parent=5 // pred_region
        %s5580 = ssub.s32 %s20, 2
        // Predicated region
        $region123: #{net_forward.1} parent=121 // pred_check
          %p5581 = pneg %p353
        $region124: #{net_forward.1} parent=121 // pred_check_branch
          %5583 = sbr.rel (%p5581) target = $region126
        $region125: #{net_forward.1} parent=121 // pred_region
          %s5584 = smul.u32 16, %s26
          %p5585 = scmp.lt.s32.totalorder %s5584, 31
          %s5586 = scalar_select %p5585, %s5584, 31
          %s5587 = smul.addr %s5586, 8
          %s5588 = scalar_lea.vmem %s14, %s5587
        $region126: #{net_forward.1} parent=121 // pred_fallthru
          _
      $region122: #{net_forward.1} parent=5 // pred_fallthru
        _
    $region6: #{net_forward.1} parent=1 // loop_footer
      %s24 = sadd.s32 1, %s20
    $region7: #{net_forward.1} parent=1 // loop_footer_branch
      %19 = sbr.rel target = $region3
    $region8: #{net_forward.1} parent=1 // loop_exit
      _

</llo_original>
